<compile_context>
chip_gen: v7x
topology: tpu7x:2x2x1
jax: 0.10.0
libtpu: 0.0.40
codegen_flags: <defaults>
</compile_context>

<pallas_src>
import functools

import jax
import jax.numpy as jnp
import numpy as np
from jax.experimental import pallas as pl
from jax.experimental.pallas import tpu as pltpu

BN_EPS = 1e-5
_DN = (((2,), (0,)), ((), ()))  # contract last dim of (H,W,Cin) with first of (Cin,Cout)


# ---------------------------------------------------------------------------
# In-kernel helpers
# ---------------------------------------------------------------------------
def _accum_stats(st_ref, v, c):
    """Accumulate per-channel sum / sum-of-squares of a (H, W, C) f32 value."""
    st_ref[0:1, :] += jnp.sum(v, axis=(0, 1), keepdims=True).reshape(1, c)
    st_ref[1:2, :] += jnp.sum(v * v, axis=(0, 1), keepdims=True).reshape(1, c)


def _bn_normalize(v, st_ref, g_ref, b_ref, count, c):
    """Batch-norm (training statistics) of a (H, W, C) f32 value."""
    inv_n = 1.0 / count
    mean = (st_ref[0:1, :] * inv_n).reshape(1, 1, c)
    ex2 = (st_ref[1:2, :] * inv_n).reshape(1, 1, c)
    inv_std = jax.lax.rsqrt(ex2 - mean * mean + BN_EPS)
    return (v - mean) * inv_std * g_ref[...].reshape(1, 1, c) + b_ref[...].reshape(1, 1, c)


def _conv_taps(slices, w_ref):
    """Sum of per-tap MXU contractions: sum_t slices[t] @ w_ref[t]."""
    acc = None
    for t, lhs in enumerate(slices):
        part = jax.lax.dot_general(lhs, w_ref[t], dimension_numbers=_DN,
                                   preferred_element_type=jnp.float32)
        acc = part if acc is None else acc + part
    return acc


# ---------------------------------------------------------------------------
# Pallas kernels
# ---------------------------------------------------------------------------
def _stage1_kernel(*refs, taps, sc_tap, Hp, Ho, Wo, Cout, has_proj):
    """conv1 (stride folded via phase decomposition) [+ 1x1 projection] + stats."""
    if has_proj:
        x_ref, w1_ref, ws_ref, y1_ref, sc_ref, st1_ref, sts_ref = refs
    else:
        x_ref, w1_ref, y1_ref, st1_ref = refs

    @pl.when(pl.program_id(0) == 0)
    def _init():
        st1_ref[...] = jnp.zeros_like(st1_ref)
        if has_proj:
            sts_ref[...] = jnp.zeros_like(sts_ref)

    slices = []
    for (ph, oy, ox) in taps:           # all static python ints -> static windows
        r = ph * Hp + oy
        slices.append(x_ref[0, r:r + Ho, ox:ox + Wo, :])
    y = _conv_taps(slices, w1_ref)      # (Ho, Wo, Cout) f32
    y1_ref[0] = y
    _accum_stats(st1_ref, y, Cout)

    if has_proj:
        ph, oy, ox = sc_tap
        r = ph * Hp + oy
        xs = x_ref[0, r:r + Ho, ox:ox + Wo, :]
        sc = jax.lax.dot_general(xs, ws_ref[...], dimension_numbers=_DN,
                                 preferred_element_type=jnp.float32)
        sc_ref[0] = sc
        _accum_stats(sts_ref, sc, Cout)


def _stage2_kernel(y1_ref, st1_ref, g1_ref, b1_ref, w2_ref, y2_ref, st2_ref, apad_ref,
                   *, Ho, Wo, C, count):
    """bn1 + relu + conv2 (stride 1, pad 1 via VMEM halo scratch) + stats."""
    @pl.when(pl.program_id(0) == 0)
    def _init():
        apad_ref[...] = jnp.zeros_like(apad_ref)   # halo stays zero afterwards
        st2_ref[...] = jnp.zeros_like(st2_ref)

    a = _bn_normalize(y1_ref[0], st1_ref, g1_ref, b1_ref, count, C)   # bn1
    a = jnp.maximum(a, 0.0)                                           # relu
    apad_ref[1:Ho + 1, 1:Wo + 1, :] = a

    slices = []
    for t in range(9):
        dy, dx = t // 3, t % 3
        slices.append(apad_ref[dy:dy + Ho, dx:dx + Wo, :].astype(jnp.bfloat16))
    y2 = _conv_taps(slices, w2_ref)
    y2_ref[0] = y2
    _accum_stats(st2_ref, y2, C)


def _stage3_kernel(*refs, C, count, has_proj):
    """bn2 [+ bn_s] + residual add + relu.  Fully parallel elementwise grid."""
    if has_proj:
        y2_ref, sc_ref, st2_ref, g2_ref, b2_ref, sts_ref, gs_ref, bs_ref, o_ref = refs
    else:
        y2_ref, sc_ref, st2_ref, g2_ref, b2_ref, o_ref = refs

    out = _bn_normalize(y2_ref[0], st2_ref, g2_ref, b2_ref, count, C)       # bn2
    if has_proj:
        out = out + _bn_normalize(sc_ref[0], sts_ref, gs_ref, bs_ref, count, C)
    else:
        out = out + sc_ref[0]
    o_ref[0] = jnp.maximum(out, 0.0).astype(o_ref.dtype)


# ---------------------------------------------------------------------------
# Wrapper
# ---------------------------------------------------------------------------
def basic_block_forward(x_nchw, params, stride):
    if stride not in (1, 2):
        # TODO(synk): strides other than 1/2 are not used by ResNet BasicBlock.
        raise NotImplementedError("stride must be 1 or 2")

    x = jnp.transpose(x_nchw, (0, 2, 3, 1)).astype(jnp.float32)  # NCHW -> NHWC
    N, H, W, Cin = x.shape
    Cout = params["w1"].shape[-1]
    has_proj = bool(params["has_proj"])
    Ho = (H - 1) // stride + 1
    Wo = (W - 1) // stride + 1
    count = float(N * Ho * Wo)

    # ---- wrapper-side padding / stride-2 phase decomposition (cheap XLA ops) ----
    xpad = jnp.pad(x, ((0, 0), (1, 1), (1, 1), (0, 0)))
    if stride == 1:
        Hp, Wp, P = H + 2, W + 2, 1
        xph = xpad
        taps = tuple((0, dy, dx) for dy in range(3) for dx in range(3))
        sc_tap = (0, 1, 1)
    else:
        assert H % 2 == 0 and W % 2 == 0, "stride-2 BasicBlock expects even H, W"
        Hp, Wp, P = (H + 2) // 2, (W + 2) // 2, 4
        # phase p = 2*(row parity) + (col parity); tap (dy,dx) reads phase
        # ((dy%2)*2 + dx%2) at offset (dy//2, dx//2): no strided access in-kernel.
        phases = [xpad[:, r::2, c::2, :] for r in (0, 1) for c in (0, 1)]
        xph = jnp.concatenate(phases, axis=1)                 # (N, 4*Hp, Wp, Cin)
        taps = tuple(((dy % 2) * 2 + (dx % 2), dy // 2, dx // 2)
                     for dy in range(3) for dx in range(3))
        sc_tap = (3, 0, 0)                                    # x[2i, 2j] = OO-phase
    xph = xph.astype(jnp.bfloat16)

    # ---- weight packing: (3,3,Ci,Co) -> (9,Ci,Co), tap t = 3*dy + dx ----
    w1k = params["w1"].reshape(9, Cin, Cout).astype(jnp.bfloat16)
    w2k = params["w2"].reshape(9, Cout, Cout).astype(jnp.bfloat16)

    # ---- specs ----
    img_in = pl.BlockSpec((1, P * Hp, Wp, Cin), lambda n: (n, 0, 0, 0))
    img_mid = pl.BlockSpec((1, Ho, Wo, Cout), lambda n: (n, 0, 0, 0))
    stats_spec = pl.BlockSpec((2, Cout), lambda n: (0, 0))
    vec_spec = pl.BlockSpec((1, Cout), lambda n: (0, 0))

    def w_spec(shp):
        nd = len(shp)
        return pl.BlockSpec(tuple(shp), lambda n: (0,) * nd)

    stats_sds = jax.ShapeDtypeStruct((2, Cout), jnp.float32)
    y_sds = jax.ShapeDtypeStruct((N, Ho, Wo, Cout), jnp.float32)
    arb = pltpu.CompilerParams(dimension_semantics=("arbitrary",))

    # ---------------- stage 1: conv1 (+ shortcut conv) + stats ----------------
    s1 = functools.partial(_stage1_kernel, taps=taps, sc_tap=sc_tap, Hp=Hp,
                           Ho=Ho, Wo=Wo, Cout=Cout, has_proj=has_proj)
    if has_proj:
        wsk = params["ws"].astype(jnp.bfloat16)               # (Cin, Cout)
        y1, sc, st1, sts = pl.pallas_call(
            s1,
            out_shape=(y_sds, y_sds, stats_sds, stats_sds),
            grid=(N,),
            in_specs=[img_in, w_spec(w1k.shape), w_spec(wsk.shape)],
            out_specs=(img_mid, img_mid, stats_spec, stats_spec),
            compiler_params=arb,
        )(xph, w1k, wsk)
    else:
        y1, st1 = pl.pallas_call(
            s1,
            out_shape=(y_sds, stats_sds),
            grid=(N,),
            in_specs=[img_in, w_spec(w1k.shape)],
            out_specs=(img_mid, stats_spec),
            compiler_params=arb,
        )(xph, w1k)

    # ---------------- stage 2: bn1 + relu + conv2 + stats ----------------
    g1 = params["g1"].reshape(1, Cout).astype(jnp.float32)
    b1 = params["b1"].reshape(1, Cout).astype(jnp.float32)
    y2, st2 = pl.pallas_call(
        functools.partial(_stage2_kernel, Ho=Ho, Wo=Wo, C=Cout, count=count),
        out_shape=(y_sds, stats_sds),
        grid=(N,),
        in_specs=[img_mid, stats_spec, vec_spec, vec_spec, w_spec(w2k.shape)],
        out_specs=(img_mid, stats_spec),
        scratch_shapes=[pltpu.VMEM((Ho + 2, Wo + 2, Cout), jnp.float32)],
        compiler_params=arb,
    )(y1, st1, g1, b1, w2k)

    # ------- stage 3: bn2 (+ bn_s) + residual + relu, tiled & fully parallel -------
    g2 = params["g2"].reshape(1, Cout).astype(jnp.float32)
    b2 = params["b2"].reshape(1, Cout).astype(jnp.float32)
    th = Ho if Ho <= 8 else 8
    img3 = pl.BlockSpec((1, th, Wo, Cout), lambda n, h: (n, h, 0, 0))
    stats3 = pl.BlockSpec((2, Cout), lambda n, h: (0, 0))
    vec3 = pl.BlockSpec((1, Cout), lambda n, h: (0, 0))
    par = pltpu.CompilerParams(dimension_semantics=("parallel", "parallel"))
    out_sds = jax.ShapeDtypeStruct((N, Ho, Wo, Cout), x_nchw.dtype)
    s3 = functools.partial(_stage3_kernel, C=Cout, count=count, has_proj=has_proj)
    if has_proj:
        gs = params["gs"].reshape(1, Cout).astype(jnp.float32)
        bs = params["bs"].reshape(1, Cout).astype(jnp.float32)
        out = pl.pallas_call(
            s3, out_shape=out_sds, grid=(N, pl.cdiv(Ho, th)),
            in_specs=[img3, img3, stats3, vec3, vec3, stats3, vec3, vec3],
            out_specs=img3, compiler_params=par,
        )(y2, sc, st2, g2, b2, sts, gs, bs)
    else:
        out = pl.pallas_call(
            s3, out_shape=out_sds, grid=(N, pl.cdiv(Ho, th)),
            in_specs=[img3, img3, stats3, vec3, vec3],
            out_specs=img3, compiler_params=par,
        )(y2, x, st2, g2, b2)

    return jnp.transpose(out, (0, 3, 1, 2))  # NHWC -> NCHW


# ---------------------------------------------------------------------------
# Plain-JAX reference (same bf16 matmul-operand cast points as the kernel)
# ---------------------------------------------------------------------------
def _conv_ref(x, w_hwio, stride, pad):
    return jax.lax.conv_general_dilated(
        x.astype(jnp.bfloat16), w_hwio.astype(jnp.bfloat16),
        window_strides=(stride, stride), padding=[(pad, pad), (pad, pad)],
        dimension_numbers=("NHWC", "HWIO", "NHWC"),
        preferred_element_type=jnp.float32)


def _bn_ref(x, g, b):
    mean = jnp.mean(x, axis=(0, 1, 2), keepdims=True)
    var = jnp.mean(jnp.square(x - mean), axis=(0, 1, 2), keepdims=True)
    return (x - mean) * jax.lax.rsqrt(var + BN_EPS) * g.reshape(1, 1, 1, -1) + b.reshape(1, 1, 1, -1)


def basic_block_ref(x_nchw, params, stride):
    x = jnp.transpose(x_nchw, (0, 2, 3, 1)).astype(jnp.float32)
    a1 = jax.nn.relu(_bn_ref(_conv_ref(x, params["w1"], stride, 1), params["g1"], params["b1"]))
    o = _bn_ref(_conv_ref(a1, params["w2"], 1, 1), params["g2"], params["b2"])
    if params["has_proj"]:
        ws4 = params["ws"].reshape(1, 1, *params["ws"].shape)
        sc = _bn_ref(_conv_ref(x, ws4, stride, 0), params["gs"], params["bs"])
    else:
        sc = x
    return jnp.transpose(jax.nn.relu(o + sc), (0, 3, 1, 2))


# ---------------------------------------------------------------------------
# Deterministic parameter init
# ---------------------------------------------------------------------------
def init_params(key, in_planes, planes, stride):
    ks = jax.random.split(key, 8)

    def he(k, shape, fan_in):
        return (jax.random.normal(k, shape, jnp.float32) * np.sqrt(2.0 / fan_in)).astype(jnp.float32)

    p = {
        "w1": he(ks[0], (3, 3, in_planes, planes), 9 * in_planes),
        "g1": 1.0 + 0.1 * jax.random.normal(ks[1], (planes,), jnp.float32),
        "b1": 0.1 * jax.random.normal(ks[2], (planes,), jnp.float32),
        "w2": he(ks[3], (3, 3, planes, planes), 9 * planes),
        "g2": 1.0 + 0.1 * jax.random.normal(ks[4], (planes,), jnp.float32),
        "b2": 0.1 * jax.random.normal(ks[5], (planes,), jnp.float32),
        "has_proj": (stride != 1 or in_planes != planes),
    }
    if p["has_proj"]:
        p["ws"] = he(ks[6], (in_planes, planes), in_planes)
        p["gs"] = jnp.ones((planes,), jnp.float32)
        p["bs"] = jnp.zeros((planes,), jnp.float32)
    return p


if __name__ == "__main__":
    key = jax.random.PRNGKey(0)
    kx, kp1, kp2 = jax.random.split(key, 3)

    x = jax.random.normal(kx, (2, 4, 16, 16), jnp.float32)  # NCHW

    # Case 1: identity shortcut (in_planes == planes, stride = 1)
    params1 = init_params(kp1, in_planes=4, planes=4, stride=1)
    out1 = jax.block_until_ready(basic_block_forward(x, params1, stride=1))
    ref1 = basic_block_ref(x, params1, stride=1)
    assert out1.shape == (2, 4, 16, 16)
    np.testing.assert_allclose(np.asarray(out1), np.asarray(ref1), atol=1e-2, rtol=1e-2)

    # Case 2: projection shortcut (channel change + stride 2)
    params2 = init_params(kp2, in_planes=4, planes=8, stride=2)
    out2 = jax.block_until_ready(basic_block_forward(x, params2, stride=2))
    ref2 = basic_block_ref(x, params2, stride=2)
    assert out2.shape == (2, 8, 8, 8)
    np.testing.assert_allclose(np.asarray(out2), np.asarray(ref2), atol=1e-2, rtol=1e-2)

    print("KERNEL_OK")
</pallas_src>

<mosaic_0001>
module attributes {stable_mosaic.version = 11 : i64} {
  func.func @_stage1_kernel(%arg0: i32, %arg1: memref<1x18x18x4xbf16, #tpu.memory_space<vmem>>, %arg2: memref<9x4x4xbf16, #tpu.memory_space<vmem>>, %arg3: memref<1x16x16x4xf32, #tpu.memory_space<vmem>>, %arg4: memref<2x4xf32, #tpu.memory_space<vmem>>) attributes {dimension_semantics = [#tpu.dimension_semantics<arbitrary>], iteration_bounds = array<i64: 2>, scalar_prefetch = 0 : i64, scratch_operands = 0 : i64, tpu.core_type = #tpu.core_type<tc>, window_params = [{transform_indices = @transform_0, window_bounds = array<i64: 1, 18, 18, 4>}, {pipeline_mode = #tpu.pipeline_mode<synchronous>, transform_indices = @transform_1, window_bounds = array<i64: 9, 4, 4>}, {transform_indices = @transform_2, window_bounds = array<i64: 1, 16, 16, 4>}, {pipeline_mode = #tpu.pipeline_mode<synchronous>, transform_indices = @transform_3, window_bounds = array<i64: 2, 4>}]} {
    %c0_i32 = arith.constant 0 : i32
    %0 = arith.cmpi eq, %arg0, %c0_i32 : i32
    %1 = arith.extui %0 : i1 to i32
    %c0_i32_0 = arith.constant 0 : i32
    %2 = arith.cmpi ne, %1, %c0_i32_0 : i32
    scf.if %2 {
      %cst_77 = arith.constant 0.000000e+00 : f32
      %72 = vector.broadcast %cst_77 : f32 to vector<2x4xf32>
      %c0_78 = arith.constant 0 : index
      %c0_79 = arith.constant 0 : index
      %73 = vector.load %arg4[%c0_78, %c0_79] : memref<2x4xf32, #tpu.memory_space<vmem>>, vector<2x4xf32>
      tpu.vector_store %arg4[%c0_78, %c0_79], %72 {strides = array<i32>} : memref<2x4xf32, #tpu.memory_space<vmem>>, vector<2x4xf32>,
    } else {
    }
    %c0 = arith.constant 0 : index
    %c0_1 = arith.constant 0 : index
    %c0_2 = arith.constant 0 : index
    %c0_3 = arith.constant 0 : index
    %3 = vector.load %arg1[%c0, %c0_1, %c0_2, %c0_3] : memref<1x18x18x4xbf16, #tpu.memory_space<vmem>>, vector<1x16x16x4xbf16>
    %4 = vector.shape_cast %3 : vector<1x16x16x4xbf16> to vector<16x16x4xbf16>
    %c0_4 = arith.constant 0 : index
    %c0_5 = arith.constant 0 : index
    %c1 = arith.constant 1 : index
    %c0_6 = arith.constant 0 : index
    %5 = vector.load %arg1[%c0_4, %c0_5, %c1, %c0_6] : memref<1x18x18x4xbf16, #tpu.memory_space<vmem>>, vector<1x16x16x4xbf16>
    %6 = vector.shape_cast %5 : vector<1x16x16x4xbf16> to vector<16x16x4xbf16>
    %c0_7 = arith.constant 0 : index
    %c0_8 = arith.constant 0 : index
    %c2 = arith.constant 2 : index
    %c0_9 = arith.constant 0 : index
    %7 = vector.load %arg1[%c0_7, %c0_8, %c2, %c0_9] : memref<1x18x18x4xbf16, #tpu.memory_space<vmem>>, vector<1x16x16x4xbf16>
    %8 = vector.shape_cast %7 : vector<1x16x16x4xbf16> to vector<16x16x4xbf16>
    %c0_10 = arith.constant 0 : index
    %c1_11 = arith.constant 1 : index
    %c0_12 = arith.constant 0 : index
    %c0_13 = arith.constant 0 : index
    %9 = vector.load %arg1[%c0_10, %c1_11, %c0_12, %c0_13] : memref<1x18x18x4xbf16, #tpu.memory_space<vmem>>, vector<1x16x16x4xbf16>
    %10 = vector.shape_cast %9 : vector<1x16x16x4xbf16> to vector<16x16x4xbf16>
    %c0_14 = arith.constant 0 : index
    %c1_15 = arith.constant 1 : index
    %c1_16 = arith.constant 1 : index
    %c0_17 = arith.constant 0 : index
    %11 = vector.load %arg1[%c0_14, %c1_15, %c1_16, %c0_17] : memref<1x18x18x4xbf16, #tpu.memory_space<vmem>>, vector<1x16x16x4xbf16>
    %12 = vector.shape_cast %11 : vector<1x16x16x4xbf16> to vector<16x16x4xbf16>
    %c0_18 = arith.constant 0 : index
    %c1_19 = arith.constant 1 : index
    %c2_20 = arith.constant 2 : index
    %c0_21 = arith.constant 0 : index
    %13 = vector.load %arg1[%c0_18, %c1_19, %c2_20, %c0_21] : memref<1x18x18x4xbf16, #tpu.memory_space<vmem>>, vector<1x16x16x4xbf16>
    %14 = vector.shape_cast %13 : vector<1x16x16x4xbf16> to vector<16x16x4xbf16>
    %c0_22 = arith.constant 0 : index
    %c2_23 = arith.constant 2 : index
    %c0_24 = arith.constant 0 : index
    %c0_25 = arith.constant 0 : index
    %15 = vector.load %arg1[%c0_22, %c2_23, %c0_24, %c0_25] : memref<1x18x18x4xbf16, #tpu.memory_space<vmem>>, vector<1x16x16x4xbf16>
    %16 = vector.shape_cast %15 : vector<1x16x16x4xbf16> to vector<16x16x4xbf16>
    %c0_26 = arith.constant 0 : index
    %c2_27 = arith.constant 2 : index
    %c1_28 = arith.constant 1 : index
    %c0_29 = arith.constant 0 : index
    %17 = vector.load %arg1[%c0_26, %c2_27, %c1_28, %c0_29] : memref<1x18x18x4xbf16, #tpu.memory_space<vmem>>, vector<1x16x16x4xbf16>
    %18 = vector.shape_cast %17 : vector<1x16x16x4xbf16> to vector<16x16x4xbf16>
    %c0_30 = arith.constant 0 : index
    %c2_31 = arith.constant 2 : index
    %c2_32 = arith.constant 2 : index
    %c0_33 = arith.constant 0 : index
    %19 = vector.load %arg1[%c0_30, %c2_31, %c2_32, %c0_33] : memref<1x18x18x4xbf16, #tpu.memory_space<vmem>>, vector<1x16x16x4xbf16>
    %20 = vector.shape_cast %19 : vector<1x16x16x4xbf16> to vector<16x16x4xbf16>
    %c0_34 = arith.constant 0 : index
    %c0_35 = arith.constant 0 : index
    %c0_36 = arith.constant 0 : index
    %21 = vector.load %arg2[%c0_34, %c0_35, %c0_36] : memref<9x4x4xbf16, #tpu.memory_space<vmem>>, vector<1x4x4xbf16>
    %22 = vector.shape_cast %21 : vector<1x4x4xbf16> to vector<4x4xbf16>
    %cst = arith.constant dense<0.000000e+00> : vector<16x16x4xf32>
    %23 = tpu.matmul %4, %22, %cst {dimension_numbers = #tpu.dot_dimension_numbers<[2], [0], [0, 1], [1], [0, 0, 0, 1, 1, 1], [], []>} : vector<16x16x4xbf16>, vector<4x4xbf16>, vector<16x16x4xf32> -> vector<16x16x4xf32>
    %c1_37 = arith.constant 1 : index
    %c0_38 = arith.constant 0 : index
    %c0_39 = arith.constant 0 : index
    %24 = vector.load %arg2[%c1_37, %c0_38, %c0_39] : memref<9x4x4xbf16, #tpu.memory_space<vmem>>, vector<1x4x4xbf16>
    %25 = vector.shape_cast %24 : vector<1x4x4xbf16> to vector<4x4xbf16>
    %cst_40 = arith.constant dense<0.000000e+00> : vector<16x16x4xf32>
    %26 = tpu.matmul %6, %25, %cst_40 {dimension_numbers = #tpu.dot_dimension_numbers<[2], [0], [0, 1], [1], [0, 0, 0, 1, 1, 1], [], []>} : vector<16x16x4xbf16>, vector<4x4xbf16>, vector<16x16x4xf32> -> vector<16x16x4xf32>
    %27 = arith.addf %23, %26 : vector<16x16x4xf32>
    %c2_41 = arith.constant 2 : index
    %c0_42 = arith.constant 0 : index
    %c0_43 = arith.constant 0 : index
    %28 = vector.load %arg2[%c2_41, %c0_42, %c0_43] : memref<9x4x4xbf16, #tpu.memory_space<vmem>>, vector<1x4x4xbf16>
    %29 = vector.shape_cast %28 : vector<1x4x4xbf16> to vector<4x4xbf16>
    %cst_44 = arith.constant dense<0.000000e+00> : vector<16x16x4xf32>
    %30 = tpu.matmul %8, %29, %cst_44 {dimension_numbers = #tpu.dot_dimension_numbers<[2], [0], [0, 1], [1], [0, 0, 0, 1, 1, 1], [], []>} : vector<16x16x4xbf16>, vector<4x4xbf16>, vector<16x16x4xf32> -> vector<16x16x4xf32>
    %31 = arith.addf %27, %30 : vector<16x16x4xf32>
    %c3 = arith.constant 3 : index
    %c0_45 = arith.constant 0 : index
    %c0_46 = arith.constant 0 : index
    %32 = vector.load %arg2[%c3, %c0_45, %c0_46] : memref<9x4x4xbf16, #tpu.memory_space<vmem>>, vector<1x4x4xbf16>
    %33 = vector.shape_cast %32 : vector<1x4x4xbf16> to vector<4x4xbf16>
    %cst_47 = arith.constant dense<0.000000e+00> : vector<16x16x4xf32>
    %34 = tpu.matmul %10, %33, %cst_47 {dimension_numbers = #tpu.dot_dimension_numbers<[2], [0], [0, 1], [1], [0, 0, 0, 1, 1, 1], [], []>} : vector<16x16x4xbf16>, vector<4x4xbf16>, vector<16x16x4xf32> -> vector<16x16x4xf32>
    %35 = arith.addf %31, %34 : vector<16x16x4xf32>
    %c4 = arith.constant 4 : index
    %c0_48 = arith.constant 0 : index
    %c0_49 = arith.constant 0 : index
    %36 = vector.load %arg2[%c4, %c0_48, %c0_49] : memref<9x4x4xbf16, #tpu.memory_space<vmem>>, vector<1x4x4xbf16>
    %37 = vector.shape_cast %36 : vector<1x4x4xbf16> to vector<4x4xbf16>
    %cst_50 = arith.constant dense<0.000000e+00> : vector<16x16x4xf32>
    %38 = tpu.matmul %12, %37, %cst_50 {dimension_numbers = #tpu.dot_dimension_numbers<[2], [0], [0, 1], [1], [0, 0, 0, 1, 1, 1], [], []>} : vector<16x16x4xbf16>, vector<4x4xbf16>, vector<16x16x4xf32> -> vector<16x16x4xf32>
    %39 = arith.addf %35, %38 : vector<16x16x4xf32>
    %c5 = arith.constant 5 : index
    %c0_51 = arith.constant 0 : index
    %c0_52 = arith.constant 0 : index
    %40 = vector.load %arg2[%c5, %c0_51, %c0_52] : memref<9x4x4xbf16, #tpu.memory_space<vmem>>, vector<1x4x4xbf16>
    %41 = vector.shape_cast %40 : vector<1x4x4xbf16> to vector<4x4xbf16>
    %cst_53 = arith.constant dense<0.000000e+00> : vector<16x16x4xf32>
    %42 = tpu.matmul %14, %41, %cst_53 {dimension_numbers = #tpu.dot_dimension_numbers<[2], [0], [0, 1], [1], [0, 0, 0, 1, 1, 1], [], []>} : vector<16x16x4xbf16>, vector<4x4xbf16>, vector<16x16x4xf32> -> vector<16x16x4xf32>
    %43 = arith.addf %39, %42 : vector<16x16x4xf32>
    %c6 = arith.constant 6 : index
    %c0_54 = arith.constant 0 : index
    %c0_55 = arith.constant 0 : index
    %44 = vector.load %arg2[%c6, %c0_54, %c0_55] : memref<9x4x4xbf16, #tpu.memory_space<vmem>>, vector<1x4x4xbf16>
    %45 = vector.shape_cast %44 : vector<1x4x4xbf16> to vector<4x4xbf16>
    %cst_56 = arith.constant dense<0.000000e+00> : vector<16x16x4xf32>
    %46 = tpu.matmul %16, %45, %cst_56 {dimension_numbers = #tpu.dot_dimension_numbers<[2], [0], [0, 1], [1], [0, 0, 0, 1, 1, 1], [], []>} : vector<16x16x4xbf16>, vector<4x4xbf16>, vector<16x16x4xf32> -> vector<16x16x4xf32>
    %47 = arith.addf %43, %46 : vector<16x16x4xf32>
    %c7 = arith.constant 7 : index
    %c0_57 = arith.constant 0 : index
    %c0_58 = arith.constant 0 : index
    %48 = vector.load %arg2[%c7, %c0_57, %c0_58] : memref<9x4x4xbf16, #tpu.memory_space<vmem>>, vector<1x4x4xbf16>
    %49 = vector.shape_cast %48 : vector<1x4x4xbf16> to vector<4x4xbf16>
    %cst_59 = arith.constant dense<0.000000e+00> : vector<16x16x4xf32>
    %50 = tpu.matmul %18, %49, %cst_59 {dimension_numbers = #tpu.dot_dimension_numbers<[2], [0], [0, 1], [1], [0, 0, 0, 1, 1, 1], [], []>} : vector<16x16x4xbf16>, vector<4x4xbf16>, vector<16x16x4xf32> -> vector<16x16x4xf32>
    %51 = arith.addf %47, %50 : vector<16x16x4xf32>
    %c8 = arith.constant 8 : index
    %c0_60 = arith.constant 0 : index
    %c0_61 = arith.constant 0 : index
    %52 = vector.load %arg2[%c8, %c0_60, %c0_61] : memref<9x4x4xbf16, #tpu.memory_space<vmem>>, vector<1x4x4xbf16>
    %53 = vector.shape_cast %52 : vector<1x4x4xbf16> to vector<4x4xbf16>
    %cst_62 = arith.constant dense<0.000000e+00> : vector<16x16x4xf32>
    %54 = tpu.matmul %20, %53, %cst_62 {dimension_numbers = #tpu.dot_dimension_numbers<[2], [0], [0, 1], [1], [0, 0, 0, 1, 1, 1], [], []>} : vector<16x16x4xbf16>, vector<4x4xbf16>, vector<16x16x4xf32> -> vector<16x16x4xf32>
    %55 = arith.addf %51, %54 : vector<16x16x4xf32>
    %c0_63 = arith.constant 0 : index
    %c0_64 = arith.constant 0 : index
    %c0_65 = arith.constant 0 : index
    %c0_66 = arith.constant 0 : index
    %56 = vector.load %arg3[%c0_63, %c0_64, %c0_65, %c0_66] : memref<1x16x16x4xf32, #tpu.memory_space<vmem>>, vector<1x16x16x4xf32>
    %57 = vector.shape_cast %56 : vector<1x16x16x4xf32> to vector<16x16x4xf32>
    %58 = vector.shape_cast %55 : vector<16x16x4xf32> to vector<1x16x16x4xf32>
    tpu.vector_store %arg3[%c0_63, %c0_64, %c0_65, %c0_66], %58 {strides = array<i32>} : memref<1x16x16x4xf32, #tpu.memory_space<vmem>>, vector<1x16x16x4xf32>,
    %c0_67 = arith.constant 0 : index
    %c0_68 = arith.constant 0 : index
    %59 = vector.load %arg4[%c0_67, %c0_68] : memref<2x4xf32, #tpu.memory_space<vmem>>, vector<1x4xf32>
    %cst_69 = arith.constant dense<0.000000e+00> : vector<4xf32>
    %60 = vector.multi_reduction <add>, %55, %cst_69 [0, 1] : vector<16x16x4xf32> to vector<4xf32>
    %61 = vector.shape_cast %60 : vector<4xf32> to vector<1x1x4xf32>
    %62 = vector.shape_cast %61 : vector<1x1x4xf32> to vector<1x4xf32>
    %63 = arith.addf %59, %62 : vector<1x4xf32>
    %c0_70 = arith.constant 0 : index
    %c0_71 = arith.constant 0 : index
    %64 = vector.load %arg4[%c0_70, %c0_71] : memref<2x4xf32, #tpu.memory_space<vmem>>, vector<1x4xf32>
    tpu.vector_store %arg4[%c0_70, %c0_71], %63 {strides = array<i32>} : memref<2x4xf32, #tpu.memory_space<vmem>>, vector<1x4xf32>,
    %c1_72 = arith.constant 1 : index
    %c0_73 = arith.constant 0 : index
    %65 = vector.load %arg4[%c1_72, %c0_73] : memref<2x4xf32, #tpu.memory_space<vmem>>, vector<1x4xf32>
    %66 = arith.mulf %55, %55 : vector<16x16x4xf32>
    %cst_74 = arith.constant dense<0.000000e+00> : vector<4xf32>
    %67 = vector.multi_reduction <add>, %66, %cst_74 [0, 1] : vector<16x16x4xf32> to vector<4xf32>
    %68 = vector.shape_cast %67 : vector<4xf32> to vector<1x1x4xf32>
    %69 = vector.shape_cast %68 : vector<1x1x4xf32> to vector<1x4xf32>
    %70 = arith.addf %65, %69 : vector<1x4xf32>
    %c1_75 = arith.constant 1 : index
    %c0_76 = arith.constant 0 : index
    %71 = vector.load %arg4[%c1_75, %c0_76] : memref<2x4xf32, #tpu.memory_space<vmem>>, vector<1x4xf32>
    tpu.vector_store %arg4[%c1_75, %c0_76], %70 {strides = array<i32>} : memref<2x4xf32, #tpu.memory_space<vmem>>, vector<1x4xf32>,
    return
  }
  func.func @transform_0(%arg0: i32) -> (i32, i32, i32, i32) {
    %c0_i32 = arith.constant 0 : i32
    %c0_i32_0 = arith.constant 0 : i32
    %c0_i32_1 = arith.constant 0 : i32
    %c0_i32_2 = arith.constant 0 : i32
    return %arg0, %c0_i32, %c0_i32_0, %c0_i32_1 : i32, i32, i32, i32
  }
  func.func @transform_1(%arg0: i32) -> (i32, i32, i32) {
    %c0_i32 = arith.constant 0 : i32
    %c0_i32_0 = arith.constant 0 : i32
    %c0_i32_1 = arith.constant 0 : i32
    %c0_i32_2 = arith.constant 0 : i32
    return %c0_i32, %c0_i32_0, %c0_i32_1 : i32, i32, i32
  }
  func.func @transform_2(%arg0: i32) -> (i32, i32, i32, i32) {
    %c0_i32 = arith.constant 0 : i32
    %c0_i32_0 = arith.constant 0 : i32
    %c0_i32_1 = arith.constant 0 : i32
    %c0_i32_2 = arith.constant 0 : i32
    return %arg0, %c0_i32, %c0_i32_0, %c0_i32_1 : i32, i32, i32, i32
  }
  func.func @transform_3(%arg0: i32) -> (i32, i32) {
    %c0_i32 = arith.constant 0 : i32
    %c0_i32_0 = arith.constant 0 : i32
    %c0_i32_1 = arith.constant 0 : i32
    return %c0_i32, %c0_i32_0 : i32, i32
  }
}

</mosaic_0001>

<llo_original>
// kernel: tpu_custom_call.1
$region0: #{tpu_custom_call.1}
  #allocation0 [shape = 'u32[]', space=smem, size = 0x4, offset = 0x4, fixed_abs, tag = 'smem constant byte address 0x4 - core index']
  #allocation1 [shape = 'u32[144,128]{1,0:T(1,128)}', space=vmem, size = 0x12000, scoped, tag = 'internal scratch']
  %s0 = inlined_call_operand.vmem [shape: bf16[2,18,18,4], index: 0, kind: input, shape index: {}]
  %s1 = inlined_call_operand.vmem [shape: bf16[9,4,4], index: 1, kind: input, shape index: {}]
  %s2 = inlined_call_operand.vmem [shape: f32[2,16,16,4], index: 2, kind: output, shape index: {0}]
  %s3 = inlined_call_operand.hbm [shape: f32[2,4], index: 3, kind: output, shape index: {1}]
  %4 = xla_tuple %s2, %s3
  %s5 = sld [smem:[#allocation0]]
  $region53: #{tpu_custom_call.1} parent=0
    _
  %s7 = ssub.s32 1, %s5
  %s8 = scalar_select 0, %s7, %s5
  $region1: #{tpu_custom_call.1} parent=0
    #allocation2 [shape = 'u8[1024]{0}', space=vmem, size = 0x400, scoped, tag = 'output window, operand 1, single buffered']
    #allocation3 [shape = 's32[2]{0}', space=sflag, size = 0x8, scoped, tag = 'scoped memory for tpu_custom_call.1']
    %9 = vsyncpa [#allocation3], 0
    loop: start=0, step=1, limit=4
    $region2: #{tpu_custom_call.1} parent=1 // loop_pre_header
      _
    $region3: #{tpu_custom_call.1} parent=1 // loop_header
      %s11 = sphi 0, %s15
      %p12 = scmp.ge.s32.totalorder %s11, 4
      %s21 = sphi 0, %s23
      %s24 = sphi 0, %s21
      %s25 = sphi 0, %s24
      %s41 = sphi 0, %s25
      %s45 = sphi 0, %s45
      %s47 = sphi 0, %s45
      %s48 = sphi 0, %s47
      %s62 = sphi 0, %s48
      %s68 = sphi 0, %s70
      %s71 = sphi 0, %s68
      %s72 = sphi 0, %s71
      %s88 = sphi 0, %s72
      %s92 = sphi 0, %s92
      %s94 = sphi 0, %s92
      %s95 = sphi 0, %s94
      %s109 = sphi 0, %s95
    $region4: #{tpu_custom_call.1} parent=1 // loop_header_branch
      %14 = sbr.rel (%p12) target = $region8
    $region5: #{tpu_custom_call.1} parent=1 // loop_body
      %s16 = ssub.s32 %s11, 1
      %s17 = ssub.s32 %s11, 2
      %s18 = sadd.s32 %s11, 1
      %s19 = ssub.s32 %s11, %s18
      %p20 = scmp.eq.s32.totalorder %s19, 0
      %s22 = sadd.s32 %s21, 1
      %s23 = scalar_select %p20, %s21, %s22
      %p26 = pneg %p20
      %p27 = scmp.eq.s32.totalorder %s11, 1
      %p28 = por %p26, %p27
      %p29 = scmp.ne.s32.totalorder %s21, %s24
      %p30 = scmp.eq.s32.totalorder %s11, 0
      %p31 = por %p29, %p30
      %p32 = scmp.ne.s32.totalorder %s21, %s24
      %p33 = scmp.eq.s32.totalorder %s16, 1
      %p34 = por %p32, %p33
      %p35 = scmp.ne.s32.totalorder %s24, %s25
      %p36 = scmp.eq.s32.totalorder %s16, 0
      %p37 = por %p35, %p36
      %p38 = scmp.ne.s32.totalorder %s24, %s25
      %p39 = scmp.eq.s32.totalorder %s17, 1
      %p40 = por %p38, %p39
      %p42 = scmp.ne.s32.totalorder %s25, %s41
      %p43 = scmp.eq.s32.totalorder %s17, 0
      %p44 = por %p42, %p43
      %s46 = sadd.s32 %s45, 1
      %p49 = scmp.eq.s32.totalorder %s11, 1
      %p50 = scmp.ne.s32.totalorder %s45, %s47
      %p51 = scmp.eq.s32.totalorder %s11, 0
      %p52 = por %p50, %p51
      %p53 = scmp.ne.s32.totalorder %s45, %s47
      %p54 = scmp.eq.s32.totalorder %s16, 1
      %p55 = por %p53, %p54
      %p56 = scmp.ne.s32.totalorder %s47, %s48
      %p57 = scmp.eq.s32.totalorder %s16, 0
      %p58 = por %p56, %p57
      %p59 = scmp.ne.s32.totalorder %s47, %s48
      %p60 = scmp.eq.s32.totalorder %s17, 1
      %p61 = por %p59, %p60
      %p63 = scmp.ne.s32.totalorder %s48, %s62
      %p64 = scmp.eq.s32.totalorder %s17, 0
      %p65 = por %p63, %p64
      %s66 = ssub.s32 %s11, %s18
      %p67 = scmp.eq.s32.totalorder %s66, 0
      %s69 = sadd.s32 %s68, 1
      %s70 = scalar_select %p67, %s68, %s69
      %p73 = pneg %p67
      %p74 = scmp.eq.s32.totalorder %s11, 1
      %p75 = por %p73, %p74
      %p76 = scmp.ne.s32.totalorder %s68, %s71
      %p77 = scmp.eq.s32.totalorder %s11, 0
      %p78 = por %p76, %p77
      %p79 = scmp.ne.s32.totalorder %s68, %s71
      %p80 = scmp.eq.s32.totalorder %s16, 1
      %p81 = por %p79, %p80
      %p82 = scmp.ne.s32.totalorder %s71, %s72
      %p83 = scmp.eq.s32.totalorder %s16, 0
      %p84 = por %p82, %p83
      %p85 = scmp.ne.s32.totalorder %s71, %s72
      %p86 = scmp.eq.s32.totalorder %s17, 1
      %p87 = por %p85, %p86
      %p89 = scmp.ne.s32.totalorder %s72, %s88
      %p90 = scmp.eq.s32.totalorder %s17, 0
      %p91 = por %p89, %p90
      %s93 = sadd.s32 %s92, 1
      %p96 = scmp.eq.s32.totalorder %s11, 1
      %p97 = scmp.ne.s32.totalorder %s92, %s94
      %p98 = scmp.eq.s32.totalorder %s11, 0
      %p99 = por %p97, %p98
      %p100 = scmp.ne.s32.totalorder %s92, %s94
      %p101 = scmp.eq.s32.totalorder %s16, 1
      %p102 = por %p100, %p101
      %p103 = scmp.ne.s32.totalorder %s94, %s95
      %p104 = scmp.eq.s32.totalorder %s16, 0
      %p105 = por %p103, %p104
      %p106 = scmp.ne.s32.totalorder %s94, %s95
      %p107 = scmp.eq.s32.totalorder %s17, 1
      %p108 = por %p106, %p107
      %p110 = scmp.ne.s32.totalorder %s95, %s109
      %p111 = scmp.eq.s32.totalorder %s17, 0
      %p112 = por %p110, %p111
      %p113 = scmp.le.s32.totalorder 1, %s11
      %p114 = scmp.lt.s32.totalorder %s11, 3
      %p115 = pnand %p113, %p114
      %p116 = pneg %p115
      // Predicated region
      $region9: #{tpu_custom_call.1} parent=5 // pred_check
        _
      $region10: #{tpu_custom_call.1} parent=5 // pred_check_branch
        %118 = sbr.rel (%p115) target = $region12
      $region11: #{tpu_custom_call.1} parent=5 // pred_region
        %s119 = ssub.s32 %s11, 1
        // Predicated region
        $region13: #{tpu_custom_call.1} parent=11 // pred_check
          %p120 = pneg %p58
        $region14: #{tpu_custom_call.1} parent=11 // pred_check_branch
          %122 = sbr.rel (%p120) target = $region16
        $region15: #{tpu_custom_call.1} parent=11 // pred_region
          _
        $region16: #{tpu_custom_call.1} parent=11 // pred_fallthru
          _
      $region12: #{tpu_custom_call.1} parent=5 // pred_fallthru
        _
      %p123 = scmp.lt.s32.totalorder %s11, 2
      // Predicated region
      $region17: #{tpu_custom_call.1} parent=5 // pred_check
        %p124 = pneg %p123
      $region18: #{tpu_custom_call.1} parent=5 // pred_check_branch
        %126 = sbr.rel (%p124) target = $region20
      $region19: #{tpu_custom_call.1} parent=5 // pred_region
        // Predicated region
        $region21: #{tpu_custom_call.1} parent=19 // pred_check
          %p127 = pneg %p31
        $region22: #{tpu_custom_call.1} parent=19 // pred_check_branch
          %129 = sbr.rel (%p127) target = $region24
        $region23: #{tpu_custom_call.1} parent=19 // pred_region
          %p130 = scmp.lt.s32.totalorder %s11, 1
          %s131 = scalar_select %p130, %s11, 1
          %s132 = smul.addr %s131, 54
          %s133 = smul.addr %s132, 4
          %s134 = scalar_lea.vmem %s0, %s133
        $region24: #{tpu_custom_call.1} parent=19 // pred_fallthru
          _
      $region20: #{tpu_custom_call.1} parent=5 // pred_fallthru
        _
      %p135 = scmp.le.s32.totalorder 1, %s11
      %p136 = scmp.lt.s32.totalorder %s11, 3
      %p137 = pnand %p135, %p136
      %p138 = pneg %p137
      // Predicated region
      $region25: #{tpu_custom_call.1} parent=5 // pred_check
        _
      $region26: #{tpu_custom_call.1} parent=5 // pred_check_branch
        %140 = sbr.rel (%p137) target = $region28
      $region27: #{tpu_custom_call.1} parent=5 // pred_region
        %s141 = ssub.s32 %s11, 1
        %p142 = scmp.lt.s32.totalorder %s16, 1
        %s143 = scalar_select %p142, %s16, 1
        %s144 = smul.addr %s143, 54
        %s145 = smul.addr %s144, 4
        %s146 = scalar_lea.vmem %s0, %s145
        %p147 = pneg %p37
        %p148 = pneg %p34
        %p149 = pneg %p58
        %p150 = pneg %p55
        %p151 = pneg %p84
        %p152 = pneg %p81
        %p153 = scmp.lt.s32.totalorder %s16, 1
        %s154 = scalar_select %p153, %s16, 1
        %s155 = smul.addr %s154, 32
        %s156 = smul.addr %s155, 8
        %s157 = scalar_lea.vmem %s2, %s156
        %p158 = pneg %p105
        %p159 = pneg %p102
        %p160 = scmp.lt.s32.totalorder %s16, 1
        %s161 = scalar_select %p160, %s16, 1
        %s162 = smul.addr %s161, 54
        %s163 = smul.addr %s162, 4
        %s164 = scalar_lea.vmem %s0, %s163
        %p165 = scmp.lt.s32.totalorder %s16, 1
        %s166 = scalar_select %p165, %s16, 1
        %s167 = smul.addr %s166, 32
        %s168 = smul.addr %s167, 8
        %s169 = scalar_lea.vmem %s2, %s168
        %p171 = scmp.eq.s32.totalorder %s16, 0
        // Predicated region
        $region29: #{tpu_custom_call.1} parent=27 // pred_check
          %p172 = pneg %p171
        $region30: #{tpu_custom_call.1} parent=27 // pred_check_branch
          %174 = sbr.rel (%p172) target = $region32
        $region31: #{tpu_custom_call.1} parent=27 // pred_region
          %vm175 = vcmask 25600
          %176 = vst.msk [vmem:[#allocation2] sm:$0x3] %vm175, 0.0
        $region32: #{tpu_custom_call.1} parent=27 // pred_fallthru
          _
        %v177 = vld [vmem:[%s164] sm:$0xf]
        %v178 = vld [vmem:[%s164 + $0x4] sm:$0xf]
        %v179 = vld [vmem:[%s164 + $0xc] sm:$0xf]
        %v180 = vld [vmem:[%s164 + $0x10] sm:$0xf]
        %v181 = vld [vmem:[%s164 + $0x18] sm:$0xf]
        %v182 = vld [vmem:[%s164 + $0x1c] sm:$0xf]
        %v183 = vld [vmem:[%s164 + $0x24] sm:$0xf]
        %v184 = vld [vmem:[%s164 + $0x28] sm:$0xf]
        %v185 = vld [vmem:[%s164 + $0x30] sm:$0xf]
        %v186 = vld [vmem:[%s164 + $0x34] sm:$0xf]
        %v187 = vld [vmem:[%s164 + $0x3c] sm:$0xf]
        %v188 = vld [vmem:[%s164 + $0x40] sm:$0xf]
        %v189 = vld [vmem:[%s164 + $0x48] sm:$0xf]
        %v190 = vld [vmem:[%s164 + $0x4c] sm:$0xf]
        %v191 = vld [vmem:[%s164 + $0x54] sm:$0xf]
        %v192 = vld [vmem:[%s164 + $0x58] sm:$0xf]
        %v193 = vld [vmem:[%s164 + $0x60] sm:$0xf]
        %v194 = vld [vmem:[%s164 + $0x64] sm:$0xf]
        %v195 = vld [vmem:[%s164 + $0x6c] sm:$0xf]
        %v196 = vld [vmem:[%s164 + $0x70] sm:$0xf]
        %v197 = vld [vmem:[%s164 + $0x78] sm:$0xf]
        %v198 = vld [vmem:[%s164 + $0x7c] sm:$0xf]
        %v199 = vld [vmem:[%s164 + $0x84] sm:$0xf]
        %v200 = vld [vmem:[%s164 + $0x88] sm:$0xf]
        %v201 = vld [vmem:[%s164 + $0x90] sm:$0xf]
        %v202 = vld [vmem:[%s164 + $0x94] sm:$0xf]
        %v203 = vld [vmem:[%s164 + $0x9c] sm:$0xf]
        %v204 = vld [vmem:[%s164 + $0xa0] sm:$0xf]
        %v205 = vld [vmem:[%s164 + $0xa8] sm:$0xf]
        %v206 = vld [vmem:[%s164 + $0xac] sm:$0xf]
        %v207 = vld [vmem:[%s164 + $0xb4] sm:$0xf]
        %v208 = vld [vmem:[%s164 + $0xb8] sm:$0xf]
        %v209 = vld [vmem:[%s164 + $0x8] sm:$0x1]
        %v210 = vld [vmem:[%s164 + $0x14] sm:$0x1]
        %v211 = vld [vmem:[%s164 + $0x20] sm:$0x1]
        %v212 = vld [vmem:[%s164 + $0x2c] sm:$0x1]
        %v213 = vld [vmem:[%s164 + $0x38] sm:$0x1]
        %v214 = vld [vmem:[%s164 + $0x44] sm:$0x1]
        %v215 = vld [vmem:[%s164 + $0x50] sm:$0x1]
        %v216 = vld [vmem:[%s164 + $0x5c] sm:$0x1]
        %v217 = vld [vmem:[%s164 + $0x68] sm:$0x1]
        %v218 = vld [vmem:[%s164 + $0x74] sm:$0x1]
        %v219 = vld [vmem:[%s164 + $0x80] sm:$0x1]
        %v220 = vld [vmem:[%s164 + $0x8c] sm:$0x1]
        %v221 = vld [vmem:[%s164 + $0x98] sm:$0x1]
        %v222 = vld [vmem:[%s164 + $0xa4] sm:$0x1]
        %v223 = vld [vmem:[%s164 + $0xb0] sm:$0x1]
        %v224 = vld [vmem:[%s164 + $0xbc] sm:$0x1]
        %v225 = vld [vmem:[%s164] sm:$0xe]
        %v226 = vld [vmem:[%s164 + $0xc] sm:$0xe]
        %v227 = vld [vmem:[%s164 + $0x18] sm:$0xe]
        %v228 = vld [vmem:[%s164 + $0x24] sm:$0xe]
        %v229 = vld [vmem:[%s164 + $0x30] sm:$0xe]
        %v230 = vld [vmem:[%s164 + $0x3c] sm:$0xe]
        %v231 = vld [vmem:[%s164 + $0x48] sm:$0xe]
        %v232 = vld [vmem:[%s164 + $0x54] sm:$0xe]
        %v233 = vld [vmem:[%s164 + $0x60] sm:$0xe]
        %v234 = vld [vmem:[%s164 + $0x6c] sm:$0xe]
        %v235 = vld [vmem:[%s164 + $0x78] sm:$0xe]
        %v236 = vld [vmem:[%s164 + $0x84] sm:$0xe]
        %v237 = vld [vmem:[%s164 + $0x90] sm:$0xe]
        %v238 = vld [vmem:[%s164 + $0x9c] sm:$0xe]
        %v239 = vld [vmem:[%s164 + $0xa8] sm:$0xe]
        %v240 = vld [vmem:[%s164 + $0xb4] sm:$0xe]
        %s241 = scalar_lea.vmem %s164, 12
        %v242 = vld [vmem:[%s241] sm:$0xf]
        %v243 = vld [vmem:[%s241 + $0x4] sm:$0xf]
        %v244 = vld [vmem:[%s241 + $0xc] sm:$0xf]
        %v245 = vld [vmem:[%s241 + $0x10] sm:$0xf]
        %v246 = vld [vmem:[%s241 + $0x18] sm:$0xf]
        %v247 = vld [vmem:[%s241 + $0x1c] sm:$0xf]
        %v248 = vld [vmem:[%s241 + $0x24] sm:$0xf]
        %v249 = vld [vmem:[%s241 + $0x28] sm:$0xf]
        %v250 = vld [vmem:[%s241 + $0x30] sm:$0xf]
        %v251 = vld [vmem:[%s241 + $0x34] sm:$0xf]
        %v252 = vld [vmem:[%s241 + $0x3c] sm:$0xf]
        %v253 = vld [vmem:[%s241 + $0x40] sm:$0xf]
        %v254 = vld [vmem:[%s241 + $0x48] sm:$0xf]
        %v255 = vld [vmem:[%s241 + $0x4c] sm:$0xf]
        %v256 = vld [vmem:[%s241 + $0x54] sm:$0xf]
        %v257 = vld [vmem:[%s241 + $0x58] sm:$0xf]
        %v258 = vld [vmem:[%s241 + $0x60] sm:$0xf]
        %v259 = vld [vmem:[%s241 + $0x64] sm:$0xf]
        %v260 = vld [vmem:[%s241 + $0x6c] sm:$0xf]
        %v261 = vld [vmem:[%s241 + $0x70] sm:$0xf]
        %v262 = vld [vmem:[%s241 + $0x78] sm:$0xf]
        %v263 = vld [vmem:[%s241 + $0x7c] sm:$0xf]
        %v264 = vld [vmem:[%s241 + $0x84] sm:$0xf]
        %v265 = vld [vmem:[%s241 + $0x88] sm:$0xf]
        %v266 = vld [vmem:[%s241 + $0x90] sm:$0xf]
        %v267 = vld [vmem:[%s241 + $0x94] sm:$0xf]
        %v268 = vld [vmem:[%s241 + $0x9c] sm:$0xf]
        %v269 = vld [vmem:[%s241 + $0xa0] sm:$0xf]
        %v270 = vld [vmem:[%s241 + $0xa8] sm:$0xf]
        %v271 = vld [vmem:[%s241 + $0xac] sm:$0xf]
        %v272 = vld [vmem:[%s241 + $0xb4] sm:$0xf]
        %v273 = vld [vmem:[%s241 + $0xb8] sm:$0xf]
        %v274 = vld [vmem:[%s241 + $0x8] sm:$0x1]
        %v275 = vld [vmem:[%s241 + $0x14] sm:$0x1]
        %v276 = vld [vmem:[%s241 + $0x20] sm:$0x1]
        %v277 = vld [vmem:[%s241 + $0x2c] sm:$0x1]
        %v278 = vld [vmem:[%s241 + $0x38] sm:$0x1]
        %v279 = vld [vmem:[%s241 + $0x44] sm:$0x1]
        %v280 = vld [vmem:[%s241 + $0x50] sm:$0x1]
        %v281 = vld [vmem:[%s241 + $0x5c] sm:$0x1]
        %v282 = vld [vmem:[%s241 + $0x68] sm:$0x1]
        %v283 = vld [vmem:[%s241 + $0x74] sm:$0x1]
        %v284 = vld [vmem:[%s241 + $0x80] sm:$0x1]
        %v285 = vld [vmem:[%s241 + $0x8c] sm:$0x1]
        %v286 = vld [vmem:[%s241 + $0x98] sm:$0x1]
        %v287 = vld [vmem:[%s241 + $0xa4] sm:$0x1]
        %v288 = vld [vmem:[%s241 + $0xb0] sm:$0x1]
        %v289 = vld [vmem:[%s241 + $0xbc] sm:$0x1]
        %v290 = vld [vmem:[%s241] sm:$0xe]
        %v291 = vld [vmem:[%s241 + $0xc] sm:$0xe]
        %v292 = vld [vmem:[%s241 + $0x18] sm:$0xe]
        %v293 = vld [vmem:[%s241 + $0x24] sm:$0xe]
        %v294 = vld [vmem:[%s241 + $0x30] sm:$0xe]
        %v295 = vld [vmem:[%s241 + $0x3c] sm:$0xe]
        %v296 = vld [vmem:[%s241 + $0x48] sm:$0xe]
        %v297 = vld [vmem:[%s241 + $0x54] sm:$0xe]
        %v298 = vld [vmem:[%s241 + $0x60] sm:$0xe]
        %v299 = vld [vmem:[%s241 + $0x6c] sm:$0xe]
        %v300 = vld [vmem:[%s241 + $0x78] sm:$0xe]
        %v301 = vld [vmem:[%s241 + $0x84] sm:$0xe]
        %v302 = vld [vmem:[%s241 + $0x90] sm:$0xe]
        %v303 = vld [vmem:[%s241 + $0x9c] sm:$0xe]
        %v304 = vld [vmem:[%s241 + $0xa8] sm:$0xe]
        %v305 = vld [vmem:[%s241 + $0xb4] sm:$0xe]
        %s306 = scalar_lea.vmem %s164, 24
        %v307 = vld [vmem:[%s306] sm:$0xf]
        %v308 = vld [vmem:[%s306 + $0x4] sm:$0xf]
        %v309 = vld [vmem:[%s306 + $0xc] sm:$0xf]
        %v310 = vld [vmem:[%s306 + $0x10] sm:$0xf]
        %v311 = vld [vmem:[%s306 + $0x18] sm:$0xf]
        %v312 = vld [vmem:[%s306 + $0x1c] sm:$0xf]
        %v313 = vld [vmem:[%s306 + $0x24] sm:$0xf]
        %v314 = vld [vmem:[%s306 + $0x28] sm:$0xf]
        %v315 = vld [vmem:[%s306 + $0x30] sm:$0xf]
        %v316 = vld [vmem:[%s306 + $0x34] sm:$0xf]
        %v317 = vld [vmem:[%s306 + $0x3c] sm:$0xf]
        %v318 = vld [vmem:[%s306 + $0x40] sm:$0xf]
        %v319 = vld [vmem:[%s306 + $0x48] sm:$0xf]
        %v320 = vld [vmem:[%s306 + $0x4c] sm:$0xf]
        %v321 = vld [vmem:[%s306 + $0x54] sm:$0xf]
        %v322 = vld [vmem:[%s306 + $0x58] sm:$0xf]
        %v323 = vld [vmem:[%s306 + $0x60] sm:$0xf]
        %v324 = vld [vmem:[%s306 + $0x64] sm:$0xf]
        %v325 = vld [vmem:[%s306 + $0x6c] sm:$0xf]
        %v326 = vld [vmem:[%s306 + $0x70] sm:$0xf]
        %v327 = vld [vmem:[%s306 + $0x78] sm:$0xf]
        %v328 = vld [vmem:[%s306 + $0x7c] sm:$0xf]
        %v329 = vld [vmem:[%s306 + $0x84] sm:$0xf]
        %v330 = vld [vmem:[%s306 + $0x88] sm:$0xf]
        %v331 = vld [vmem:[%s306 + $0x90] sm:$0xf]
        %v332 = vld [vmem:[%s306 + $0x94] sm:$0xf]
        %v333 = vld [vmem:[%s306 + $0x9c] sm:$0xf]
        %v334 = vld [vmem:[%s306 + $0xa0] sm:$0xf]
        %v335 = vld [vmem:[%s306 + $0xa8] sm:$0xf]
        %v336 = vld [vmem:[%s306 + $0xac] sm:$0xf]
        %v337 = vld [vmem:[%s306 + $0xb4] sm:$0xf]
        %v338 = vld [vmem:[%s306 + $0xb8] sm:$0xf]
        %v339 = vld [vmem:[%s306 + $0x8] sm:$0x1]
        %v340 = vld [vmem:[%s306 + $0x14] sm:$0x1]
        %v341 = vld [vmem:[%s306 + $0x20] sm:$0x1]
        %v342 = vld [vmem:[%s306 + $0x2c] sm:$0x1]
        %v343 = vld [vmem:[%s306 + $0x38] sm:$0x1]
        %v344 = vld [vmem:[%s306 + $0x44] sm:$0x1]
        %v345 = vld [vmem:[%s306 + $0x50] sm:$0x1]
        %v346 = vld [vmem:[%s306 + $0x5c] sm:$0x1]
        %v347 = vld [vmem:[%s306 + $0x68] sm:$0x1]
        %v348 = vld [vmem:[%s306 + $0x74] sm:$0x1]
        %v349 = vld [vmem:[%s306 + $0x80] sm:$0x1]
        %v350 = vld [vmem:[%s306 + $0x8c] sm:$0x1]
        %v351 = vld [vmem:[%s306 + $0x98] sm:$0x1]
        %v352 = vld [vmem:[%s306 + $0xa4] sm:$0x1]
        %v353 = vld [vmem:[%s306 + $0xb0] sm:$0x1]
        %v354 = vld [vmem:[%s306 + $0xbc] sm:$0x1]
        %v355 = vld [vmem:[%s306] sm:$0xe]
        %v356 = vld [vmem:[%s306 + $0xc] sm:$0xe]
        %v357 = vld [vmem:[%s306 + $0x18] sm:$0xe]
        %v358 = vld [vmem:[%s306 + $0x24] sm:$0xe]
        %v359 = vld [vmem:[%s306 + $0x30] sm:$0xe]
        %v360 = vld [vmem:[%s306 + $0x3c] sm:$0xe]
        %v361 = vld [vmem:[%s306 + $0x48] sm:$0xe]
        %v362 = vld [vmem:[%s306 + $0x54] sm:$0xe]
        %v363 = vld [vmem:[%s306 + $0x60] sm:$0xe]
        %v364 = vld [vmem:[%s306 + $0x6c] sm:$0xe]
        %v365 = vld [vmem:[%s306 + $0x78] sm:$0xe]
        %v366 = vld [vmem:[%s306 + $0x84] sm:$0xe]
        %v367 = vld [vmem:[%s306 + $0x90] sm:$0xe]
        %v368 = vld [vmem:[%s306 + $0x9c] sm:$0xe]
        %v369 = vld [vmem:[%s306 + $0xa8] sm:$0xe]
        %v370 = vld [vmem:[%s306 + $0xb4] sm:$0xe]
        %v371 = vld [vmem:[%s1] sm:$0x3]
        %s372 = scalar_lea.vmem %s1, 2
        %v373 = vld [vmem:[%s372] sm:$0x3]
        %vm374 = vsmask.f32 3328
        %vm375 = vsmask.f32 7440
        %vm376 = vmor %vm374, %vm375
        %v378 = vshrl.u32 %v177, 16
        %v380 = vrot.slane %v378, 4
        %v381 = vshll.u32 %v177, 16
        %v383 = vrot.slane %v381, 5
        %v384 = vor.u32 %v380, %v383
        %v385 = vrot.slane %v384, 4
        %v387 = vshll.u32 %v178, 16
        %v389 = vrot.slane %v387, 5
        %v390 = vsel %vm376, %v385, %v389
        %v391 = vshrl.u32 %v178, 16
        %v393 = vrot.slane %v391, 4
        %v394 = vor.u32 %v393, %v389
        %v395 = vrot.slane %v394, 4
        %v397 = vshll.u32 %v209, 16
        %v399 = vrot.slane %v397, 5
        %v400 = vsel %vm376, %v395, %v399
        %v402 = vshrl.u32 %v179, 16
        %v404 = vrot.slane %v402, 4
        %v405 = vshll.u32 %v179, 16
        %v407 = vrot.slane %v405, 5
        %v408 = vor.u32 %v404, %v407
        %v409 = vrot.slane %v408, 4
        %v411 = vshll.u32 %v180, 16
        %v413 = vrot.slane %v411, 5
        %v414 = vsel %vm376, %v409, %v413
        %v415 = vshrl.u32 %v180, 16
        %v417 = vrot.slane %v415, 4
        %v418 = vor.u32 %v417, %v413
        %v419 = vrot.slane %v418, 4
        %v421 = vshll.u32 %v210, 16
        %v423 = vrot.slane %v421, 5
        %v424 = vsel %vm376, %v419, %v423
        %v426 = vshrl.u32 %v181, 16
        %v428 = vrot.slane %v426, 4
        %v429 = vshll.u32 %v181, 16
        %v431 = vrot.slane %v429, 5
        %v432 = vor.u32 %v428, %v431
        %v433 = vrot.slane %v432, 4
        %v435 = vshll.u32 %v182, 16
        %v437 = vrot.slane %v435, 5
        %v438 = vsel %vm376, %v433, %v437
        %v439 = vshrl.u32 %v182, 16
        %v441 = vrot.slane %v439, 4
        %v442 = vor.u32 %v441, %v437
        %v443 = vrot.slane %v442, 4
        %v445 = vshll.u32 %v211, 16
        %v447 = vrot.slane %v445, 5
        %v448 = vsel %vm376, %v443, %v447
        %v450 = vshrl.u32 %v183, 16
        %v452 = vrot.slane %v450, 4
        %v453 = vshll.u32 %v183, 16
        %v455 = vrot.slane %v453, 5
        %v456 = vor.u32 %v452, %v455
        %v457 = vrot.slane %v456, 4
        %v459 = vshll.u32 %v184, 16
        %v461 = vrot.slane %v459, 5
        %v462 = vsel %vm376, %v457, %v461
        %v463 = vshrl.u32 %v184, 16
        %v465 = vrot.slane %v463, 4
        %v466 = vor.u32 %v465, %v461
        %v467 = vrot.slane %v466, 4
        %v469 = vshll.u32 %v212, 16
        %v471 = vrot.slane %v469, 5
        %v472 = vsel %vm376, %v467, %v471
        %v474 = vshrl.u32 %v185, 16
        %v476 = vrot.slane %v474, 4
        %v477 = vshll.u32 %v185, 16
        %v479 = vrot.slane %v477, 5
        %v480 = vor.u32 %v476, %v479
        %v481 = vrot.slane %v480, 4
        %v483 = vshll.u32 %v186, 16
        %v485 = vrot.slane %v483, 5
        %v486 = vsel %vm376, %v481, %v485
        %v487 = vshrl.u32 %v186, 16
        %v489 = vrot.slane %v487, 4
        %v490 = vor.u32 %v489, %v485
        %v491 = vrot.slane %v490, 4
        %v493 = vshll.u32 %v213, 16
        %v495 = vrot.slane %v493, 5
        %v496 = vsel %vm376, %v491, %v495
        %v498 = vshrl.u32 %v187, 16
        %v500 = vrot.slane %v498, 4
        %v501 = vshll.u32 %v187, 16
        %v503 = vrot.slane %v501, 5
        %v504 = vor.u32 %v500, %v503
        %v505 = vrot.slane %v504, 4
        %v507 = vshll.u32 %v188, 16
        %v509 = vrot.slane %v507, 5
        %v510 = vsel %vm376, %v505, %v509
        %v511 = vshrl.u32 %v188, 16
        %v513 = vrot.slane %v511, 4
        %v514 = vor.u32 %v513, %v509
        %v515 = vrot.slane %v514, 4
        %v517 = vshll.u32 %v214, 16
        %v519 = vrot.slane %v517, 5
        %v520 = vsel %vm376, %v515, %v519
        %v522 = vshrl.u32 %v189, 16
        %v524 = vrot.slane %v522, 4
        %v525 = vshll.u32 %v189, 16
        %v527 = vrot.slane %v525, 5
        %v528 = vor.u32 %v524, %v527
        %v529 = vrot.slane %v528, 4
        %v531 = vshll.u32 %v190, 16
        %v533 = vrot.slane %v531, 5
        %v534 = vsel %vm376, %v529, %v533
        %v535 = vshrl.u32 %v190, 16
        %v537 = vrot.slane %v535, 4
        %v538 = vor.u32 %v537, %v533
        %v539 = vrot.slane %v538, 4
        %v541 = vshll.u32 %v215, 16
        %v543 = vrot.slane %v541, 5
        %v544 = vsel %vm376, %v539, %v543
        %v546 = vshrl.u32 %v191, 16
        %v548 = vrot.slane %v546, 4
        %v549 = vshll.u32 %v191, 16
        %v551 = vrot.slane %v549, 5
        %v552 = vor.u32 %v548, %v551
        %v553 = vrot.slane %v552, 4
        %v555 = vshll.u32 %v192, 16
        %v557 = vrot.slane %v555, 5
        %v558 = vsel %vm376, %v553, %v557
        %v559 = vshrl.u32 %v192, 16
        %v561 = vrot.slane %v559, 4
        %v562 = vor.u32 %v561, %v557
        %v563 = vrot.slane %v562, 4
        %v565 = vshll.u32 %v216, 16
        %v567 = vrot.slane %v565, 5
        %v568 = vsel %vm376, %v563, %v567
        %v570 = vshrl.u32 %v193, 16
        %v572 = vrot.slane %v570, 4
        %v573 = vshll.u32 %v193, 16
        %v575 = vrot.slane %v573, 5
        %v576 = vor.u32 %v572, %v575
        %v577 = vrot.slane %v576, 4
        %v579 = vshll.u32 %v194, 16
        %v581 = vrot.slane %v579, 5
        %v582 = vsel %vm376, %v577, %v581
        %v583 = vshrl.u32 %v194, 16
        %v585 = vrot.slane %v583, 4
        %v586 = vor.u32 %v585, %v581
        %v587 = vrot.slane %v586, 4
        %v589 = vshll.u32 %v217, 16
        %v591 = vrot.slane %v589, 5
        %v592 = vsel %vm376, %v587, %v591
        %v594 = vshrl.u32 %v195, 16
        %v596 = vrot.slane %v594, 4
        %v597 = vshll.u32 %v195, 16
        %v599 = vrot.slane %v597, 5
        %v600 = vor.u32 %v596, %v599
        %v601 = vrot.slane %v600, 4
        %v603 = vshll.u32 %v196, 16
        %v605 = vrot.slane %v603, 5
        %v606 = vsel %vm376, %v601, %v605
        %v607 = vshrl.u32 %v196, 16
        %v609 = vrot.slane %v607, 4
        %v610 = vor.u32 %v609, %v605
        %v611 = vrot.slane %v610, 4
        %v613 = vshll.u32 %v218, 16
        %v615 = vrot.slane %v613, 5
        %v616 = vsel %vm376, %v611, %v615
        %v618 = vshrl.u32 %v197, 16
        %v620 = vrot.slane %v618, 4
        %v621 = vshll.u32 %v197, 16
        %v623 = vrot.slane %v621, 5
        %v624 = vor.u32 %v620, %v623
        %v625 = vrot.slane %v624, 4
        %v627 = vshll.u32 %v198, 16
        %v629 = vrot.slane %v627, 5
        %v630 = vsel %vm376, %v625, %v629
        %v631 = vshrl.u32 %v198, 16
        %v633 = vrot.slane %v631, 4
        %v634 = vor.u32 %v633, %v629
        %v635 = vrot.slane %v634, 4
        %v637 = vshll.u32 %v219, 16
        %v639 = vrot.slane %v637, 5
        %v640 = vsel %vm376, %v635, %v639
        %v642 = vshrl.u32 %v199, 16
        %v644 = vrot.slane %v642, 4
        %v645 = vshll.u32 %v199, 16
        %v647 = vrot.slane %v645, 5
        %v648 = vor.u32 %v644, %v647
        %v649 = vrot.slane %v648, 4
        %v651 = vshll.u32 %v200, 16
        %v653 = vrot.slane %v651, 5
        %v654 = vsel %vm376, %v649, %v653
        %v655 = vshrl.u32 %v200, 16
        %v657 = vrot.slane %v655, 4
        %v658 = vor.u32 %v657, %v653
        %v659 = vrot.slane %v658, 4
        %v661 = vshll.u32 %v220, 16
        %v663 = vrot.slane %v661, 5
        %v664 = vsel %vm376, %v659, %v663
        %v666 = vshrl.u32 %v201, 16
        %v668 = vrot.slane %v666, 4
        %v669 = vshll.u32 %v201, 16
        %v671 = vrot.slane %v669, 5
        %v672 = vor.u32 %v668, %v671
        %v673 = vrot.slane %v672, 4
        %v675 = vshll.u32 %v202, 16
        %v677 = vrot.slane %v675, 5
        %v678 = vsel %vm376, %v673, %v677
        %v679 = vshrl.u32 %v202, 16
        %v681 = vrot.slane %v679, 4
        %v682 = vor.u32 %v681, %v677
        %v683 = vrot.slane %v682, 4
        %v685 = vshll.u32 %v221, 16
        %v687 = vrot.slane %v685, 5
        %v688 = vsel %vm376, %v683, %v687
        %v690 = vshrl.u32 %v203, 16
        %v692 = vrot.slane %v690, 4
        %v693 = vshll.u32 %v203, 16
        %v695 = vrot.slane %v693, 5
        %v696 = vor.u32 %v692, %v695
        %v697 = vrot.slane %v696, 4
        %v699 = vshll.u32 %v204, 16
        %v701 = vrot.slane %v699, 5
        %v702 = vsel %vm376, %v697, %v701
        %v703 = vshrl.u32 %v204, 16
        %v705 = vrot.slane %v703, 4
        %v706 = vor.u32 %v705, %v701
        %v707 = vrot.slane %v706, 4
        %v709 = vshll.u32 %v222, 16
        %v711 = vrot.slane %v709, 5
        %v712 = vsel %vm376, %v707, %v711
        %v714 = vshrl.u32 %v205, 16
        %v716 = vrot.slane %v714, 4
        %v717 = vshll.u32 %v205, 16
        %v719 = vrot.slane %v717, 5
        %v720 = vor.u32 %v716, %v719
        %v721 = vrot.slane %v720, 4
        %v723 = vshll.u32 %v206, 16
        %v725 = vrot.slane %v723, 5
        %v726 = vsel %vm376, %v721, %v725
        %v727 = vshrl.u32 %v206, 16
        %v729 = vrot.slane %v727, 4
        %v730 = vor.u32 %v729, %v725
        %v731 = vrot.slane %v730, 4
        %v733 = vshll.u32 %v223, 16
        %v735 = vrot.slane %v733, 5
        %v736 = vsel %vm376, %v731, %v735
        %v738 = vshrl.u32 %v207, 16
        %v740 = vrot.slane %v738, 4
        %v741 = vshll.u32 %v207, 16
        %v743 = vrot.slane %v741, 5
        %v744 = vor.u32 %v740, %v743
        %v745 = vrot.slane %v744, 4
        %v747 = vshll.u32 %v208, 16
        %v749 = vrot.slane %v747, 5
        %v750 = vsel %vm376, %v745, %v749
        %v751 = vshrl.u32 %v208, 16
        %v753 = vrot.slane %v751, 4
        %v754 = vor.u32 %v753, %v749
        %v755 = vrot.slane %v754, 4
        %v757 = vshll.u32 %v224, 16
        %v759 = vrot.slane %v757, 5
        %v760 = vsel %vm376, %v755, %v759
        %v761 = vunpack.c.l.b16 %v390
        %v762 = vunpack.c.l.b16 %v400
        %v763 = vunpack.c.l.b16 %v414
        %v764 = vunpack.c.l.b16 %v424
        %v765 = vunpack.c.l.b16 %v438
        %v766 = vunpack.c.l.b16 %v448
        %v767 = vunpack.c.l.b16 %v462
        %v768 = vunpack.c.l.b16 %v472
        %v769 = vunpack.c.l.b16 %v486
        %v770 = vunpack.c.l.b16 %v496
        %v771 = vunpack.c.l.b16 %v510
        %v772 = vunpack.c.l.b16 %v520
        %v773 = vunpack.c.l.b16 %v534
        %v774 = vunpack.c.l.b16 %v544
        %v775 = vunpack.c.l.b16 %v558
        %v776 = vunpack.c.l.b16 %v568
        %v777 = vunpack.c.l.b16 %v582
        %v778 = vunpack.c.l.b16 %v592
        %v779 = vunpack.c.l.b16 %v606
        %v780 = vunpack.c.l.b16 %v616
        %v781 = vunpack.c.l.b16 %v630
        %v782 = vunpack.c.l.b16 %v640
        %v783 = vunpack.c.l.b16 %v654
        %v784 = vunpack.c.l.b16 %v664
        %v785 = vunpack.c.l.b16 %v678
        %v786 = vunpack.c.l.b16 %v688
        %v787 = vunpack.c.l.b16 %v702
        %v788 = vunpack.c.l.b16 %v712
        %v789 = vunpack.c.l.b16 %v726
        %v790 = vunpack.c.l.b16 %v736
        %v791 = vunpack.c.l.b16 %v750
        %v792 = vunpack.c.l.b16 %v760
        %v793 = vpack.c.b16 %v762, %v761
        %v794 = vpack.c.b16 %v764, %v763
        %v795 = vpack.c.b16 %v766, %v765
        %v796 = vpack.c.b16 %v768, %v767
        %v797 = vpack.c.b16 %v770, %v769
        %v798 = vpack.c.b16 %v772, %v771
        %v799 = vpack.c.b16 %v774, %v773
        %v800 = vpack.c.b16 %v776, %v775
        %v801 = vpack.c.b16 %v778, %v777
        %v802 = vpack.c.b16 %v780, %v779
        %v803 = vpack.c.b16 %v782, %v781
        %v804 = vpack.c.b16 %v784, %v783
        %v805 = vpack.c.b16 %v786, %v785
        %v806 = vpack.c.b16 %v788, %v787
        %v807 = vpack.c.b16 %v790, %v789
        %v808 = vpack.c.b16 %v792, %v791
        %vm809 = vcmask 31744
        %v811 = vsel %vm809, %v793, 0
        %v814 = vsel %vm809, %v794, 0
        %v817 = vsel %vm809, %v795, 0
        %v820 = vsel %vm809, %v796, 0
        %v823 = vsel %vm809, %v797, 0
        %v826 = vsel %vm809, %v798, 0
        %v829 = vsel %vm809, %v799, 0
        %v832 = vsel %vm809, %v800, 0
        %v835 = vsel %vm809, %v801, 0
        %v838 = vsel %vm809, %v802, 0
        %v841 = vsel %vm809, %v803, 0
        %v844 = vsel %vm809, %v804, 0
        %v847 = vsel %vm809, %v805, 0
        %v850 = vsel %vm809, %v806, 0
        %v853 = vsel %vm809, %v807, 0
        %v856 = vsel %vm809, %v808, 0
        %vm858 = vcmask 1041408
        %v860 = vsel %vm858, %v373, 0
        %862 = vmatprep.subr.bf16.mxu0 0
        %863 = vmatpush1.bf16.msra.mxu0 %v860
        %864 = vmatprep.subr.bf16.mxu0 0
        %865 = vmatpush1.bf16.msra.mxu0 0
        %866 = vmatprep.subr.bf16.mxu0 0
        %867 = vmatpush1.bf16.msra.mxu0 0
        %868 = vmatprep.subr.bf16.mxu0 0
        %869 = vmatpush1.bf16.msra.mxu0 0
        %870 = vmatprep.subr.bf16.mxu0 0
        %871 = vmatpush1.bf16.msra.mxu0 0
        %872 = vmatprep.subr.bf16.mxu0 0
        %873 = vmatpush1.bf16.msra.mxu0 0
        %874 = vmatprep.subr.bf16.mxu0 0
        %875 = vmatpush1.bf16.msra.mxu0 0
        %876 = vmatprep.subr.bf16.mxu0 0
        %877 = vmatpush1.bf16.msra.mxu0 0
        %878 = vmatprep.subr.bf16.mxu0 0
        %879 = vmatpush1.bf16.msra.mxu0 0
        %880 = vmatprep.subr.bf16.mxu0 0
        %881 = vmatpush1.bf16.msra.mxu0 0
        %882 = vmatprep.subr.bf16.mxu0 0
        %883 = vmatpush1.bf16.msra.mxu0 0
        %884 = vmatprep.subr.bf16.mxu0 0
        %885 = vmatpush1.bf16.msra.mxu0 0
        %886 = vmatprep.subr.bf16.mxu0 0
        %887 = vmatpush1.bf16.msra.mxu0 0
        %888 = vmatprep.subr.bf16.mxu0 0
        %889 = vmatpush1.bf16.msra.mxu0 0
        %890 = vmatprep.subr.bf16.mxu0 0
        %891 = vmatpush1.bf16.msra.mxu0 0
        %892 = vmatprep.subr.bf16.mxu0 0
        %893 = vmatpush1.bf16.msra.mxu0 0
        %894 = vmatprep.mubr.bf16.mxu0 0
        %895 = vmatmul.mubr.bf16.gmra.mrb[0].mxu0 %v811
        %v896 = vpop.f32.mrb[0].mxu0
        %v897 = vadd.f32 0.0, %v896
        %v898 = vpop.f32.mrb[0].mxu0
        %v899 = vpop.f32.mrb[0].mxu0
        %v900 = vadd.f32 0.0, %v899
        %v901 = vpop.f32.mrb[0].mxu0
        %902 = vmatprep.mubr.bf16.mxu0 0
        %903 = vmatmul.mubr.bf16.gmra.mrb[0].mxu0 %v814
        %v904 = vpop.f32.mrb[0].mxu0
        %v905 = vadd.f32 0.0, %v904
        %v906 = vpop.f32.mrb[0].mxu0
        %v907 = vpop.f32.mrb[0].mxu0
        %v908 = vadd.f32 0.0, %v907
        %v909 = vpop.f32.mrb[0].mxu0
        %910 = vmatprep.mubr.bf16.mxu0 0
        %911 = vmatmul.mubr.bf16.gmra.mrb[0].mxu0 %v817
        %v912 = vpop.f32.mrb[0].mxu0
        %v913 = vadd.f32 0.0, %v912
        %v914 = vpop.f32.mrb[0].mxu0
        %v915 = vpop.f32.mrb[0].mxu0
        %v916 = vadd.f32 0.0, %v915
        %v917 = vpop.f32.mrb[0].mxu0
        %918 = vmatprep.mubr.bf16.mxu0 0
        %919 = vmatmul.mubr.bf16.gmra.mrb[0].mxu0 %v820
        %v920 = vpop.f32.mrb[0].mxu0
        %v921 = vadd.f32 0.0, %v920
        %v922 = vpop.f32.mrb[0].mxu0
        %v923 = vpop.f32.mrb[0].mxu0
        %v924 = vadd.f32 0.0, %v923
        %v925 = vpop.f32.mrb[0].mxu0
        %926 = vmatprep.mubr.bf16.mxu0 0
        %927 = vmatmul.mubr.bf16.gmra.mrb[0].mxu0 %v823
        %v928 = vpop.f32.mrb[0].mxu0
        %v929 = vadd.f32 0.0, %v928
        %v930 = vpop.f32.mrb[0].mxu0
        %v931 = vpop.f32.mrb[0].mxu0
        %v932 = vadd.f32 0.0, %v931
        %v933 = vpop.f32.mrb[0].mxu0
        %934 = vmatprep.mubr.bf16.mxu0 0
        %935 = vmatmul.mubr.bf16.gmra.mrb[0].mxu0 %v826
        %v936 = vpop.f32.mrb[0].mxu0
        %v937 = vadd.f32 0.0, %v936
        %v938 = vpop.f32.mrb[0].mxu0
        %v939 = vpop.f32.mrb[0].mxu0
        %v940 = vadd.f32 0.0, %v939
        %v941 = vpop.f32.mrb[0].mxu0
        %942 = vmatprep.mubr.bf16.mxu0 0
        %943 = vmatmul.mubr.bf16.gmra.mrb[0].mxu0 %v829
        %v944 = vpop.f32.mrb[0].mxu0
        %v945 = vadd.f32 0.0, %v944
        %v946 = vpop.f32.mrb[0].mxu0
        %v947 = vpop.f32.mrb[0].mxu0
        %v948 = vadd.f32 0.0, %v947
        %v949 = vpop.f32.mrb[0].mxu0
        %950 = vmatprep.mubr.bf16.mxu0 0
        %951 = vmatmul.mubr.bf16.gmra.mrb[0].mxu0 %v832
        %v952 = vpop.f32.mrb[0].mxu0
        %v953 = vadd.f32 0.0, %v952
        %v954 = vpop.f32.mrb[0].mxu0
        %v955 = vpop.f32.mrb[0].mxu0
        %v956 = vadd.f32 0.0, %v955
        %v957 = vpop.f32.mrb[0].mxu0
        %958 = vmatprep.mubr.bf16.mxu0 0
        %959 = vmatmul.mubr.bf16.gmra.mrb[0].mxu0 %v835
        %v960 = vpop.f32.mrb[0].mxu0
        %v961 = vadd.f32 0.0, %v960
        %v962 = vpop.f32.mrb[0].mxu0
        %v963 = vpop.f32.mrb[0].mxu0
        %v964 = vadd.f32 0.0, %v963
        %v965 = vpop.f32.mrb[0].mxu0
        %966 = vmatprep.mubr.bf16.mxu0 0
        %967 = vmatmul.mubr.bf16.gmra.mrb[0].mxu0 %v838
        %v968 = vpop.f32.mrb[0].mxu0
        %v969 = vadd.f32 0.0, %v968
        %v970 = vpop.f32.mrb[0].mxu0
        %v971 = vpop.f32.mrb[0].mxu0
        %v972 = vadd.f32 0.0, %v971
        %v973 = vpop.f32.mrb[0].mxu0
        %974 = vmatprep.mubr.bf16.mxu0 0
        %975 = vmatmul.mubr.bf16.gmra.mrb[0].mxu0 %v841
        %v976 = vpop.f32.mrb[0].mxu0
        %v977 = vadd.f32 0.0, %v976
        %v978 = vpop.f32.mrb[0].mxu0
        %v979 = vpop.f32.mrb[0].mxu0
        %v980 = vadd.f32 0.0, %v979
        %v981 = vpop.f32.mrb[0].mxu0
        %982 = vmatprep.mubr.bf16.mxu0 0
        %983 = vmatmul.mubr.bf16.gmra.mrb[0].mxu0 %v844
        %v984 = vpop.f32.mrb[0].mxu0
        %v985 = vadd.f32 0.0, %v984
        %v986 = vpop.f32.mrb[0].mxu0
        %v987 = vpop.f32.mrb[0].mxu0
        %v988 = vadd.f32 0.0, %v987
        %v989 = vpop.f32.mrb[0].mxu0
        %990 = vmatprep.mubr.bf16.mxu0 0
        %991 = vmatmul.mubr.bf16.gmra.mrb[0].mxu0 %v847
        %v992 = vpop.f32.mrb[0].mxu0
        %v993 = vadd.f32 0.0, %v992
        %v994 = vpop.f32.mrb[0].mxu0
        %v995 = vpop.f32.mrb[0].mxu0
        %v996 = vadd.f32 0.0, %v995
        %v997 = vpop.f32.mrb[0].mxu0
        %998 = vmatprep.mubr.bf16.mxu0 0
        %999 = vmatmul.mubr.bf16.gmra.mrb[0].mxu0 %v850
        %v1000 = vpop.f32.mrb[0].mxu0
        %v1001 = vadd.f32 0.0, %v1000
        %v1002 = vpop.f32.mrb[0].mxu0
        %v1003 = vpop.f32.mrb[0].mxu0
        %v1004 = vadd.f32 0.0, %v1003
        %v1005 = vpop.f32.mrb[0].mxu0
        %1006 = vmatprep.mubr.bf16.mxu0 0
        %1007 = vmatmul.mubr.bf16.gmra.mrb[0].mxu0 %v853
        %v1008 = vpop.f32.mrb[0].mxu0
        %v1009 = vadd.f32 0.0, %v1008
        %v1010 = vpop.f32.mrb[0].mxu0
        %v1011 = vpop.f32.mrb[0].mxu0
        %v1012 = vadd.f32 0.0, %v1011
        %v1013 = vpop.f32.mrb[0].mxu0
        %1014 = vmatprep.mubr.bf16.mxu0 0
        %1015 = vmatmul.mubr.bf16.gmra.mrb[0].mxu0 %v856
        %v1016 = vpop.f32.mrb[0].mxu0
        %v1017 = vadd.f32 0.0, %v1016
        %v1018 = vpop.f32.mrb[0].mxu0
        %v1019 = vpop.f32.mrb[0].mxu0
        %v1020 = vadd.f32 0.0, %v1019
        %v1021 = vpop.f32.mrb[0].mxu0
        %1022 = vdwg.mxu0
        %v1055 = vunpack.c.l.b16 %v177
        %v1056 = vunpack.c.l.b16 %v178
        %v1057 = vunpack.c.l.b16 %v179
        %v1058 = vunpack.c.l.b16 %v180
        %v1059 = vunpack.c.l.b16 %v181
        %v1060 = vunpack.c.l.b16 %v182
        %v1061 = vunpack.c.l.b16 %v183
        %v1062 = vunpack.c.l.b16 %v184
        %v1063 = vunpack.c.l.b16 %v185
        %v1064 = vunpack.c.l.b16 %v186
        %v1065 = vunpack.c.l.b16 %v187
        %v1066 = vunpack.c.l.b16 %v188
        %v1067 = vunpack.c.l.b16 %v189
        %v1068 = vunpack.c.l.b16 %v190
        %v1069 = vunpack.c.l.b16 %v191
        %v1070 = vunpack.c.l.b16 %v192
        %v1071 = vunpack.c.l.b16 %v193
        %v1072 = vunpack.c.l.b16 %v194
        %v1073 = vunpack.c.l.b16 %v195
        %v1074 = vunpack.c.l.b16 %v196
        %v1075 = vunpack.c.l.b16 %v197
        %v1076 = vunpack.c.l.b16 %v198
        %v1077 = vunpack.c.l.b16 %v199
        %v1078 = vunpack.c.l.b16 %v200
        %v1079 = vunpack.c.l.b16 %v201
        %v1080 = vunpack.c.l.b16 %v202
        %v1081 = vunpack.c.l.b16 %v203
        %v1082 = vunpack.c.l.b16 %v204
        %v1083 = vunpack.c.l.b16 %v205
        %v1084 = vunpack.c.l.b16 %v206
        %v1085 = vunpack.c.l.b16 %v207
        %v1086 = vunpack.c.l.b16 %v208
        %v1087 = vpack.c.b16 %v1056, %v1055
        %v1088 = vpack.c.b16 %v1058, %v1057
        %v1089 = vpack.c.b16 %v1060, %v1059
        %v1090 = vpack.c.b16 %v1062, %v1061
        %v1091 = vpack.c.b16 %v1064, %v1063
        %v1092 = vpack.c.b16 %v1066, %v1065
        %v1093 = vpack.c.b16 %v1068, %v1067
        %v1094 = vpack.c.b16 %v1070, %v1069
        %v1095 = vpack.c.b16 %v1072, %v1071
        %v1096 = vpack.c.b16 %v1074, %v1073
        %v1097 = vpack.c.b16 %v1076, %v1075
        %v1098 = vpack.c.b16 %v1078, %v1077
        %v1099 = vpack.c.b16 %v1080, %v1079
        %v1100 = vpack.c.b16 %v1082, %v1081
        %v1101 = vpack.c.b16 %v1084, %v1083
        %v1102 = vpack.c.b16 %v1086, %v1085
        %v1104 = vsel %vm809, %v1087, 0
        %v1107 = vsel %vm809, %v1088, 0
        %v1110 = vsel %vm809, %v1089, 0
        %v1113 = vsel %vm809, %v1090, 0
        %v1116 = vsel %vm809, %v1091, 0
        %v1119 = vsel %vm809, %v1092, 0
        %v1122 = vsel %vm809, %v1093, 0
        %v1125 = vsel %vm809, %v1094, 0
        %v1128 = vsel %vm809, %v1095, 0
        %v1131 = vsel %vm809, %v1096, 0
        %v1134 = vsel %vm809, %v1097, 0
        %v1137 = vsel %vm809, %v1098, 0
        %v1140 = vsel %vm809, %v1099, 0
        %v1143 = vsel %vm809, %v1100, 0
        %v1146 = vsel %vm809, %v1101, 0
        %v1149 = vsel %vm809, %v1102, 0
        %v1152 = vsel %vm858, %v371, 0
        %1154 = vmatprep.subr.bf16.mxu0 0
        %1155 = vmatpush1.bf16.msra.mxu0 %v1152
        %1156 = vmatprep.subr.bf16.mxu0 0
        %1157 = vmatpush1.bf16.msra.mxu0 0
        %1158 = vmatprep.subr.bf16.mxu0 0
        %1159 = vmatpush1.bf16.msra.mxu0 0
        %1160 = vmatprep.subr.bf16.mxu0 0
        %1161 = vmatpush1.bf16.msra.mxu0 0
        %1162 = vmatprep.subr.bf16.mxu0 0
        %1163 = vmatpush1.bf16.msra.mxu0 0
        %1164 = vmatprep.subr.bf16.mxu0 0
        %1165 = vmatpush1.bf16.msra.mxu0 0
        %1166 = vmatprep.subr.bf16.mxu0 0
        %1167 = vmatpush1.bf16.msra.mxu0 0
        %1168 = vmatprep.subr.bf16.mxu0 0
        %1169 = vmatpush1.bf16.msra.mxu0 0
        %1170 = vmatprep.subr.bf16.mxu0 0
        %1171 = vmatpush1.bf16.msra.mxu0 0
        %1172 = vmatprep.subr.bf16.mxu0 0
        %1173 = vmatpush1.bf16.msra.mxu0 0
        %1174 = vmatprep.subr.bf16.mxu0 0
        %1175 = vmatpush1.bf16.msra.mxu0 0
        %1176 = vmatprep.subr.bf16.mxu0 0
        %1177 = vmatpush1.bf16.msra.mxu0 0
        %1178 = vmatprep.subr.bf16.mxu0 0
        %1179 = vmatpush1.bf16.msra.mxu0 0
        %1180 = vmatprep.subr.bf16.mxu0 0
        %1181 = vmatpush1.bf16.msra.mxu0 0
        %1182 = vmatprep.subr.bf16.mxu0 0
        %1183 = vmatpush1.bf16.msra.mxu0 0
        %1184 = vmatprep.subr.bf16.mxu0 0
        %1185 = vmatpush1.bf16.msra.mxu0 0
        %1186 = vmatprep.mubr.bf16.mxu0 0
        %1187 = vmatmul.mubr.bf16.gmra.mrb[0].mxu0 %v1104
        %v1188 = vpop.f32.mrb[0].mxu0
        %v1189 = vadd.f32 %v897, %v1188
        %v1190 = vpop.f32.mrb[0].mxu0
        %v1191 = vpop.f32.mrb[0].mxu0
        %v1192 = vadd.f32 %v900, %v1191
        %v1193 = vpop.f32.mrb[0].mxu0
        %1194 = vmatprep.mubr.bf16.mxu0 0
        %1195 = vmatmul.mubr.bf16.gmra.mrb[0].mxu0 %v1107
        %v1196 = vpop.f32.mrb[0].mxu0
        %v1197 = vadd.f32 %v905, %v1196
        %v1198 = vpop.f32.mrb[0].mxu0
        %v1199 = vpop.f32.mrb[0].mxu0
        %v1200 = vadd.f32 %v908, %v1199
        %v1201 = vpop.f32.mrb[0].mxu0
        %1202 = vmatprep.mubr.bf16.mxu0 0
        %1203 = vmatmul.mubr.bf16.gmra.mrb[0].mxu0 %v1110
        %v1204 = vpop.f32.mrb[0].mxu0
        %v1205 = vadd.f32 %v913, %v1204
        %v1206 = vpop.f32.mrb[0].mxu0
        %v1207 = vpop.f32.mrb[0].mxu0
        %v1208 = vadd.f32 %v916, %v1207
        %v1209 = vpop.f32.mrb[0].mxu0
        %1210 = vmatprep.mubr.bf16.mxu0 0
        %1211 = vmatmul.mubr.bf16.gmra.mrb[0].mxu0 %v1113
        %v1212 = vpop.f32.mrb[0].mxu0
        %v1213 = vadd.f32 %v921, %v1212
        %v1214 = vpop.f32.mrb[0].mxu0
        %v1215 = vpop.f32.mrb[0].mxu0
        %v1216 = vadd.f32 %v924, %v1215
        %v1217 = vpop.f32.mrb[0].mxu0
        %1218 = vmatprep.mubr.bf16.mxu0 0
        %1219 = vmatmul.mubr.bf16.gmra.mrb[0].mxu0 %v1116
        %v1220 = vpop.f32.mrb[0].mxu0
        %v1221 = vadd.f32 %v929, %v1220
        %v1222 = vpop.f32.mrb[0].mxu0
        %v1223 = vpop.f32.mrb[0].mxu0
        %v1224 = vadd.f32 %v932, %v1223
        %v1225 = vpop.f32.mrb[0].mxu0
        %1226 = vmatprep.mubr.bf16.mxu0 0
        %1227 = vmatmul.mubr.bf16.gmra.mrb[0].mxu0 %v1119
        %v1228 = vpop.f32.mrb[0].mxu0
        %v1229 = vadd.f32 %v937, %v1228
        %v1230 = vpop.f32.mrb[0].mxu0
        %v1231 = vpop.f32.mrb[0].mxu0
        %v1232 = vadd.f32 %v940, %v1231
        %v1233 = vpop.f32.mrb[0].mxu0
        %1234 = vmatprep.mubr.bf16.mxu0 0
        %1235 = vmatmul.mubr.bf16.gmra.mrb[0].mxu0 %v1122
        %v1236 = vpop.f32.mrb[0].mxu0
        %v1237 = vadd.f32 %v945, %v1236
        %v1238 = vpop.f32.mrb[0].mxu0
        %v1239 = vpop.f32.mrb[0].mxu0
        %v1240 = vadd.f32 %v948, %v1239
        %v1241 = vpop.f32.mrb[0].mxu0
        %1242 = vmatprep.mubr.bf16.mxu0 0
        %1243 = vmatmul.mubr.bf16.gmra.mrb[0].mxu0 %v1125
        %v1244 = vpop.f32.mrb[0].mxu0
        %v1245 = vadd.f32 %v953, %v1244
        %v1246 = vpop.f32.mrb[0].mxu0
        %v1247 = vpop.f32.mrb[0].mxu0
        %v1248 = vadd.f32 %v956, %v1247
        %v1249 = vpop.f32.mrb[0].mxu0
        %1250 = vmatprep.mubr.bf16.mxu0 0
        %1251 = vmatmul.mubr.bf16.gmra.mrb[0].mxu0 %v1128
        %v1252 = vpop.f32.mrb[0].mxu0
        %v1253 = vadd.f32 %v961, %v1252
        %v1254 = vpop.f32.mrb[0].mxu0
        %v1255 = vpop.f32.mrb[0].mxu0
        %v1256 = vadd.f32 %v964, %v1255
        %v1257 = vpop.f32.mrb[0].mxu0
        %1258 = vmatprep.mubr.bf16.mxu0 0
        %1259 = vmatmul.mubr.bf16.gmra.mrb[0].mxu0 %v1131
        %v1260 = vpop.f32.mrb[0].mxu0
        %v1261 = vadd.f32 %v969, %v1260
        %v1262 = vpop.f32.mrb[0].mxu0
        %v1263 = vpop.f32.mrb[0].mxu0
        %v1264 = vadd.f32 %v972, %v1263
        %v1265 = vpop.f32.mrb[0].mxu0
        %1266 = vmatprep.mubr.bf16.mxu0 0
        %1267 = vmatmul.mubr.bf16.gmra.mrb[0].mxu0 %v1134
        %v1268 = vpop.f32.mrb[0].mxu0
        %v1269 = vadd.f32 %v977, %v1268
        %v1270 = vpop.f32.mrb[0].mxu0
        %v1271 = vpop.f32.mrb[0].mxu0
        %v1272 = vadd.f32 %v980, %v1271
        %v1273 = vpop.f32.mrb[0].mxu0
        %1274 = vmatprep.mubr.bf16.mxu0 0
        %1275 = vmatmul.mubr.bf16.gmra.mrb[0].mxu0 %v1137
        %v1276 = vpop.f32.mrb[0].mxu0
        %v1277 = vadd.f32 %v985, %v1276
        %v1278 = vpop.f32.mrb[0].mxu0
        %v1279 = vpop.f32.mrb[0].mxu0
        %v1280 = vadd.f32 %v988, %v1279
        %v1281 = vpop.f32.mrb[0].mxu0
        %1282 = vmatprep.mubr.bf16.mxu0 0
        %1283 = vmatmul.mubr.bf16.gmra.mrb[0].mxu0 %v1140
        %v1284 = vpop.f32.mrb[0].mxu0
        %v1285 = vadd.f32 %v993, %v1284
        %v1286 = vpop.f32.mrb[0].mxu0
        %v1287 = vpop.f32.mrb[0].mxu0
        %v1288 = vadd.f32 %v996, %v1287
        %v1289 = vpop.f32.mrb[0].mxu0
        %1290 = vmatprep.mubr.bf16.mxu0 0
        %1291 = vmatmul.mubr.bf16.gmra.mrb[0].mxu0 %v1143
        %v1292 = vpop.f32.mrb[0].mxu0
        %v1293 = vadd.f32 %v1001, %v1292
        %v1294 = vpop.f32.mrb[0].mxu0
        %v1295 = vpop.f32.mrb[0].mxu0
        %v1296 = vadd.f32 %v1004, %v1295
        %v1297 = vpop.f32.mrb[0].mxu0
        %1298 = vmatprep.mubr.bf16.mxu0 0
        %1299 = vmatmul.mubr.bf16.gmra.mrb[0].mxu0 %v1146
        %v1300 = vpop.f32.mrb[0].mxu0
        %v1301 = vadd.f32 %v1009, %v1300
        %v1302 = vpop.f32.mrb[0].mxu0
        %v1303 = vpop.f32.mrb[0].mxu0
        %v1304 = vadd.f32 %v1012, %v1303
        %v1305 = vpop.f32.mrb[0].mxu0
        %1306 = vmatprep.mubr.bf16.mxu0 0
        %1307 = vmatmul.mubr.bf16.gmra.mrb[0].mxu0 %v1149
        %v1308 = vpop.f32.mrb[0].mxu0
        %v1309 = vadd.f32 %v1017, %v1308
        %v1310 = vpop.f32.mrb[0].mxu0
        %v1311 = vpop.f32.mrb[0].mxu0
        %v1312 = vadd.f32 %v1020, %v1311
        %v1313 = vpop.f32.mrb[0].mxu0
        %1314 = vdwg.mxu0
        %s1315 = scalar_lea.vmem %s1, 4
        %v1316 = vld [vmem:[%s1315] sm:$0x3]
        %vm1349 = vcmask 1042432
        %vm1350 = vcmask 1046532
        %vm1351 = vmor %vm1349, %vm1350
        %v1352 = vrot.slane %v225, 5
        %v1353 = vrot.slane %v1352, 4
        %v1354 = vrot.slane %v178, 5
        %v1355 = vsel %vm1351, %v1353, %v1354
        %v1356 = vrot.slane %v1354, 4
        %v1357 = vrot.slane %v209, 5
        %v1358 = vsel %vm1351, %v1356, %v1357
        %v1359 = vrot.slane %v226, 5
        %v1360 = vrot.slane %v1359, 4
        %v1361 = vrot.slane %v180, 5
        %v1362 = vsel %vm1351, %v1360, %v1361
        %v1363 = vrot.slane %v1361, 4
        %v1364 = vrot.slane %v210, 5
        %v1365 = vsel %vm1351, %v1363, %v1364
        %v1366 = vrot.slane %v227, 5
        %v1367 = vrot.slane %v1366, 4
        %v1368 = vrot.slane %v182, 5
        %v1369 = vsel %vm1351, %v1367, %v1368
        %v1370 = vrot.slane %v1368, 4
        %v1371 = vrot.slane %v211, 5
        %v1372 = vsel %vm1351, %v1370, %v1371
        %v1373 = vrot.slane %v228, 5
        %v1374 = vrot.slane %v1373, 4
        %v1375 = vrot.slane %v184, 5
        %v1376 = vsel %vm1351, %v1374, %v1375
        %v1377 = vrot.slane %v1375, 4
        %v1378 = vrot.slane %v212, 5
        %v1379 = vsel %vm1351, %v1377, %v1378
        %v1380 = vrot.slane %v229, 5
        %v1381 = vrot.slane %v1380, 4
        %v1382 = vrot.slane %v186, 5
        %v1383 = vsel %vm1351, %v1381, %v1382
        %v1384 = vrot.slane %v1382, 4
        %v1385 = vrot.slane %v213, 5
        %v1386 = vsel %vm1351, %v1384, %v1385
        %v1387 = vrot.slane %v230, 5
        %v1388 = vrot.slane %v1387, 4
        %v1389 = vrot.slane %v188, 5
        %v1390 = vsel %vm1351, %v1388, %v1389
        %v1391 = vrot.slane %v1389, 4
        %v1392 = vrot.slane %v214, 5
        %v1393 = vsel %vm1351, %v1391, %v1392
        %v1394 = vrot.slane %v231, 5
        %v1395 = vrot.slane %v1394, 4
        %v1396 = vrot.slane %v190, 5
        %v1397 = vsel %vm1351, %v1395, %v1396
        %v1398 = vrot.slane %v1396, 4
        %v1399 = vrot.slane %v215, 5
        %v1400 = vsel %vm1351, %v1398, %v1399
        %v1401 = vrot.slane %v232, 5
        %v1402 = vrot.slane %v1401, 4
        %v1403 = vrot.slane %v192, 5
        %v1404 = vsel %vm1351, %v1402, %v1403
        %v1405 = vrot.slane %v1403, 4
        %v1406 = vrot.slane %v216, 5
        %v1407 = vsel %vm1351, %v1405, %v1406
        %v1408 = vrot.slane %v233, 5
        %v1409 = vrot.slane %v1408, 4
        %v1410 = vrot.slane %v194, 5
        %v1411 = vsel %vm1351, %v1409, %v1410
        %v1412 = vrot.slane %v1410, 4
        %v1413 = vrot.slane %v217, 5
        %v1414 = vsel %vm1351, %v1412, %v1413
        %v1415 = vrot.slane %v234, 5
        %v1416 = vrot.slane %v1415, 4
        %v1417 = vrot.slane %v196, 5
        %v1418 = vsel %vm1351, %v1416, %v1417
        %v1419 = vrot.slane %v1417, 4
        %v1420 = vrot.slane %v218, 5
        %v1421 = vsel %vm1351, %v1419, %v1420
        %v1422 = vrot.slane %v235, 5
        %v1423 = vrot.slane %v1422, 4
        %v1424 = vrot.slane %v198, 5
        %v1425 = vsel %vm1351, %v1423, %v1424
        %v1426 = vrot.slane %v1424, 4
        %v1427 = vrot.slane %v219, 5
        %v1428 = vsel %vm1351, %v1426, %v1427
        %v1429 = vrot.slane %v236, 5
        %v1430 = vrot.slane %v1429, 4
        %v1431 = vrot.slane %v200, 5
        %v1432 = vsel %vm1351, %v1430, %v1431
        %v1433 = vrot.slane %v1431, 4
        %v1434 = vrot.slane %v220, 5
        %v1435 = vsel %vm1351, %v1433, %v1434
        %v1436 = vrot.slane %v237, 5
        %v1437 = vrot.slane %v1436, 4
        %v1438 = vrot.slane %v202, 5
        %v1439 = vsel %vm1351, %v1437, %v1438
        %v1440 = vrot.slane %v1438, 4
        %v1441 = vrot.slane %v221, 5
        %v1442 = vsel %vm1351, %v1440, %v1441
        %v1443 = vrot.slane %v238, 5
        %v1444 = vrot.slane %v1443, 4
        %v1445 = vrot.slane %v204, 5
        %v1446 = vsel %vm1351, %v1444, %v1445
        %v1447 = vrot.slane %v1445, 4
        %v1448 = vrot.slane %v222, 5
        %v1449 = vsel %vm1351, %v1447, %v1448
        %v1450 = vrot.slane %v239, 5
        %v1451 = vrot.slane %v1450, 4
        %v1452 = vrot.slane %v206, 5
        %v1453 = vsel %vm1351, %v1451, %v1452
        %v1454 = vrot.slane %v1452, 4
        %v1455 = vrot.slane %v223, 5
        %v1456 = vsel %vm1351, %v1454, %v1455
        %v1457 = vrot.slane %v240, 5
        %v1458 = vrot.slane %v1457, 4
        %v1459 = vrot.slane %v208, 5
        %v1460 = vsel %vm1351, %v1458, %v1459
        %v1461 = vrot.slane %v1459, 4
        %v1462 = vrot.slane %v224, 5
        %v1463 = vsel %vm1351, %v1461, %v1462
        %v1464 = vunpack.c.l.b16 %v1355
        %v1465 = vunpack.c.l.b16 %v1358
        %v1466 = vunpack.c.l.b16 %v1362
        %v1467 = vunpack.c.l.b16 %v1365
        %v1468 = vunpack.c.l.b16 %v1369
        %v1469 = vunpack.c.l.b16 %v1372
        %v1470 = vunpack.c.l.b16 %v1376
        %v1471 = vunpack.c.l.b16 %v1379
        %v1472 = vunpack.c.l.b16 %v1383
        %v1473 = vunpack.c.l.b16 %v1386
        %v1474 = vunpack.c.l.b16 %v1390
        %v1475 = vunpack.c.l.b16 %v1393
        %v1476 = vunpack.c.l.b16 %v1397
        %v1477 = vunpack.c.l.b16 %v1400
        %v1478 = vunpack.c.l.b16 %v1404
        %v1479 = vunpack.c.l.b16 %v1407
        %v1480 = vunpack.c.l.b16 %v1411
        %v1481 = vunpack.c.l.b16 %v1414
        %v1482 = vunpack.c.l.b16 %v1418
        %v1483 = vunpack.c.l.b16 %v1421
        %v1484 = vunpack.c.l.b16 %v1425
        %v1485 = vunpack.c.l.b16 %v1428
        %v1486 = vunpack.c.l.b16 %v1432
        %v1487 = vunpack.c.l.b16 %v1435
        %v1488 = vunpack.c.l.b16 %v1439
        %v1489 = vunpack.c.l.b16 %v1442
        %v1490 = vunpack.c.l.b16 %v1446
        %v1491 = vunpack.c.l.b16 %v1449
        %v1492 = vunpack.c.l.b16 %v1453
        %v1493 = vunpack.c.l.b16 %v1456
        %v1494 = vunpack.c.l.b16 %v1460
        %v1495 = vunpack.c.l.b16 %v1463
        %v1496 = vpack.c.b16 %v1465, %v1464
        %v1497 = vpack.c.b16 %v1467, %v1466
        %v1498 = vpack.c.b16 %v1469, %v1468
        %v1499 = vpack.c.b16 %v1471, %v1470
        %v1500 = vpack.c.b16 %v1473, %v1472
        %v1501 = vpack.c.b16 %v1475, %v1474
        %v1502 = vpack.c.b16 %v1477, %v1476
        %v1503 = vpack.c.b16 %v1479, %v1478
        %v1504 = vpack.c.b16 %v1481, %v1480
        %v1505 = vpack.c.b16 %v1483, %v1482
        %v1506 = vpack.c.b16 %v1485, %v1484
        %v1507 = vpack.c.b16 %v1487, %v1486
        %v1508 = vpack.c.b16 %v1489, %v1488
        %v1509 = vpack.c.b16 %v1491, %v1490
        %v1510 = vpack.c.b16 %v1493, %v1492
        %v1511 = vpack.c.b16 %v1495, %v1494
        %v1513 = vsel %vm809, %v1496, 0
        %v1516 = vsel %vm809, %v1497, 0
        %v1519 = vsel %vm809, %v1498, 0
        %v1522 = vsel %vm809, %v1499, 0
        %v1525 = vsel %vm809, %v1500, 0
        %v1528 = vsel %vm809, %v1501, 0
        %v1531 = vsel %vm809, %v1502, 0
        %v1534 = vsel %vm809, %v1503, 0
        %v1537 = vsel %vm809, %v1504, 0
        %v1540 = vsel %vm809, %v1505, 0
        %v1543 = vsel %vm809, %v1506, 0
        %v1546 = vsel %vm809, %v1507, 0
        %v1549 = vsel %vm809, %v1508, 0
        %v1552 = vsel %vm809, %v1509, 0
        %v1555 = vsel %vm809, %v1510, 0
        %v1558 = vsel %vm809, %v1511, 0
        %v1561 = vsel %vm858, %v1316, 0
        %1563 = vmatprep.subr.bf16.mxu0 0
        %1564 = vmatpush1.bf16.msra.mxu0 %v1561
        %1565 = vmatprep.subr.bf16.mxu0 0
        %1566 = vmatpush1.bf16.msra.mxu0 0
        %1567 = vmatprep.subr.bf16.mxu0 0
        %1568 = vmatpush1.bf16.msra.mxu0 0
        %1569 = vmatprep.subr.bf16.mxu0 0
        %1570 = vmatpush1.bf16.msra.mxu0 0
        %1571 = vmatprep.subr.bf16.mxu0 0
        %1572 = vmatpush1.bf16.msra.mxu0 0
        %1573 = vmatprep.subr.bf16.mxu0 0
        %1574 = vmatpush1.bf16.msra.mxu0 0
        %1575 = vmatprep.subr.bf16.mxu0 0
        %1576 = vmatpush1.bf16.msra.mxu0 0
        %1577 = vmatprep.subr.bf16.mxu0 0
        %1578 = vmatpush1.bf16.msra.mxu0 0
        %1579 = vmatprep.subr.bf16.mxu0 0
        %1580 = vmatpush1.bf16.msra.mxu0 0
        %1581 = vmatprep.subr.bf16.mxu0 0
        %1582 = vmatpush1.bf16.msra.mxu0 0
        %1583 = vmatprep.subr.bf16.mxu0 0
        %1584 = vmatpush1.bf16.msra.mxu0 0
        %1585 = vmatprep.subr.bf16.mxu0 0
        %1586 = vmatpush1.bf16.msra.mxu0 0
        %1587 = vmatprep.subr.bf16.mxu0 0
        %1588 = vmatpush1.bf16.msra.mxu0 0
        %1589 = vmatprep.subr.bf16.mxu0 0
        %1590 = vmatpush1.bf16.msra.mxu0 0
        %1591 = vmatprep.subr.bf16.mxu0 0
        %1592 = vmatpush1.bf16.msra.mxu0 0
        %1593 = vmatprep.subr.bf16.mxu0 0
        %1594 = vmatpush1.bf16.msra.mxu0 0
        %1595 = vmatprep.mubr.bf16.mxu0 0
        %1596 = vmatmul.mubr.bf16.gmra.mrb[0].mxu0 %v1513
        %v1597 = vpop.f32.mrb[0].mxu0
        %v1598 = vadd.f32 0.0, %v1597
        %v1599 = vpop.f32.mrb[0].mxu0
        %v1600 = vpop.f32.mrb[0].mxu0
        %v1601 = vadd.f32 0.0, %v1600
        %v1602 = vpop.f32.mrb[0].mxu0
        %1603 = vmatprep.mubr.bf16.mxu0 0
        %1604 = vmatmul.mubr.bf16.gmra.mrb[0].mxu0 %v1516
        %v1605 = vpop.f32.mrb[0].mxu0
        %v1606 = vadd.f32 0.0, %v1605
        %v1607 = vpop.f32.mrb[0].mxu0
        %v1608 = vpop.f32.mrb[0].mxu0
        %v1609 = vadd.f32 0.0, %v1608
        %v1610 = vpop.f32.mrb[0].mxu0
        %1611 = vmatprep.mubr.bf16.mxu0 0
        %1612 = vmatmul.mubr.bf16.gmra.mrb[0].mxu0 %v1519
        %v1613 = vpop.f32.mrb[0].mxu0
        %v1614 = vadd.f32 0.0, %v1613
        %v1615 = vpop.f32.mrb[0].mxu0
        %v1616 = vpop.f32.mrb[0].mxu0
        %v1617 = vadd.f32 0.0, %v1616
        %v1618 = vpop.f32.mrb[0].mxu0
        %1619 = vmatprep.mubr.bf16.mxu0 0
        %1620 = vmatmul.mubr.bf16.gmra.mrb[0].mxu0 %v1522
        %v1621 = vpop.f32.mrb[0].mxu0
        %v1622 = vadd.f32 0.0, %v1621
        %v1623 = vpop.f32.mrb[0].mxu0
        %v1624 = vpop.f32.mrb[0].mxu0
        %v1625 = vadd.f32 0.0, %v1624
        %v1626 = vpop.f32.mrb[0].mxu0
        %1627 = vmatprep.mubr.bf16.mxu0 0
        %1628 = vmatmul.mubr.bf16.gmra.mrb[0].mxu0 %v1525
        %v1629 = vpop.f32.mrb[0].mxu0
        %v1630 = vadd.f32 0.0, %v1629
        %v1631 = vpop.f32.mrb[0].mxu0
        %v1632 = vpop.f32.mrb[0].mxu0
        %v1633 = vadd.f32 0.0, %v1632
        %v1634 = vpop.f32.mrb[0].mxu0
        %1635 = vmatprep.mubr.bf16.mxu0 0
        %1636 = vmatmul.mubr.bf16.gmra.mrb[0].mxu0 %v1528
        %v1637 = vpop.f32.mrb[0].mxu0
        %v1638 = vadd.f32 0.0, %v1637
        %v1639 = vpop.f32.mrb[0].mxu0
        %v1640 = vpop.f32.mrb[0].mxu0
        %v1641 = vadd.f32 0.0, %v1640
        %v1642 = vpop.f32.mrb[0].mxu0
        %1643 = vmatprep.mubr.bf16.mxu0 0
        %1644 = vmatmul.mubr.bf16.gmra.mrb[0].mxu0 %v1531
        %v1645 = vpop.f32.mrb[0].mxu0
        %v1646 = vadd.f32 0.0, %v1645
        %v1647 = vpop.f32.mrb[0].mxu0
        %v1648 = vpop.f32.mrb[0].mxu0
        %v1649 = vadd.f32 0.0, %v1648
        %v1650 = vpop.f32.mrb[0].mxu0
        %1651 = vmatprep.mubr.bf16.mxu0 0
        %1652 = vmatmul.mubr.bf16.gmra.mrb[0].mxu0 %v1534
        %v1653 = vpop.f32.mrb[0].mxu0
        %v1654 = vadd.f32 0.0, %v1653
        %v1655 = vpop.f32.mrb[0].mxu0
        %v1656 = vpop.f32.mrb[0].mxu0
        %v1657 = vadd.f32 0.0, %v1656
        %v1658 = vpop.f32.mrb[0].mxu0
        %1659 = vmatprep.mubr.bf16.mxu0 0
        %1660 = vmatmul.mubr.bf16.gmra.mrb[0].mxu0 %v1537
        %v1661 = vpop.f32.mrb[0].mxu0
        %v1662 = vadd.f32 0.0, %v1661
        %v1663 = vpop.f32.mrb[0].mxu0
        %v1664 = vpop.f32.mrb[0].mxu0
        %v1665 = vadd.f32 0.0, %v1664
        %v1666 = vpop.f32.mrb[0].mxu0
        %1667 = vmatprep.mubr.bf16.mxu0 0
        %1668 = vmatmul.mubr.bf16.gmra.mrb[0].mxu0 %v1540
        %v1669 = vpop.f32.mrb[0].mxu0
        %v1670 = vadd.f32 0.0, %v1669
        %v1671 = vpop.f32.mrb[0].mxu0
        %v1672 = vpop.f32.mrb[0].mxu0
        %v1673 = vadd.f32 0.0, %v1672
        %v1674 = vpop.f32.mrb[0].mxu0
        %1675 = vmatprep.mubr.bf16.mxu0 0
        %1676 = vmatmul.mubr.bf16.gmra.mrb[0].mxu0 %v1543
        %v1677 = vpop.f32.mrb[0].mxu0
        %v1678 = vadd.f32 0.0, %v1677
        %v1679 = vpop.f32.mrb[0].mxu0
        %v1680 = vpop.f32.mrb[0].mxu0
        %v1681 = vadd.f32 0.0, %v1680
        %v1682 = vpop.f32.mrb[0].mxu0
        %1683 = vmatprep.mubr.bf16.mxu0 0
        %1684 = vmatmul.mubr.bf16.gmra.mrb[0].mxu0 %v1546
        %v1685 = vpop.f32.mrb[0].mxu0
        %v1686 = vadd.f32 0.0, %v1685
        %v1687 = vpop.f32.mrb[0].mxu0
        %v1688 = vpop.f32.mrb[0].mxu0
        %v1689 = vadd.f32 0.0, %v1688
        %v1690 = vpop.f32.mrb[0].mxu0
        %1691 = vmatprep.mubr.bf16.mxu0 0
        %1692 = vmatmul.mubr.bf16.gmra.mrb[0].mxu0 %v1549
        %v1693 = vpop.f32.mrb[0].mxu0
        %v1694 = vadd.f32 0.0, %v1693
        %v1695 = vpop.f32.mrb[0].mxu0
        %v1696 = vpop.f32.mrb[0].mxu0
        %v1697 = vadd.f32 0.0, %v1696
        %v1698 = vpop.f32.mrb[0].mxu0
        %1699 = vmatprep.mubr.bf16.mxu0 0
        %1700 = vmatmul.mubr.bf16.gmra.mrb[0].mxu0 %v1552
        %v1701 = vpop.f32.mrb[0].mxu0
        %v1702 = vadd.f32 0.0, %v1701
        %v1703 = vpop.f32.mrb[0].mxu0
        %v1704 = vpop.f32.mrb[0].mxu0
        %v1705 = vadd.f32 0.0, %v1704
        %v1706 = vpop.f32.mrb[0].mxu0
        %1707 = vmatprep.mubr.bf16.mxu0 0
        %1708 = vmatmul.mubr.bf16.gmra.mrb[0].mxu0 %v1555
        %v1709 = vpop.f32.mrb[0].mxu0
        %v1710 = vadd.f32 0.0, %v1709
        %v1711 = vpop.f32.mrb[0].mxu0
        %v1712 = vpop.f32.mrb[0].mxu0
        %v1713 = vadd.f32 0.0, %v1712
        %v1714 = vpop.f32.mrb[0].mxu0
        %1715 = vmatprep.mubr.bf16.mxu0 0
        %1716 = vmatmul.mubr.bf16.gmra.mrb[0].mxu0 %v1558
        %v1717 = vpop.f32.mrb[0].mxu0
        %v1718 = vadd.f32 0.0, %v1717
        %v1719 = vpop.f32.mrb[0].mxu0
        %v1720 = vpop.f32.mrb[0].mxu0
        %v1721 = vadd.f32 0.0, %v1720
        %v1722 = vpop.f32.mrb[0].mxu0
        %1723 = vdwg.mxu0
        %v1724 = vadd.f32 %v1189, %v1598
        %v1725 = vadd.f32 %v1192, %v1601
        %v1726 = vadd.f32 %v1197, %v1606
        %v1727 = vadd.f32 %v1200, %v1609
        %v1728 = vadd.f32 %v1205, %v1614
        %v1729 = vadd.f32 %v1208, %v1617
        %v1730 = vadd.f32 %v1213, %v1622
        %v1731 = vadd.f32 %v1216, %v1625
        %v1732 = vadd.f32 %v1221, %v1630
        %v1733 = vadd.f32 %v1224, %v1633
        %v1734 = vadd.f32 %v1229, %v1638
        %v1735 = vadd.f32 %v1232, %v1641
        %v1736 = vadd.f32 %v1237, %v1646
        %v1737 = vadd.f32 %v1240, %v1649
        %v1738 = vadd.f32 %v1245, %v1654
        %v1739 = vadd.f32 %v1248, %v1657
        %v1740 = vadd.f32 %v1253, %v1662
        %v1741 = vadd.f32 %v1256, %v1665
        %v1742 = vadd.f32 %v1261, %v1670
        %v1743 = vadd.f32 %v1264, %v1673
        %v1744 = vadd.f32 %v1269, %v1678
        %v1745 = vadd.f32 %v1272, %v1681
        %v1746 = vadd.f32 %v1277, %v1686
        %v1747 = vadd.f32 %v1280, %v1689
        %v1748 = vadd.f32 %v1285, %v1694
        %v1749 = vadd.f32 %v1288, %v1697
        %v1750 = vadd.f32 %v1293, %v1702
        %v1751 = vadd.f32 %v1296, %v1705
        %v1752 = vadd.f32 %v1301, %v1710
        %v1753 = vadd.f32 %v1304, %v1713
        %v1754 = vadd.f32 %v1309, %v1718
        %v1755 = vadd.f32 %v1312, %v1721
        %s1756 = scalar_lea.vmem %s1, 6
        %v1757 = vld [vmem:[%s1756] sm:$0x3]
        %v1790 = vunpack.c.l.b16 %v242
        %v1791 = vunpack.c.l.b16 %v243
        %v1792 = vunpack.c.l.b16 %v244
        %v1793 = vunpack.c.l.b16 %v245
        %v1794 = vunpack.c.l.b16 %v246
        %v1795 = vunpack.c.l.b16 %v247
        %v1796 = vunpack.c.l.b16 %v248
        %v1797 = vunpack.c.l.b16 %v249
        %v1798 = vunpack.c.l.b16 %v250
        %v1799 = vunpack.c.l.b16 %v251
        %v1800 = vunpack.c.l.b16 %v252
        %v1801 = vunpack.c.l.b16 %v253
        %v1802 = vunpack.c.l.b16 %v254
        %v1803 = vunpack.c.l.b16 %v255
        %v1804 = vunpack.c.l.b16 %v256
        %v1805 = vunpack.c.l.b16 %v257
        %v1806 = vunpack.c.l.b16 %v258
        %v1807 = vunpack.c.l.b16 %v259
        %v1808 = vunpack.c.l.b16 %v260
        %v1809 = vunpack.c.l.b16 %v261
        %v1810 = vunpack.c.l.b16 %v262
        %v1811 = vunpack.c.l.b16 %v263
        %v1812 = vunpack.c.l.b16 %v264
        %v1813 = vunpack.c.l.b16 %v265
        %v1814 = vunpack.c.l.b16 %v266
        %v1815 = vunpack.c.l.b16 %v267
        %v1816 = vunpack.c.l.b16 %v268
        %v1817 = vunpack.c.l.b16 %v269
        %v1818 = vunpack.c.l.b16 %v270
        %v1819 = vunpack.c.l.b16 %v271
        %v1820 = vunpack.c.l.b16 %v272
        %v1821 = vunpack.c.l.b16 %v273
        %v1822 = vpack.c.b16 %v1791, %v1790
        %v1823 = vpack.c.b16 %v1793, %v1792
        %v1824 = vpack.c.b16 %v1795, %v1794
        %v1825 = vpack.c.b16 %v1797, %v1796
        %v1826 = vpack.c.b16 %v1799, %v1798
        %v1827 = vpack.c.b16 %v1801, %v1800
        %v1828 = vpack.c.b16 %v1803, %v1802
        %v1829 = vpack.c.b16 %v1805, %v1804
        %v1830 = vpack.c.b16 %v1807, %v1806
        %v1831 = vpack.c.b16 %v1809, %v1808
        %v1832 = vpack.c.b16 %v1811, %v1810
        %v1833 = vpack.c.b16 %v1813, %v1812
        %v1834 = vpack.c.b16 %v1815, %v1814
        %v1835 = vpack.c.b16 %v1817, %v1816
        %v1836 = vpack.c.b16 %v1819, %v1818
        %v1837 = vpack.c.b16 %v1821, %v1820
        %v1839 = vsel %vm809, %v1822, 0
        %v1842 = vsel %vm809, %v1823, 0
        %v1845 = vsel %vm809, %v1824, 0
        %v1848 = vsel %vm809, %v1825, 0
        %v1851 = vsel %vm809, %v1826, 0
        %v1854 = vsel %vm809, %v1827, 0
        %v1857 = vsel %vm809, %v1828, 0
        %v1860 = vsel %vm809, %v1829, 0
        %v1863 = vsel %vm809, %v1830, 0
        %v1866 = vsel %vm809, %v1831, 0
        %v1869 = vsel %vm809, %v1832, 0
        %v1872 = vsel %vm809, %v1833, 0
        %v1875 = vsel %vm809, %v1834, 0
        %v1878 = vsel %vm809, %v1835, 0
        %v1881 = vsel %vm809, %v1836, 0
        %v1884 = vsel %vm809, %v1837, 0
        %v1887 = vsel %vm858, %v1757, 0
        %1889 = vmatprep.subr.bf16.mxu0 0
        %1890 = vmatpush1.bf16.msra.mxu0 %v1887
        %1891 = vmatprep.subr.bf16.mxu0 0
        %1892 = vmatpush1.bf16.msra.mxu0 0
        %1893 = vmatprep.subr.bf16.mxu0 0
        %1894 = vmatpush1.bf16.msra.mxu0 0
        %1895 = vmatprep.subr.bf16.mxu0 0
        %1896 = vmatpush1.bf16.msra.mxu0 0
        %1897 = vmatprep.subr.bf16.mxu0 0
        %1898 = vmatpush1.bf16.msra.mxu0 0
        %1899 = vmatprep.subr.bf16.mxu0 0
        %1900 = vmatpush1.bf16.msra.mxu0 0
        %1901 = vmatprep.subr.bf16.mxu0 0
        %1902 = vmatpush1.bf16.msra.mxu0 0
        %1903 = vmatprep.subr.bf16.mxu0 0
        %1904 = vmatpush1.bf16.msra.mxu0 0
        %1905 = vmatprep.subr.bf16.mxu0 0
        %1906 = vmatpush1.bf16.msra.mxu0 0
        %1907 = vmatprep.subr.bf16.mxu0 0
        %1908 = vmatpush1.bf16.msra.mxu0 0
        %1909 = vmatprep.subr.bf16.mxu0 0
        %1910 = vmatpush1.bf16.msra.mxu0 0
        %1911 = vmatprep.subr.bf16.mxu0 0
        %1912 = vmatpush1.bf16.msra.mxu0 0
        %1913 = vmatprep.subr.bf16.mxu0 0
        %1914 = vmatpush1.bf16.msra.mxu0 0
        %1915 = vmatprep.subr.bf16.mxu0 0
        %1916 = vmatpush1.bf16.msra.mxu0 0
        %1917 = vmatprep.subr.bf16.mxu0 0
        %1918 = vmatpush1.bf16.msra.mxu0 0
        %1919 = vmatprep.subr.bf16.mxu0 0
        %1920 = vmatpush1.bf16.msra.mxu0 0
        %1921 = vmatprep.mubr.bf16.mxu0 0
        %1922 = vmatmul.mubr.bf16.gmra.mrb[0].mxu0 %v1839
        %v1923 = vpop.f32.mrb[0].mxu0
        %v1924 = vadd.f32 0.0, %v1923
        %v1925 = vpop.f32.mrb[0].mxu0
        %v1926 = vpop.f32.mrb[0].mxu0
        %v1927 = vadd.f32 0.0, %v1926
        %v1928 = vpop.f32.mrb[0].mxu0
        %1929 = vmatprep.mubr.bf16.mxu0 0
        %1930 = vmatmul.mubr.bf16.gmra.mrb[0].mxu0 %v1842
        %v1931 = vpop.f32.mrb[0].mxu0
        %v1932 = vadd.f32 0.0, %v1931
        %v1933 = vpop.f32.mrb[0].mxu0
        %v1934 = vpop.f32.mrb[0].mxu0
        %v1935 = vadd.f32 0.0, %v1934
        %v1936 = vpop.f32.mrb[0].mxu0
        %1937 = vmatprep.mubr.bf16.mxu0 0
        %1938 = vmatmul.mubr.bf16.gmra.mrb[0].mxu0 %v1845
        %v1939 = vpop.f32.mrb[0].mxu0
        %v1940 = vadd.f32 0.0, %v1939
        %v1941 = vpop.f32.mrb[0].mxu0
        %v1942 = vpop.f32.mrb[0].mxu0
        %v1943 = vadd.f32 0.0, %v1942
        %v1944 = vpop.f32.mrb[0].mxu0
        %1945 = vmatprep.mubr.bf16.mxu0 0
        %1946 = vmatmul.mubr.bf16.gmra.mrb[0].mxu0 %v1848
        %v1947 = vpop.f32.mrb[0].mxu0
        %v1948 = vadd.f32 0.0, %v1947
        %v1949 = vpop.f32.mrb[0].mxu0
        %v1950 = vpop.f32.mrb[0].mxu0
        %v1951 = vadd.f32 0.0, %v1950
        %v1952 = vpop.f32.mrb[0].mxu0
        %1953 = vmatprep.mubr.bf16.mxu0 0
        %1954 = vmatmul.mubr.bf16.gmra.mrb[0].mxu0 %v1851
        %v1955 = vpop.f32.mrb[0].mxu0
        %v1956 = vadd.f32 0.0, %v1955
        %v1957 = vpop.f32.mrb[0].mxu0
        %v1958 = vpop.f32.mrb[0].mxu0
        %v1959 = vadd.f32 0.0, %v1958
        %v1960 = vpop.f32.mrb[0].mxu0
        %1961 = vmatprep.mubr.bf16.mxu0 0
        %1962 = vmatmul.mubr.bf16.gmra.mrb[0].mxu0 %v1854
        %v1963 = vpop.f32.mrb[0].mxu0
        %v1964 = vadd.f32 0.0, %v1963
        %v1965 = vpop.f32.mrb[0].mxu0
        %v1966 = vpop.f32.mrb[0].mxu0
        %v1967 = vadd.f32 0.0, %v1966
        %v1968 = vpop.f32.mrb[0].mxu0
        %1969 = vmatprep.mubr.bf16.mxu0 0
        %1970 = vmatmul.mubr.bf16.gmra.mrb[0].mxu0 %v1857
        %v1971 = vpop.f32.mrb[0].mxu0
        %v1972 = vadd.f32 0.0, %v1971
        %v1973 = vpop.f32.mrb[0].mxu0
        %v1974 = vpop.f32.mrb[0].mxu0
        %v1975 = vadd.f32 0.0, %v1974
        %v1976 = vpop.f32.mrb[0].mxu0
        %1977 = vmatprep.mubr.bf16.mxu0 0
        %1978 = vmatmul.mubr.bf16.gmra.mrb[0].mxu0 %v1860
        %v1979 = vpop.f32.mrb[0].mxu0
        %v1980 = vadd.f32 0.0, %v1979
        %v1981 = vpop.f32.mrb[0].mxu0
        %v1982 = vpop.f32.mrb[0].mxu0
        %v1983 = vadd.f32 0.0, %v1982
        %v1984 = vpop.f32.mrb[0].mxu0
        %1985 = vmatprep.mubr.bf16.mxu0 0
        %1986 = vmatmul.mubr.bf16.gmra.mrb[0].mxu0 %v1863
        %v1987 = vpop.f32.mrb[0].mxu0
        %v1988 = vadd.f32 0.0, %v1987
        %v1989 = vpop.f32.mrb[0].mxu0
        %v1990 = vpop.f32.mrb[0].mxu0
        %v1991 = vadd.f32 0.0, %v1990
        %v1992 = vpop.f32.mrb[0].mxu0
        %1993 = vmatprep.mubr.bf16.mxu0 0
        %1994 = vmatmul.mubr.bf16.gmra.mrb[0].mxu0 %v1866
        %v1995 = vpop.f32.mrb[0].mxu0
        %v1996 = vadd.f32 0.0, %v1995
        %v1997 = vpop.f32.mrb[0].mxu0
        %v1998 = vpop.f32.mrb[0].mxu0
        %v1999 = vadd.f32 0.0, %v1998
        %v2000 = vpop.f32.mrb[0].mxu0
        %2001 = vmatprep.mubr.bf16.mxu0 0
        %2002 = vmatmul.mubr.bf16.gmra.mrb[0].mxu0 %v1869
        %v2003 = vpop.f32.mrb[0].mxu0
        %v2004 = vadd.f32 0.0, %v2003
        %v2005 = vpop.f32.mrb[0].mxu0
        %v2006 = vpop.f32.mrb[0].mxu0
        %v2007 = vadd.f32 0.0, %v2006
        %v2008 = vpop.f32.mrb[0].mxu0
        %2009 = vmatprep.mubr.bf16.mxu0 0
        %2010 = vmatmul.mubr.bf16.gmra.mrb[0].mxu0 %v1872
        %v2011 = vpop.f32.mrb[0].mxu0
        %v2012 = vadd.f32 0.0, %v2011
        %v2013 = vpop.f32.mrb[0].mxu0
        %v2014 = vpop.f32.mrb[0].mxu0
        %v2015 = vadd.f32 0.0, %v2014
        %v2016 = vpop.f32.mrb[0].mxu0
        %2017 = vmatprep.mubr.bf16.mxu0 0
        %2018 = vmatmul.mubr.bf16.gmra.mrb[0].mxu0 %v1875
        %v2019 = vpop.f32.mrb[0].mxu0
        %v2020 = vadd.f32 0.0, %v2019
        %v2021 = vpop.f32.mrb[0].mxu0
        %v2022 = vpop.f32.mrb[0].mxu0
        %v2023 = vadd.f32 0.0, %v2022
        %v2024 = vpop.f32.mrb[0].mxu0
        %2025 = vmatprep.mubr.bf16.mxu0 0
        %2026 = vmatmul.mubr.bf16.gmra.mrb[0].mxu0 %v1878
        %v2027 = vpop.f32.mrb[0].mxu0
        %v2028 = vadd.f32 0.0, %v2027
        %v2029 = vpop.f32.mrb[0].mxu0
        %v2030 = vpop.f32.mrb[0].mxu0
        %v2031 = vadd.f32 0.0, %v2030
        %v2032 = vpop.f32.mrb[0].mxu0
        %2033 = vmatprep.mubr.bf16.mxu0 0
        %2034 = vmatmul.mubr.bf16.gmra.mrb[0].mxu0 %v1881
        %v2035 = vpop.f32.mrb[0].mxu0
        %v2036 = vadd.f32 0.0, %v2035
        %v2037 = vpop.f32.mrb[0].mxu0
        %v2038 = vpop.f32.mrb[0].mxu0
        %v2039 = vadd.f32 0.0, %v2038
        %v2040 = vpop.f32.mrb[0].mxu0
        %2041 = vmatprep.mubr.bf16.mxu0 0
        %2042 = vmatmul.mubr.bf16.gmra.mrb[0].mxu0 %v1884
        %v2043 = vpop.f32.mrb[0].mxu0
        %v2044 = vadd.f32 0.0, %v2043
        %v2045 = vpop.f32.mrb[0].mxu0
        %v2046 = vpop.f32.mrb[0].mxu0
        %v2047 = vadd.f32 0.0, %v2046
        %v2048 = vpop.f32.mrb[0].mxu0
        %2049 = vdwg.mxu0
        %v2050 = vadd.f32 %v1724, %v1924
        %v2051 = vadd.f32 %v1725, %v1927
        %v2052 = vadd.f32 %v1726, %v1932
        %v2053 = vadd.f32 %v1727, %v1935
        %v2054 = vadd.f32 %v1728, %v1940
        %v2055 = vadd.f32 %v1729, %v1943
        %v2056 = vadd.f32 %v1730, %v1948
        %v2057 = vadd.f32 %v1731, %v1951
        %v2058 = vadd.f32 %v1732, %v1956
        %v2059 = vadd.f32 %v1733, %v1959
        %v2060 = vadd.f32 %v1734, %v1964
        %v2061 = vadd.f32 %v1735, %v1967
        %v2062 = vadd.f32 %v1736, %v1972
        %v2063 = vadd.f32 %v1737, %v1975
        %v2064 = vadd.f32 %v1738, %v1980
        %v2065 = vadd.f32 %v1739, %v1983
        %v2066 = vadd.f32 %v1740, %v1988
        %v2067 = vadd.f32 %v1741, %v1991
        %v2068 = vadd.f32 %v1742, %v1996
        %v2069 = vadd.f32 %v1743, %v1999
        %v2070 = vadd.f32 %v1744, %v2004
        %v2071 = vadd.f32 %v1745, %v2007
        %v2072 = vadd.f32 %v1746, %v2012
        %v2073 = vadd.f32 %v1747, %v2015
        %v2074 = vadd.f32 %v1748, %v2020
        %v2075 = vadd.f32 %v1749, %v2023
        %v2076 = vadd.f32 %v1750, %v2028
        %v2077 = vadd.f32 %v1751, %v2031
        %v2078 = vadd.f32 %v1752, %v2036
        %v2079 = vadd.f32 %v1753, %v2039
        %v2080 = vadd.f32 %v1754, %v2044
        %v2081 = vadd.f32 %v1755, %v2047
        %s2082 = scalar_lea.vmem %s1, 8
        %v2083 = vld [vmem:[%s2082] sm:$0x3]
        %v2085 = vshrl.u32 %v242, 16
        %v2087 = vrot.slane %v2085, 4
        %v2088 = vshll.u32 %v242, 16
        %v2090 = vrot.slane %v2088, 5
        %v2091 = vor.u32 %v2087, %v2090
        %v2092 = vrot.slane %v2091, 4
        %v2094 = vshll.u32 %v243, 16
        %v2096 = vrot.slane %v2094, 5
        %v2097 = vsel %vm376, %v2092, %v2096
        %v2098 = vshrl.u32 %v243, 16
        %v2100 = vrot.slane %v2098, 4
        %v2101 = vor.u32 %v2100, %v2096
        %v2102 = vrot.slane %v2101, 4
        %v2104 = vshll.u32 %v274, 16
        %v2106 = vrot.slane %v2104, 5
        %v2107 = vsel %vm376, %v2102, %v2106
        %v2109 = vshrl.u32 %v244, 16
        %v2111 = vrot.slane %v2109, 4
        %v2112 = vshll.u32 %v244, 16
        %v2114 = vrot.slane %v2112, 5
        %v2115 = vor.u32 %v2111, %v2114
        %v2116 = vrot.slane %v2115, 4
        %v2118 = vshll.u32 %v245, 16
        %v2120 = vrot.slane %v2118, 5
        %v2121 = vsel %vm376, %v2116, %v2120
        %v2122 = vshrl.u32 %v245, 16
        %v2124 = vrot.slane %v2122, 4
        %v2125 = vor.u32 %v2124, %v2120
        %v2126 = vrot.slane %v2125, 4
        %v2128 = vshll.u32 %v275, 16
        %v2130 = vrot.slane %v2128, 5
        %v2131 = vsel %vm376, %v2126, %v2130
        %v2133 = vshrl.u32 %v246, 16
        %v2135 = vrot.slane %v2133, 4
        %v2136 = vshll.u32 %v246, 16
        %v2138 = vrot.slane %v2136, 5
        %v2139 = vor.u32 %v2135, %v2138
        %v2140 = vrot.slane %v2139, 4
        %v2142 = vshll.u32 %v247, 16
        %v2144 = vrot.slane %v2142, 5
        %v2145 = vsel %vm376, %v2140, %v2144
        %v2146 = vshrl.u32 %v247, 16
        %v2148 = vrot.slane %v2146, 4
        %v2149 = vor.u32 %v2148, %v2144
        %v2150 = vrot.slane %v2149, 4
        %v2152 = vshll.u32 %v276, 16
        %v2154 = vrot.slane %v2152, 5
        %v2155 = vsel %vm376, %v2150, %v2154
        %v2157 = vshrl.u32 %v248, 16
        %v2159 = vrot.slane %v2157, 4
        %v2160 = vshll.u32 %v248, 16
        %v2162 = vrot.slane %v2160, 5
        %v2163 = vor.u32 %v2159, %v2162
        %v2164 = vrot.slane %v2163, 4
        %v2166 = vshll.u32 %v249, 16
        %v2168 = vrot.slane %v2166, 5
        %v2169 = vsel %vm376, %v2164, %v2168
        %v2170 = vshrl.u32 %v249, 16
        %v2172 = vrot.slane %v2170, 4
        %v2173 = vor.u32 %v2172, %v2168
        %v2174 = vrot.slane %v2173, 4
        %v2176 = vshll.u32 %v277, 16
        %v2178 = vrot.slane %v2176, 5
        %v2179 = vsel %vm376, %v2174, %v2178
        %v2181 = vshrl.u32 %v250, 16
        %v2183 = vrot.slane %v2181, 4
        %v2184 = vshll.u32 %v250, 16
        %v2186 = vrot.slane %v2184, 5
        %v2187 = vor.u32 %v2183, %v2186
        %v2188 = vrot.slane %v2187, 4
        %v2190 = vshll.u32 %v251, 16
        %v2192 = vrot.slane %v2190, 5
        %v2193 = vsel %vm376, %v2188, %v2192
        %v2194 = vshrl.u32 %v251, 16
        %v2196 = vrot.slane %v2194, 4
        %v2197 = vor.u32 %v2196, %v2192
        %v2198 = vrot.slane %v2197, 4
        %v2200 = vshll.u32 %v278, 16
        %v2202 = vrot.slane %v2200, 5
        %v2203 = vsel %vm376, %v2198, %v2202
        %v2205 = vshrl.u32 %v252, 16
        %v2207 = vrot.slane %v2205, 4
        %v2208 = vshll.u32 %v252, 16
        %v2210 = vrot.slane %v2208, 5
        %v2211 = vor.u32 %v2207, %v2210
        %v2212 = vrot.slane %v2211, 4
        %v2214 = vshll.u32 %v253, 16
        %v2216 = vrot.slane %v2214, 5
        %v2217 = vsel %vm376, %v2212, %v2216
        %v2218 = vshrl.u32 %v253, 16
        %v2220 = vrot.slane %v2218, 4
        %v2221 = vor.u32 %v2220, %v2216
        %v2222 = vrot.slane %v2221, 4
        %v2224 = vshll.u32 %v279, 16
        %v2226 = vrot.slane %v2224, 5
        %v2227 = vsel %vm376, %v2222, %v2226
        %v2229 = vshrl.u32 %v254, 16
        %v2231 = vrot.slane %v2229, 4
        %v2232 = vshll.u32 %v254, 16
        %v2234 = vrot.slane %v2232, 5
        %v2235 = vor.u32 %v2231, %v2234
        %v2236 = vrot.slane %v2235, 4
        %v2238 = vshll.u32 %v255, 16
        %v2240 = vrot.slane %v2238, 5
        %v2241 = vsel %vm376, %v2236, %v2240
        %v2242 = vshrl.u32 %v255, 16
        %v2244 = vrot.slane %v2242, 4
        %v2245 = vor.u32 %v2244, %v2240
        %v2246 = vrot.slane %v2245, 4
        %v2248 = vshll.u32 %v280, 16
        %v2250 = vrot.slane %v2248, 5
        %v2251 = vsel %vm376, %v2246, %v2250
        %v2253 = vshrl.u32 %v256, 16
        %v2255 = vrot.slane %v2253, 4
        %v2256 = vshll.u32 %v256, 16
        %v2258 = vrot.slane %v2256, 5
        %v2259 = vor.u32 %v2255, %v2258
        %v2260 = vrot.slane %v2259, 4
        %v2262 = vshll.u32 %v257, 16
        %v2264 = vrot.slane %v2262, 5
        %v2265 = vsel %vm376, %v2260, %v2264
        %v2266 = vshrl.u32 %v257, 16
        %v2268 = vrot.slane %v2266, 4
        %v2269 = vor.u32 %v2268, %v2264
        %v2270 = vrot.slane %v2269, 4
        %v2272 = vshll.u32 %v281, 16
        %v2274 = vrot.slane %v2272, 5
        %v2275 = vsel %vm376, %v2270, %v2274
        %v2277 = vshrl.u32 %v258, 16
        %v2279 = vrot.slane %v2277, 4
        %v2280 = vshll.u32 %v258, 16
        %v2282 = vrot.slane %v2280, 5
        %v2283 = vor.u32 %v2279, %v2282
        %v2284 = vrot.slane %v2283, 4
        %v2286 = vshll.u32 %v259, 16
        %v2288 = vrot.slane %v2286, 5
        %v2289 = vsel %vm376, %v2284, %v2288
        %v2290 = vshrl.u32 %v259, 16
        %v2292 = vrot.slane %v2290, 4
        %v2293 = vor.u32 %v2292, %v2288
        %v2294 = vrot.slane %v2293, 4
        %v2296 = vshll.u32 %v282, 16
        %v2298 = vrot.slane %v2296, 5
        %v2299 = vsel %vm376, %v2294, %v2298
        %v2301 = vshrl.u32 %v260, 16
        %v2303 = vrot.slane %v2301, 4
        %v2304 = vshll.u32 %v260, 16
        %v2306 = vrot.slane %v2304, 5
        %v2307 = vor.u32 %v2303, %v2306
        %v2308 = vrot.slane %v2307, 4
        %v2310 = vshll.u32 %v261, 16
        %v2312 = vrot.slane %v2310, 5
        %v2313 = vsel %vm376, %v2308, %v2312
        %v2314 = vshrl.u32 %v261, 16
        %v2316 = vrot.slane %v2314, 4
        %v2317 = vor.u32 %v2316, %v2312
        %v2318 = vrot.slane %v2317, 4
        %v2320 = vshll.u32 %v283, 16
        %v2322 = vrot.slane %v2320, 5
        %v2323 = vsel %vm376, %v2318, %v2322
        %v2325 = vshrl.u32 %v262, 16
        %v2327 = vrot.slane %v2325, 4
        %v2328 = vshll.u32 %v262, 16
        %v2330 = vrot.slane %v2328, 5
        %v2331 = vor.u32 %v2327, %v2330
        %v2332 = vrot.slane %v2331, 4
        %v2334 = vshll.u32 %v263, 16
        %v2336 = vrot.slane %v2334, 5
        %v2337 = vsel %vm376, %v2332, %v2336
        %v2338 = vshrl.u32 %v263, 16
        %v2340 = vrot.slane %v2338, 4
        %v2341 = vor.u32 %v2340, %v2336
        %v2342 = vrot.slane %v2341, 4
        %v2344 = vshll.u32 %v284, 16
        %v2346 = vrot.slane %v2344, 5
        %v2347 = vsel %vm376, %v2342, %v2346
        %v2349 = vshrl.u32 %v264, 16
        %v2351 = vrot.slane %v2349, 4
        %v2352 = vshll.u32 %v264, 16
        %v2354 = vrot.slane %v2352, 5
        %v2355 = vor.u32 %v2351, %v2354
        %v2356 = vrot.slane %v2355, 4
        %v2358 = vshll.u32 %v265, 16
        %v2360 = vrot.slane %v2358, 5
        %v2361 = vsel %vm376, %v2356, %v2360
        %v2362 = vshrl.u32 %v265, 16
        %v2364 = vrot.slane %v2362, 4
        %v2365 = vor.u32 %v2364, %v2360
        %v2366 = vrot.slane %v2365, 4
        %v2368 = vshll.u32 %v285, 16
        %v2370 = vrot.slane %v2368, 5
        %v2371 = vsel %vm376, %v2366, %v2370
        %v2373 = vshrl.u32 %v266, 16
        %v2375 = vrot.slane %v2373, 4
        %v2376 = vshll.u32 %v266, 16
        %v2378 = vrot.slane %v2376, 5
        %v2379 = vor.u32 %v2375, %v2378
        %v2380 = vrot.slane %v2379, 4
        %v2382 = vshll.u32 %v267, 16
        %v2384 = vrot.slane %v2382, 5
        %v2385 = vsel %vm376, %v2380, %v2384
        %v2386 = vshrl.u32 %v267, 16
        %v2388 = vrot.slane %v2386, 4
        %v2389 = vor.u32 %v2388, %v2384
        %v2390 = vrot.slane %v2389, 4
        %v2392 = vshll.u32 %v286, 16
        %v2394 = vrot.slane %v2392, 5
        %v2395 = vsel %vm376, %v2390, %v2394
        %v2397 = vshrl.u32 %v268, 16
        %v2399 = vrot.slane %v2397, 4
        %v2400 = vshll.u32 %v268, 16
        %v2402 = vrot.slane %v2400, 5
        %v2403 = vor.u32 %v2399, %v2402
        %v2404 = vrot.slane %v2403, 4
        %v2406 = vshll.u32 %v269, 16
        %v2408 = vrot.slane %v2406, 5
        %v2409 = vsel %vm376, %v2404, %v2408
        %v2410 = vshrl.u32 %v269, 16
        %v2412 = vrot.slane %v2410, 4
        %v2413 = vor.u32 %v2412, %v2408
        %v2414 = vrot.slane %v2413, 4
        %v2416 = vshll.u32 %v287, 16
        %v2418 = vrot.slane %v2416, 5
        %v2419 = vsel %vm376, %v2414, %v2418
        %v2421 = vshrl.u32 %v270, 16
        %v2423 = vrot.slane %v2421, 4
        %v2424 = vshll.u32 %v270, 16
        %v2426 = vrot.slane %v2424, 5
        %v2427 = vor.u32 %v2423, %v2426
        %v2428 = vrot.slane %v2427, 4
        %v2430 = vshll.u32 %v271, 16
        %v2432 = vrot.slane %v2430, 5
        %v2433 = vsel %vm376, %v2428, %v2432
        %v2434 = vshrl.u32 %v271, 16
        %v2436 = vrot.slane %v2434, 4
        %v2437 = vor.u32 %v2436, %v2432
        %v2438 = vrot.slane %v2437, 4
        %v2440 = vshll.u32 %v288, 16
        %v2442 = vrot.slane %v2440, 5
        %v2443 = vsel %vm376, %v2438, %v2442
        %v2445 = vshrl.u32 %v272, 16
        %v2447 = vrot.slane %v2445, 4
        %v2448 = vshll.u32 %v272, 16
        %v2450 = vrot.slane %v2448, 5
        %v2451 = vor.u32 %v2447, %v2450
        %v2452 = vrot.slane %v2451, 4
        %v2454 = vshll.u32 %v273, 16
        %v2456 = vrot.slane %v2454, 5
        %v2457 = vsel %vm376, %v2452, %v2456
        %v2458 = vshrl.u32 %v273, 16
        %v2460 = vrot.slane %v2458, 4
        %v2461 = vor.u32 %v2460, %v2456
        %v2462 = vrot.slane %v2461, 4
        %v2464 = vshll.u32 %v289, 16
        %v2466 = vrot.slane %v2464, 5
        %v2467 = vsel %vm376, %v2462, %v2466
        %v2468 = vunpack.c.l.b16 %v2097
        %v2469 = vunpack.c.l.b16 %v2107
        %v2470 = vunpack.c.l.b16 %v2121
        %v2471 = vunpack.c.l.b16 %v2131
        %v2472 = vunpack.c.l.b16 %v2145
        %v2473 = vunpack.c.l.b16 %v2155
        %v2474 = vunpack.c.l.b16 %v2169
        %v2475 = vunpack.c.l.b16 %v2179
        %v2476 = vunpack.c.l.b16 %v2193
        %v2477 = vunpack.c.l.b16 %v2203
        %v2478 = vunpack.c.l.b16 %v2217
        %v2479 = vunpack.c.l.b16 %v2227
        %v2480 = vunpack.c.l.b16 %v2241
        %v2481 = vunpack.c.l.b16 %v2251
        %v2482 = vunpack.c.l.b16 %v2265
        %v2483 = vunpack.c.l.b16 %v2275
        %v2484 = vunpack.c.l.b16 %v2289
        %v2485 = vunpack.c.l.b16 %v2299
        %v2486 = vunpack.c.l.b16 %v2313
        %v2487 = vunpack.c.l.b16 %v2323
        %v2488 = vunpack.c.l.b16 %v2337
        %v2489 = vunpack.c.l.b16 %v2347
        %v2490 = vunpack.c.l.b16 %v2361
        %v2491 = vunpack.c.l.b16 %v2371
        %v2492 = vunpack.c.l.b16 %v2385
        %v2493 = vunpack.c.l.b16 %v2395
        %v2494 = vunpack.c.l.b16 %v2409
        %v2495 = vunpack.c.l.b16 %v2419
        %v2496 = vunpack.c.l.b16 %v2433
        %v2497 = vunpack.c.l.b16 %v2443
        %v2498 = vunpack.c.l.b16 %v2457
        %v2499 = vunpack.c.l.b16 %v2467
        %v2500 = vpack.c.b16 %v2469, %v2468
        %v2501 = vpack.c.b16 %v2471, %v2470
        %v2502 = vpack.c.b16 %v2473, %v2472
        %v2503 = vpack.c.b16 %v2475, %v2474
        %v2504 = vpack.c.b16 %v2477, %v2476
        %v2505 = vpack.c.b16 %v2479, %v2478
        %v2506 = vpack.c.b16 %v2481, %v2480
        %v2507 = vpack.c.b16 %v2483, %v2482
        %v2508 = vpack.c.b16 %v2485, %v2484
        %v2509 = vpack.c.b16 %v2487, %v2486
        %v2510 = vpack.c.b16 %v2489, %v2488
        %v2511 = vpack.c.b16 %v2491, %v2490
        %v2512 = vpack.c.b16 %v2493, %v2492
        %v2513 = vpack.c.b16 %v2495, %v2494
        %v2514 = vpack.c.b16 %v2497, %v2496
        %v2515 = vpack.c.b16 %v2499, %v2498
        %v2517 = vsel %vm809, %v2500, 0
        %v2520 = vsel %vm809, %v2501, 0
        %v2523 = vsel %vm809, %v2502, 0
        %v2526 = vsel %vm809, %v2503, 0
        %v2529 = vsel %vm809, %v2504, 0
        %v2532 = vsel %vm809, %v2505, 0
        %v2535 = vsel %vm809, %v2506, 0
        %v2538 = vsel %vm809, %v2507, 0
        %v2541 = vsel %vm809, %v2508, 0
        %v2544 = vsel %vm809, %v2509, 0
        %v2547 = vsel %vm809, %v2510, 0
        %v2550 = vsel %vm809, %v2511, 0
        %v2553 = vsel %vm809, %v2512, 0
        %v2556 = vsel %vm809, %v2513, 0
        %v2559 = vsel %vm809, %v2514, 0
        %v2562 = vsel %vm809, %v2515, 0
        %v2565 = vsel %vm858, %v2083, 0
        %2567 = vmatprep.subr.bf16.mxu0 0
        %2568 = vmatpush1.bf16.msra.mxu0 %v2565
        %2569 = vmatprep.subr.bf16.mxu0 0
        %2570 = vmatpush1.bf16.msra.mxu0 0
        %2571 = vmatprep.subr.bf16.mxu0 0
        %2572 = vmatpush1.bf16.msra.mxu0 0
        %2573 = vmatprep.subr.bf16.mxu0 0
        %2574 = vmatpush1.bf16.msra.mxu0 0
        %2575 = vmatprep.subr.bf16.mxu0 0
        %2576 = vmatpush1.bf16.msra.mxu0 0
        %2577 = vmatprep.subr.bf16.mxu0 0
        %2578 = vmatpush1.bf16.msra.mxu0 0
        %2579 = vmatprep.subr.bf16.mxu0 0
        %2580 = vmatpush1.bf16.msra.mxu0 0
        %2581 = vmatprep.subr.bf16.mxu0 0
        %2582 = vmatpush1.bf16.msra.mxu0 0
        %2583 = vmatprep.subr.bf16.mxu0 0
        %2584 = vmatpush1.bf16.msra.mxu0 0
        %2585 = vmatprep.subr.bf16.mxu0 0
        %2586 = vmatpush1.bf16.msra.mxu0 0
        %2587 = vmatprep.subr.bf16.mxu0 0
        %2588 = vmatpush1.bf16.msra.mxu0 0
        %2589 = vmatprep.subr.bf16.mxu0 0
        %2590 = vmatpush1.bf16.msra.mxu0 0
        %2591 = vmatprep.subr.bf16.mxu0 0
        %2592 = vmatpush1.bf16.msra.mxu0 0
        %2593 = vmatprep.subr.bf16.mxu0 0
        %2594 = vmatpush1.bf16.msra.mxu0 0
        %2595 = vmatprep.subr.bf16.mxu0 0
        %2596 = vmatpush1.bf16.msra.mxu0 0
        %2597 = vmatprep.subr.bf16.mxu0 0
        %2598 = vmatpush1.bf16.msra.mxu0 0
        %2599 = vmatprep.mubr.bf16.mxu0 0
        %2600 = vmatmul.mubr.bf16.gmra.mrb[0].mxu0 %v2517
        %v2601 = vpop.f32.mrb[0].mxu0
        %v2602 = vadd.f32 0.0, %v2601
        %v2603 = vpop.f32.mrb[0].mxu0
        %v2604 = vpop.f32.mrb[0].mxu0
        %v2605 = vadd.f32 0.0, %v2604
        %v2606 = vpop.f32.mrb[0].mxu0
        %2607 = vmatprep.mubr.bf16.mxu0 0
        %2608 = vmatmul.mubr.bf16.gmra.mrb[0].mxu0 %v2520
        %v2609 = vpop.f32.mrb[0].mxu0
        %v2610 = vadd.f32 0.0, %v2609
        %v2611 = vpop.f32.mrb[0].mxu0
        %v2612 = vpop.f32.mrb[0].mxu0
        %v2613 = vadd.f32 0.0, %v2612
        %v2614 = vpop.f32.mrb[0].mxu0
        %2615 = vmatprep.mubr.bf16.mxu0 0
        %2616 = vmatmul.mubr.bf16.gmra.mrb[0].mxu0 %v2523
        %v2617 = vpop.f32.mrb[0].mxu0
        %v2618 = vadd.f32 0.0, %v2617
        %v2619 = vpop.f32.mrb[0].mxu0
        %v2620 = vpop.f32.mrb[0].mxu0
        %v2621 = vadd.f32 0.0, %v2620
        %v2622 = vpop.f32.mrb[0].mxu0
        %2623 = vmatprep.mubr.bf16.mxu0 0
        %2624 = vmatmul.mubr.bf16.gmra.mrb[0].mxu0 %v2526
        %v2625 = vpop.f32.mrb[0].mxu0
        %v2626 = vadd.f32 0.0, %v2625
        %v2627 = vpop.f32.mrb[0].mxu0
        %v2628 = vpop.f32.mrb[0].mxu0
        %v2629 = vadd.f32 0.0, %v2628
        %v2630 = vpop.f32.mrb[0].mxu0
        %2631 = vmatprep.mubr.bf16.mxu0 0
        %2632 = vmatmul.mubr.bf16.gmra.mrb[0].mxu0 %v2529
        %v2633 = vpop.f32.mrb[0].mxu0
        %v2634 = vadd.f32 0.0, %v2633
        %v2635 = vpop.f32.mrb[0].mxu0
        %v2636 = vpop.f32.mrb[0].mxu0
        %v2637 = vadd.f32 0.0, %v2636
        %v2638 = vpop.f32.mrb[0].mxu0
        %2639 = vmatprep.mubr.bf16.mxu0 0
        %2640 = vmatmul.mubr.bf16.gmra.mrb[0].mxu0 %v2532
        %v2641 = vpop.f32.mrb[0].mxu0
        %v2642 = vadd.f32 0.0, %v2641
        %v2643 = vpop.f32.mrb[0].mxu0
        %v2644 = vpop.f32.mrb[0].mxu0
        %v2645 = vadd.f32 0.0, %v2644
        %v2646 = vpop.f32.mrb[0].mxu0
        %2647 = vmatprep.mubr.bf16.mxu0 0
        %2648 = vmatmul.mubr.bf16.gmra.mrb[0].mxu0 %v2535
        %v2649 = vpop.f32.mrb[0].mxu0
        %v2650 = vadd.f32 0.0, %v2649
        %v2651 = vpop.f32.mrb[0].mxu0
        %v2652 = vpop.f32.mrb[0].mxu0
        %v2653 = vadd.f32 0.0, %v2652
        %v2654 = vpop.f32.mrb[0].mxu0
        %2655 = vmatprep.mubr.bf16.mxu0 0
        %2656 = vmatmul.mubr.bf16.gmra.mrb[0].mxu0 %v2538
        %v2657 = vpop.f32.mrb[0].mxu0
        %v2658 = vadd.f32 0.0, %v2657
        %v2659 = vpop.f32.mrb[0].mxu0
        %v2660 = vpop.f32.mrb[0].mxu0
        %v2661 = vadd.f32 0.0, %v2660
        %v2662 = vpop.f32.mrb[0].mxu0
        %2663 = vmatprep.mubr.bf16.mxu0 0
        %2664 = vmatmul.mubr.bf16.gmra.mrb[0].mxu0 %v2541
        %v2665 = vpop.f32.mrb[0].mxu0
        %v2666 = vadd.f32 0.0, %v2665
        %v2667 = vpop.f32.mrb[0].mxu0
        %v2668 = vpop.f32.mrb[0].mxu0
        %v2669 = vadd.f32 0.0, %v2668
        %v2670 = vpop.f32.mrb[0].mxu0
        %2671 = vmatprep.mubr.bf16.mxu0 0
        %2672 = vmatmul.mubr.bf16.gmra.mrb[0].mxu0 %v2544
        %v2673 = vpop.f32.mrb[0].mxu0
        %v2674 = vadd.f32 0.0, %v2673
        %v2675 = vpop.f32.mrb[0].mxu0
        %v2676 = vpop.f32.mrb[0].mxu0
        %v2677 = vadd.f32 0.0, %v2676
        %v2678 = vpop.f32.mrb[0].mxu0
        %2679 = vmatprep.mubr.bf16.mxu0 0
        %2680 = vmatmul.mubr.bf16.gmra.mrb[0].mxu0 %v2547
        %v2681 = vpop.f32.mrb[0].mxu0
        %v2682 = vadd.f32 0.0, %v2681
        %v2683 = vpop.f32.mrb[0].mxu0
        %v2684 = vpop.f32.mrb[0].mxu0
        %v2685 = vadd.f32 0.0, %v2684
        %v2686 = vpop.f32.mrb[0].mxu0
        %2687 = vmatprep.mubr.bf16.mxu0 0
        %2688 = vmatmul.mubr.bf16.gmra.mrb[0].mxu0 %v2550
        %v2689 = vpop.f32.mrb[0].mxu0
        %v2690 = vadd.f32 0.0, %v2689
        %v2691 = vpop.f32.mrb[0].mxu0
        %v2692 = vpop.f32.mrb[0].mxu0
        %v2693 = vadd.f32 0.0, %v2692
        %v2694 = vpop.f32.mrb[0].mxu0
        %2695 = vmatprep.mubr.bf16.mxu0 0
        %2696 = vmatmul.mubr.bf16.gmra.mrb[0].mxu0 %v2553
        %v2697 = vpop.f32.mrb[0].mxu0
        %v2698 = vadd.f32 0.0, %v2697
        %v2699 = vpop.f32.mrb[0].mxu0
        %v2700 = vpop.f32.mrb[0].mxu0
        %v2701 = vadd.f32 0.0, %v2700
        %v2702 = vpop.f32.mrb[0].mxu0
        %2703 = vmatprep.mubr.bf16.mxu0 0
        %2704 = vmatmul.mubr.bf16.gmra.mrb[0].mxu0 %v2556
        %v2705 = vpop.f32.mrb[0].mxu0
        %v2706 = vadd.f32 0.0, %v2705
        %v2707 = vpop.f32.mrb[0].mxu0
        %v2708 = vpop.f32.mrb[0].mxu0
        %v2709 = vadd.f32 0.0, %v2708
        %v2710 = vpop.f32.mrb[0].mxu0
        %2711 = vmatprep.mubr.bf16.mxu0 0
        %2712 = vmatmul.mubr.bf16.gmra.mrb[0].mxu0 %v2559
        %v2713 = vpop.f32.mrb[0].mxu0
        %v2714 = vadd.f32 0.0, %v2713
        %v2715 = vpop.f32.mrb[0].mxu0
        %v2716 = vpop.f32.mrb[0].mxu0
        %v2717 = vadd.f32 0.0, %v2716
        %v2718 = vpop.f32.mrb[0].mxu0
        %2719 = vmatprep.mubr.bf16.mxu0 0
        %2720 = vmatmul.mubr.bf16.gmra.mrb[0].mxu0 %v2562
        %v2721 = vpop.f32.mrb[0].mxu0
        %v2722 = vadd.f32 0.0, %v2721
        %v2723 = vpop.f32.mrb[0].mxu0
        %v2724 = vpop.f32.mrb[0].mxu0
        %v2725 = vadd.f32 0.0, %v2724
        %v2726 = vpop.f32.mrb[0].mxu0
        %2727 = vdwg.mxu0
        %v2728 = vadd.f32 %v2050, %v2602
        %v2729 = vadd.f32 %v2051, %v2605
        %v2730 = vadd.f32 %v2052, %v2610
        %v2731 = vadd.f32 %v2053, %v2613
        %v2732 = vadd.f32 %v2054, %v2618
        %v2733 = vadd.f32 %v2055, %v2621
        %v2734 = vadd.f32 %v2056, %v2626
        %v2735 = vadd.f32 %v2057, %v2629
        %v2736 = vadd.f32 %v2058, %v2634
        %v2737 = vadd.f32 %v2059, %v2637
        %v2738 = vadd.f32 %v2060, %v2642
        %v2739 = vadd.f32 %v2061, %v2645
        %v2740 = vadd.f32 %v2062, %v2650
        %v2741 = vadd.f32 %v2063, %v2653
        %v2742 = vadd.f32 %v2064, %v2658
        %v2743 = vadd.f32 %v2065, %v2661
        %v2744 = vadd.f32 %v2066, %v2666
        %v2745 = vadd.f32 %v2067, %v2669
        %v2746 = vadd.f32 %v2068, %v2674
        %v2747 = vadd.f32 %v2069, %v2677
        %v2748 = vadd.f32 %v2070, %v2682
        %v2749 = vadd.f32 %v2071, %v2685
        %v2750 = vadd.f32 %v2072, %v2690
        %v2751 = vadd.f32 %v2073, %v2693
        %v2752 = vadd.f32 %v2074, %v2698
        %v2753 = vadd.f32 %v2075, %v2701
        %v2754 = vadd.f32 %v2076, %v2706
        %v2755 = vadd.f32 %v2077, %v2709
        %v2756 = vadd.f32 %v2078, %v2714
        %v2757 = vadd.f32 %v2079, %v2717
        %v2758 = vadd.f32 %v2080, %v2722
        %v2759 = vadd.f32 %v2081, %v2725
        %s2760 = scalar_lea.vmem %s1, 10
        %v2761 = vld [vmem:[%s2760] sm:$0x3]
        %v2794 = vrot.slane %v290, 5
        %v2795 = vrot.slane %v2794, 4
        %v2796 = vrot.slane %v243, 5
        %v2797 = vsel %vm1351, %v2795, %v2796
        %v2798 = vrot.slane %v2796, 4
        %v2799 = vrot.slane %v274, 5
        %v2800 = vsel %vm1351, %v2798, %v2799
        %v2801 = vrot.slane %v291, 5
        %v2802 = vrot.slane %v2801, 4
        %v2803 = vrot.slane %v245, 5
        %v2804 = vsel %vm1351, %v2802, %v2803
        %v2805 = vrot.slane %v2803, 4
        %v2806 = vrot.slane %v275, 5
        %v2807 = vsel %vm1351, %v2805, %v2806
        %v2808 = vrot.slane %v292, 5
        %v2809 = vrot.slane %v2808, 4
        %v2810 = vrot.slane %v247, 5
        %v2811 = vsel %vm1351, %v2809, %v2810
        %v2812 = vrot.slane %v2810, 4
        %v2813 = vrot.slane %v276, 5
        %v2814 = vsel %vm1351, %v2812, %v2813
        %v2815 = vrot.slane %v293, 5
        %v2816 = vrot.slane %v2815, 4
        %v2817 = vrot.slane %v249, 5
        %v2818 = vsel %vm1351, %v2816, %v2817
        %v2819 = vrot.slane %v2817, 4
        %v2820 = vrot.slane %v277, 5
        %v2821 = vsel %vm1351, %v2819, %v2820
        %v2822 = vrot.slane %v294, 5
        %v2823 = vrot.slane %v2822, 4
        %v2824 = vrot.slane %v251, 5
        %v2825 = vsel %vm1351, %v2823, %v2824
        %v2826 = vrot.slane %v2824, 4
        %v2827 = vrot.slane %v278, 5
        %v2828 = vsel %vm1351, %v2826, %v2827
        %v2829 = vrot.slane %v295, 5
        %v2830 = vrot.slane %v2829, 4
        %v2831 = vrot.slane %v253, 5
        %v2832 = vsel %vm1351, %v2830, %v2831
        %v2833 = vrot.slane %v2831, 4
        %v2834 = vrot.slane %v279, 5
        %v2835 = vsel %vm1351, %v2833, %v2834
        %v2836 = vrot.slane %v296, 5
        %v2837 = vrot.slane %v2836, 4
        %v2838 = vrot.slane %v255, 5
        %v2839 = vsel %vm1351, %v2837, %v2838
        %v2840 = vrot.slane %v2838, 4
        %v2841 = vrot.slane %v280, 5
        %v2842 = vsel %vm1351, %v2840, %v2841
        %v2843 = vrot.slane %v297, 5
        %v2844 = vrot.slane %v2843, 4
        %v2845 = vrot.slane %v257, 5
        %v2846 = vsel %vm1351, %v2844, %v2845
        %v2847 = vrot.slane %v2845, 4
        %v2848 = vrot.slane %v281, 5
        %v2849 = vsel %vm1351, %v2847, %v2848
        %v2850 = vrot.slane %v298, 5
        %v2851 = vrot.slane %v2850, 4
        %v2852 = vrot.slane %v259, 5
        %v2853 = vsel %vm1351, %v2851, %v2852
        %v2854 = vrot.slane %v2852, 4
        %v2855 = vrot.slane %v282, 5
        %v2856 = vsel %vm1351, %v2854, %v2855
        %v2857 = vrot.slane %v299, 5
        %v2858 = vrot.slane %v2857, 4
        %v2859 = vrot.slane %v261, 5
        %v2860 = vsel %vm1351, %v2858, %v2859
        %v2861 = vrot.slane %v2859, 4
        %v2862 = vrot.slane %v283, 5
        %v2863 = vsel %vm1351, %v2861, %v2862
        %v2864 = vrot.slane %v300, 5
        %v2865 = vrot.slane %v2864, 4
        %v2866 = vrot.slane %v263, 5
        %v2867 = vsel %vm1351, %v2865, %v2866
        %v2868 = vrot.slane %v2866, 4
        %v2869 = vrot.slane %v284, 5
        %v2870 = vsel %vm1351, %v2868, %v2869
        %v2871 = vrot.slane %v301, 5
        %v2872 = vrot.slane %v2871, 4
        %v2873 = vrot.slane %v265, 5
        %v2874 = vsel %vm1351, %v2872, %v2873
        %v2875 = vrot.slane %v2873, 4
        %v2876 = vrot.slane %v285, 5
        %v2877 = vsel %vm1351, %v2875, %v2876
        %v2878 = vrot.slane %v302, 5
        %v2879 = vrot.slane %v2878, 4
        %v2880 = vrot.slane %v267, 5
        %v2881 = vsel %vm1351, %v2879, %v2880
        %v2882 = vrot.slane %v2880, 4
        %v2883 = vrot.slane %v286, 5
        %v2884 = vsel %vm1351, %v2882, %v2883
        %v2885 = vrot.slane %v303, 5
        %v2886 = vrot.slane %v2885, 4
        %v2887 = vrot.slane %v269, 5
        %v2888 = vsel %vm1351, %v2886, %v2887
        %v2889 = vrot.slane %v2887, 4
        %v2890 = vrot.slane %v287, 5
        %v2891 = vsel %vm1351, %v2889, %v2890
        %v2892 = vrot.slane %v304, 5
        %v2893 = vrot.slane %v2892, 4
        %v2894 = vrot.slane %v271, 5
        %v2895 = vsel %vm1351, %v2893, %v2894
        %v2896 = vrot.slane %v2894, 4
        %v2897 = vrot.slane %v288, 5
        %v2898 = vsel %vm1351, %v2896, %v2897
        %v2899 = vrot.slane %v305, 5
        %v2900 = vrot.slane %v2899, 4
        %v2901 = vrot.slane %v273, 5
        %v2902 = vsel %vm1351, %v2900, %v2901
        %v2903 = vrot.slane %v2901, 4
        %v2904 = vrot.slane %v289, 5
        %v2905 = vsel %vm1351, %v2903, %v2904
        %v2906 = vunpack.c.l.b16 %v2797
        %v2907 = vunpack.c.l.b16 %v2800
        %v2908 = vunpack.c.l.b16 %v2804
        %v2909 = vunpack.c.l.b16 %v2807
        %v2910 = vunpack.c.l.b16 %v2811
        %v2911 = vunpack.c.l.b16 %v2814
        %v2912 = vunpack.c.l.b16 %v2818
        %v2913 = vunpack.c.l.b16 %v2821
        %v2914 = vunpack.c.l.b16 %v2825
        %v2915 = vunpack.c.l.b16 %v2828
        %v2916 = vunpack.c.l.b16 %v2832
        %v2917 = vunpack.c.l.b16 %v2835
        %v2918 = vunpack.c.l.b16 %v2839
        %v2919 = vunpack.c.l.b16 %v2842
        %v2920 = vunpack.c.l.b16 %v2846
        %v2921 = vunpack.c.l.b16 %v2849
        %v2922 = vunpack.c.l.b16 %v2853
        %v2923 = vunpack.c.l.b16 %v2856
        %v2924 = vunpack.c.l.b16 %v2860
        %v2925 = vunpack.c.l.b16 %v2863
        %v2926 = vunpack.c.l.b16 %v2867
        %v2927 = vunpack.c.l.b16 %v2870
        %v2928 = vunpack.c.l.b16 %v2874
        %v2929 = vunpack.c.l.b16 %v2877
        %v2930 = vunpack.c.l.b16 %v2881
        %v2931 = vunpack.c.l.b16 %v2884
        %v2932 = vunpack.c.l.b16 %v2888
        %v2933 = vunpack.c.l.b16 %v2891
        %v2934 = vunpack.c.l.b16 %v2895
        %v2935 = vunpack.c.l.b16 %v2898
        %v2936 = vunpack.c.l.b16 %v2902
        %v2937 = vunpack.c.l.b16 %v2905
        %v2938 = vpack.c.b16 %v2907, %v2906
        %v2939 = vpack.c.b16 %v2909, %v2908
        %v2940 = vpack.c.b16 %v2911, %v2910
        %v2941 = vpack.c.b16 %v2913, %v2912
        %v2942 = vpack.c.b16 %v2915, %v2914
        %v2943 = vpack.c.b16 %v2917, %v2916
        %v2944 = vpack.c.b16 %v2919, %v2918
        %v2945 = vpack.c.b16 %v2921, %v2920
        %v2946 = vpack.c.b16 %v2923, %v2922
        %v2947 = vpack.c.b16 %v2925, %v2924
        %v2948 = vpack.c.b16 %v2927, %v2926
        %v2949 = vpack.c.b16 %v2929, %v2928
        %v2950 = vpack.c.b16 %v2931, %v2930
        %v2951 = vpack.c.b16 %v2933, %v2932
        %v2952 = vpack.c.b16 %v2935, %v2934
        %v2953 = vpack.c.b16 %v2937, %v2936
        %v2955 = vsel %vm809, %v2938, 0
        %v2958 = vsel %vm809, %v2939, 0
        %v2961 = vsel %vm809, %v2940, 0
        %v2964 = vsel %vm809, %v2941, 0
        %v2967 = vsel %vm809, %v2942, 0
        %v2970 = vsel %vm809, %v2943, 0
        %v2973 = vsel %vm809, %v2944, 0
        %v2976 = vsel %vm809, %v2945, 0
        %v2979 = vsel %vm809, %v2946, 0
        %v2982 = vsel %vm809, %v2947, 0
        %v2985 = vsel %vm809, %v2948, 0
        %v2988 = vsel %vm809, %v2949, 0
        %v2991 = vsel %vm809, %v2950, 0
        %v2994 = vsel %vm809, %v2951, 0
        %v2997 = vsel %vm809, %v2952, 0
        %v3000 = vsel %vm809, %v2953, 0
        %v3003 = vsel %vm858, %v2761, 0
        %3005 = vmatprep.subr.bf16.mxu0 0
        %3006 = vmatpush1.bf16.msra.mxu0 %v3003
        %3007 = vmatprep.subr.bf16.mxu0 0
        %3008 = vmatpush1.bf16.msra.mxu0 0
        %3009 = vmatprep.subr.bf16.mxu0 0
        %3010 = vmatpush1.bf16.msra.mxu0 0
        %3011 = vmatprep.subr.bf16.mxu0 0
        %3012 = vmatpush1.bf16.msra.mxu0 0
        %3013 = vmatprep.subr.bf16.mxu0 0
        %3014 = vmatpush1.bf16.msra.mxu0 0
        %3015 = vmatprep.subr.bf16.mxu0 0
        %3016 = vmatpush1.bf16.msra.mxu0 0
        %3017 = vmatprep.subr.bf16.mxu0 0
        %3018 = vmatpush1.bf16.msra.mxu0 0
        %3019 = vmatprep.subr.bf16.mxu0 0
        %3020 = vmatpush1.bf16.msra.mxu0 0
        %3021 = vmatprep.subr.bf16.mxu0 0
        %3022 = vmatpush1.bf16.msra.mxu0 0
        %3023 = vmatprep.subr.bf16.mxu0 0
        %3024 = vmatpush1.bf16.msra.mxu0 0
        %3025 = vmatprep.subr.bf16.mxu0 0
        %3026 = vmatpush1.bf16.msra.mxu0 0
        %3027 = vmatprep.subr.bf16.mxu0 0
        %3028 = vmatpush1.bf16.msra.mxu0 0
        %3029 = vmatprep.subr.bf16.mxu0 0
        %3030 = vmatpush1.bf16.msra.mxu0 0
        %3031 = vmatprep.subr.bf16.mxu0 0
        %3032 = vmatpush1.bf16.msra.mxu0 0
        %3033 = vmatprep.subr.bf16.mxu0 0
        %3034 = vmatpush1.bf16.msra.mxu0 0
        %3035 = vmatprep.subr.bf16.mxu0 0
        %3036 = vmatpush1.bf16.msra.mxu0 0
        %3037 = vmatprep.mubr.bf16.mxu0 0
        %3038 = vmatmul.mubr.bf16.gmra.mrb[0].mxu0 %v2955
        %v3039 = vpop.f32.mrb[0].mxu0
        %v3040 = vadd.f32 0.0, %v3039
        %v3041 = vpop.f32.mrb[0].mxu0
        %v3042 = vpop.f32.mrb[0].mxu0
        %v3043 = vadd.f32 0.0, %v3042
        %v3044 = vpop.f32.mrb[0].mxu0
        %3045 = vmatprep.mubr.bf16.mxu0 0
        %3046 = vmatmul.mubr.bf16.gmra.mrb[0].mxu0 %v2958
        %v3047 = vpop.f32.mrb[0].mxu0
        %v3048 = vadd.f32 0.0, %v3047
        %v3049 = vpop.f32.mrb[0].mxu0
        %v3050 = vpop.f32.mrb[0].mxu0
        %v3051 = vadd.f32 0.0, %v3050
        %v3052 = vpop.f32.mrb[0].mxu0
        %3053 = vmatprep.mubr.bf16.mxu0 0
        %3054 = vmatmul.mubr.bf16.gmra.mrb[0].mxu0 %v2961
        %v3055 = vpop.f32.mrb[0].mxu0
        %v3056 = vadd.f32 0.0, %v3055
        %v3057 = vpop.f32.mrb[0].mxu0
        %v3058 = vpop.f32.mrb[0].mxu0
        %v3059 = vadd.f32 0.0, %v3058
        %v3060 = vpop.f32.mrb[0].mxu0
        %3061 = vmatprep.mubr.bf16.mxu0 0
        %3062 = vmatmul.mubr.bf16.gmra.mrb[0].mxu0 %v2964
        %v3063 = vpop.f32.mrb[0].mxu0
        %v3064 = vadd.f32 0.0, %v3063
        %v3065 = vpop.f32.mrb[0].mxu0
        %v3066 = vpop.f32.mrb[0].mxu0
        %v3067 = vadd.f32 0.0, %v3066
        %v3068 = vpop.f32.mrb[0].mxu0
        %3069 = vmatprep.mubr.bf16.mxu0 0
        %3070 = vmatmul.mubr.bf16.gmra.mrb[0].mxu0 %v2967
        %v3071 = vpop.f32.mrb[0].mxu0
        %v3072 = vadd.f32 0.0, %v3071
        %v3073 = vpop.f32.mrb[0].mxu0
        %v3074 = vpop.f32.mrb[0].mxu0
        %v3075 = vadd.f32 0.0, %v3074
        %v3076 = vpop.f32.mrb[0].mxu0
        %3077 = vmatprep.mubr.bf16.mxu0 0
        %3078 = vmatmul.mubr.bf16.gmra.mrb[0].mxu0 %v2970
        %v3079 = vpop.f32.mrb[0].mxu0
        %v3080 = vadd.f32 0.0, %v3079
        %v3081 = vpop.f32.mrb[0].mxu0
        %v3082 = vpop.f32.mrb[0].mxu0
        %v3083 = vadd.f32 0.0, %v3082
        %v3084 = vpop.f32.mrb[0].mxu0
        %3085 = vmatprep.mubr.bf16.mxu0 0
        %3086 = vmatmul.mubr.bf16.gmra.mrb[0].mxu0 %v2973
        %v3087 = vpop.f32.mrb[0].mxu0
        %v3088 = vadd.f32 0.0, %v3087
        %v3089 = vpop.f32.mrb[0].mxu0
        %v3090 = vpop.f32.mrb[0].mxu0
        %v3091 = vadd.f32 0.0, %v3090
        %v3092 = vpop.f32.mrb[0].mxu0
        %3093 = vmatprep.mubr.bf16.mxu0 0
        %3094 = vmatmul.mubr.bf16.gmra.mrb[0].mxu0 %v2976
        %v3095 = vpop.f32.mrb[0].mxu0
        %v3096 = vadd.f32 0.0, %v3095
        %v3097 = vpop.f32.mrb[0].mxu0
        %v3098 = vpop.f32.mrb[0].mxu0
        %v3099 = vadd.f32 0.0, %v3098
        %v3100 = vpop.f32.mrb[0].mxu0
        %3101 = vmatprep.mubr.bf16.mxu0 0
        %3102 = vmatmul.mubr.bf16.gmra.mrb[0].mxu0 %v2979
        %v3103 = vpop.f32.mrb[0].mxu0
        %v3104 = vadd.f32 0.0, %v3103
        %v3105 = vpop.f32.mrb[0].mxu0
        %v3106 = vpop.f32.mrb[0].mxu0
        %v3107 = vadd.f32 0.0, %v3106
        %v3108 = vpop.f32.mrb[0].mxu0
        %3109 = vmatprep.mubr.bf16.mxu0 0
        %3110 = vmatmul.mubr.bf16.gmra.mrb[0].mxu0 %v2982
        %v3111 = vpop.f32.mrb[0].mxu0
        %v3112 = vadd.f32 0.0, %v3111
        %v3113 = vpop.f32.mrb[0].mxu0
        %v3114 = vpop.f32.mrb[0].mxu0
        %v3115 = vadd.f32 0.0, %v3114
        %v3116 = vpop.f32.mrb[0].mxu0
        %3117 = vmatprep.mubr.bf16.mxu0 0
        %3118 = vmatmul.mubr.bf16.gmra.mrb[0].mxu0 %v2985
        %v3119 = vpop.f32.mrb[0].mxu0
        %v3120 = vadd.f32 0.0, %v3119
        %v3121 = vpop.f32.mrb[0].mxu0
        %v3122 = vpop.f32.mrb[0].mxu0
        %v3123 = vadd.f32 0.0, %v3122
        %v3124 = vpop.f32.mrb[0].mxu0
        %3125 = vmatprep.mubr.bf16.mxu0 0
        %3126 = vmatmul.mubr.bf16.gmra.mrb[0].mxu0 %v2988
        %v3127 = vpop.f32.mrb[0].mxu0
        %v3128 = vadd.f32 0.0, %v3127
        %v3129 = vpop.f32.mrb[0].mxu0
        %v3130 = vpop.f32.mrb[0].mxu0
        %v3131 = vadd.f32 0.0, %v3130
        %v3132 = vpop.f32.mrb[0].mxu0
        %3133 = vmatprep.mubr.bf16.mxu0 0
        %3134 = vmatmul.mubr.bf16.gmra.mrb[0].mxu0 %v2991
        %v3135 = vpop.f32.mrb[0].mxu0
        %v3136 = vadd.f32 0.0, %v3135
        %v3137 = vpop.f32.mrb[0].mxu0
        %v3138 = vpop.f32.mrb[0].mxu0
        %v3139 = vadd.f32 0.0, %v3138
        %v3140 = vpop.f32.mrb[0].mxu0
        %3141 = vmatprep.mubr.bf16.mxu0 0
        %3142 = vmatmul.mubr.bf16.gmra.mrb[0].mxu0 %v2994
        %v3143 = vpop.f32.mrb[0].mxu0
        %v3144 = vadd.f32 0.0, %v3143
        %v3145 = vpop.f32.mrb[0].mxu0
        %v3146 = vpop.f32.mrb[0].mxu0
        %v3147 = vadd.f32 0.0, %v3146
        %v3148 = vpop.f32.mrb[0].mxu0
        %3149 = vmatprep.mubr.bf16.mxu0 0
        %3150 = vmatmul.mubr.bf16.gmra.mrb[0].mxu0 %v2997
        %v3151 = vpop.f32.mrb[0].mxu0
        %v3152 = vadd.f32 0.0, %v3151
        %v3153 = vpop.f32.mrb[0].mxu0
        %v3154 = vpop.f32.mrb[0].mxu0
        %v3155 = vadd.f32 0.0, %v3154
        %v3156 = vpop.f32.mrb[0].mxu0
        %3157 = vmatprep.mubr.bf16.mxu0 0
        %3158 = vmatmul.mubr.bf16.gmra.mrb[0].mxu0 %v3000
        %v3159 = vpop.f32.mrb[0].mxu0
        %v3160 = vadd.f32 0.0, %v3159
        %v3161 = vpop.f32.mrb[0].mxu0
        %v3162 = vpop.f32.mrb[0].mxu0
        %v3163 = vadd.f32 0.0, %v3162
        %v3164 = vpop.f32.mrb[0].mxu0
        %3165 = vdwg.mxu0
        %v3166 = vadd.f32 %v2728, %v3040
        %v3167 = vadd.f32 %v2729, %v3043
        %v3168 = vadd.f32 %v2730, %v3048
        %v3169 = vadd.f32 %v2731, %v3051
        %v3170 = vadd.f32 %v2732, %v3056
        %v3171 = vadd.f32 %v2733, %v3059
        %v3172 = vadd.f32 %v2734, %v3064
        %v3173 = vadd.f32 %v2735, %v3067
        %v3174 = vadd.f32 %v2736, %v3072
        %v3175 = vadd.f32 %v2737, %v3075
        %v3176 = vadd.f32 %v2738, %v3080
        %v3177 = vadd.f32 %v2739, %v3083
        %v3178 = vadd.f32 %v2740, %v3088
        %v3179 = vadd.f32 %v2741, %v3091
        %v3180 = vadd.f32 %v2742, %v3096
        %v3181 = vadd.f32 %v2743, %v3099
        %v3182 = vadd.f32 %v2744, %v3104
        %v3183 = vadd.f32 %v2745, %v3107
        %v3184 = vadd.f32 %v2746, %v3112
        %v3185 = vadd.f32 %v2747, %v3115
        %v3186 = vadd.f32 %v2748, %v3120
        %v3187 = vadd.f32 %v2749, %v3123
        %v3188 = vadd.f32 %v2750, %v3128
        %v3189 = vadd.f32 %v2751, %v3131
        %v3190 = vadd.f32 %v2752, %v3136
        %v3191 = vadd.f32 %v2753, %v3139
        %v3192 = vadd.f32 %v2754, %v3144
        %v3193 = vadd.f32 %v2755, %v3147
        %v3194 = vadd.f32 %v2756, %v3152
        %v3195 = vadd.f32 %v2757, %v3155
        %v3196 = vadd.f32 %v2758, %v3160
        %v3197 = vadd.f32 %v2759, %v3163
        %s3198 = scalar_lea.vmem %s1, 12
        %v3199 = vld [vmem:[%s3198] sm:$0x3]
        %v3232 = vunpack.c.l.b16 %v307
        %v3233 = vunpack.c.l.b16 %v308
        %v3234 = vunpack.c.l.b16 %v309
        %v3235 = vunpack.c.l.b16 %v310
        %v3236 = vunpack.c.l.b16 %v311
        %v3237 = vunpack.c.l.b16 %v312
        %v3238 = vunpack.c.l.b16 %v313
        %v3239 = vunpack.c.l.b16 %v314
        %v3240 = vunpack.c.l.b16 %v315
        %v3241 = vunpack.c.l.b16 %v316
        %v3242 = vunpack.c.l.b16 %v317
        %v3243 = vunpack.c.l.b16 %v318
        %v3244 = vunpack.c.l.b16 %v319
        %v3245 = vunpack.c.l.b16 %v320
        %v3246 = vunpack.c.l.b16 %v321
        %v3247 = vunpack.c.l.b16 %v322
        %v3248 = vunpack.c.l.b16 %v323
        %v3249 = vunpack.c.l.b16 %v324
        %v3250 = vunpack.c.l.b16 %v325
        %v3251 = vunpack.c.l.b16 %v326
        %v3252 = vunpack.c.l.b16 %v327
        %v3253 = vunpack.c.l.b16 %v328
        %v3254 = vunpack.c.l.b16 %v329
        %v3255 = vunpack.c.l.b16 %v330
        %v3256 = vunpack.c.l.b16 %v331
        %v3257 = vunpack.c.l.b16 %v332
        %v3258 = vunpack.c.l.b16 %v333
        %v3259 = vunpack.c.l.b16 %v334
        %v3260 = vunpack.c.l.b16 %v335
        %v3261 = vunpack.c.l.b16 %v336
        %v3262 = vunpack.c.l.b16 %v337
        %v3263 = vunpack.c.l.b16 %v338
        %v3264 = vpack.c.b16 %v3233, %v3232
        %v3265 = vpack.c.b16 %v3235, %v3234
        %v3266 = vpack.c.b16 %v3237, %v3236
        %v3267 = vpack.c.b16 %v3239, %v3238
        %v3268 = vpack.c.b16 %v3241, %v3240
        %v3269 = vpack.c.b16 %v3243, %v3242
        %v3270 = vpack.c.b16 %v3245, %v3244
        %v3271 = vpack.c.b16 %v3247, %v3246
        %v3272 = vpack.c.b16 %v3249, %v3248
        %v3273 = vpack.c.b16 %v3251, %v3250
        %v3274 = vpack.c.b16 %v3253, %v3252
        %v3275 = vpack.c.b16 %v3255, %v3254
        %v3276 = vpack.c.b16 %v3257, %v3256
        %v3277 = vpack.c.b16 %v3259, %v3258
        %v3278 = vpack.c.b16 %v3261, %v3260
        %v3279 = vpack.c.b16 %v3263, %v3262
        %v3281 = vsel %vm809, %v3264, 0
        %v3284 = vsel %vm809, %v3265, 0
        %v3287 = vsel %vm809, %v3266, 0
        %v3290 = vsel %vm809, %v3267, 0
        %v3293 = vsel %vm809, %v3268, 0
        %v3296 = vsel %vm809, %v3269, 0
        %v3299 = vsel %vm809, %v3270, 0
        %v3302 = vsel %vm809, %v3271, 0
        %v3305 = vsel %vm809, %v3272, 0
        %v3308 = vsel %vm809, %v3273, 0
        %v3311 = vsel %vm809, %v3274, 0
        %v3314 = vsel %vm809, %v3275, 0
        %v3317 = vsel %vm809, %v3276, 0
        %v3320 = vsel %vm809, %v3277, 0
        %v3323 = vsel %vm809, %v3278, 0
        %v3326 = vsel %vm809, %v3279, 0
        %v3329 = vsel %vm858, %v3199, 0
        %3331 = vmatprep.subr.bf16.mxu0 0
        %3332 = vmatpush1.bf16.msra.mxu0 %v3329
        %3333 = vmatprep.subr.bf16.mxu0 0
        %3334 = vmatpush1.bf16.msra.mxu0 0
        %3335 = vmatprep.subr.bf16.mxu0 0
        %3336 = vmatpush1.bf16.msra.mxu0 0
        %3337 = vmatprep.subr.bf16.mxu0 0
        %3338 = vmatpush1.bf16.msra.mxu0 0
        %3339 = vmatprep.subr.bf16.mxu0 0
        %3340 = vmatpush1.bf16.msra.mxu0 0
        %3341 = vmatprep.subr.bf16.mxu0 0
        %3342 = vmatpush1.bf16.msra.mxu0 0
        %3343 = vmatprep.subr.bf16.mxu0 0
        %3344 = vmatpush1.bf16.msra.mxu0 0
        %3345 = vmatprep.subr.bf16.mxu0 0
        %3346 = vmatpush1.bf16.msra.mxu0 0
        %3347 = vmatprep.subr.bf16.mxu0 0
        %3348 = vmatpush1.bf16.msra.mxu0 0
        %3349 = vmatprep.subr.bf16.mxu0 0
        %3350 = vmatpush1.bf16.msra.mxu0 0
        %3351 = vmatprep.subr.bf16.mxu0 0
        %3352 = vmatpush1.bf16.msra.mxu0 0
        %3353 = vmatprep.subr.bf16.mxu0 0
        %3354 = vmatpush1.bf16.msra.mxu0 0
        %3355 = vmatprep.subr.bf16.mxu0 0
        %3356 = vmatpush1.bf16.msra.mxu0 0
        %3357 = vmatprep.subr.bf16.mxu0 0
        %3358 = vmatpush1.bf16.msra.mxu0 0
        %3359 = vmatprep.subr.bf16.mxu0 0
        %3360 = vmatpush1.bf16.msra.mxu0 0
        %3361 = vmatprep.subr.bf16.mxu0 0
        %3362 = vmatpush1.bf16.msra.mxu0 0
        %3363 = vmatprep.mubr.bf16.mxu0 0
        %3364 = vmatmul.mubr.bf16.gmra.mrb[0].mxu0 %v3281
        %v3365 = vpop.f32.mrb[0].mxu0
        %v3366 = vadd.f32 0.0, %v3365
        %v3367 = vpop.f32.mrb[0].mxu0
        %v3368 = vpop.f32.mrb[0].mxu0
        %v3369 = vadd.f32 0.0, %v3368
        %v3370 = vpop.f32.mrb[0].mxu0
        %3371 = vmatprep.mubr.bf16.mxu0 0
        %3372 = vmatmul.mubr.bf16.gmra.mrb[0].mxu0 %v3284
        %v3373 = vpop.f32.mrb[0].mxu0
        %v3374 = vadd.f32 0.0, %v3373
        %v3375 = vpop.f32.mrb[0].mxu0
        %v3376 = vpop.f32.mrb[0].mxu0
        %v3377 = vadd.f32 0.0, %v3376
        %v3378 = vpop.f32.mrb[0].mxu0
        %3379 = vmatprep.mubr.bf16.mxu0 0
        %3380 = vmatmul.mubr.bf16.gmra.mrb[0].mxu0 %v3287
        %v3381 = vpop.f32.mrb[0].mxu0
        %v3382 = vadd.f32 0.0, %v3381
        %v3383 = vpop.f32.mrb[0].mxu0
        %v3384 = vpop.f32.mrb[0].mxu0
        %v3385 = vadd.f32 0.0, %v3384
        %v3386 = vpop.f32.mrb[0].mxu0
        %3387 = vmatprep.mubr.bf16.mxu0 0
        %3388 = vmatmul.mubr.bf16.gmra.mrb[0].mxu0 %v3290
        %v3389 = vpop.f32.mrb[0].mxu0
        %v3390 = vadd.f32 0.0, %v3389
        %v3391 = vpop.f32.mrb[0].mxu0
        %v3392 = vpop.f32.mrb[0].mxu0
        %v3393 = vadd.f32 0.0, %v3392
        %v3394 = vpop.f32.mrb[0].mxu0
        %3395 = vmatprep.mubr.bf16.mxu0 0
        %3396 = vmatmul.mubr.bf16.gmra.mrb[0].mxu0 %v3293
        %v3397 = vpop.f32.mrb[0].mxu0
        %v3398 = vadd.f32 0.0, %v3397
        %v3399 = vpop.f32.mrb[0].mxu0
        %v3400 = vpop.f32.mrb[0].mxu0
        %v3401 = vadd.f32 0.0, %v3400
        %v3402 = vpop.f32.mrb[0].mxu0
        %3403 = vmatprep.mubr.bf16.mxu0 0
        %3404 = vmatmul.mubr.bf16.gmra.mrb[0].mxu0 %v3296
        %v3405 = vpop.f32.mrb[0].mxu0
        %v3406 = vadd.f32 0.0, %v3405
        %v3407 = vpop.f32.mrb[0].mxu0
        %v3408 = vpop.f32.mrb[0].mxu0
        %v3409 = vadd.f32 0.0, %v3408
        %v3410 = vpop.f32.mrb[0].mxu0
        %3411 = vmatprep.mubr.bf16.mxu0 0
        %3412 = vmatmul.mubr.bf16.gmra.mrb[0].mxu0 %v3299
        %v3413 = vpop.f32.mrb[0].mxu0
        %v3414 = vadd.f32 0.0, %v3413
        %v3415 = vpop.f32.mrb[0].mxu0
        %v3416 = vpop.f32.mrb[0].mxu0
        %v3417 = vadd.f32 0.0, %v3416
        %v3418 = vpop.f32.mrb[0].mxu0
        %3419 = vmatprep.mubr.bf16.mxu0 0
        %3420 = vmatmul.mubr.bf16.gmra.mrb[0].mxu0 %v3302
        %v3421 = vpop.f32.mrb[0].mxu0
        %v3422 = vadd.f32 0.0, %v3421
        %v3423 = vpop.f32.mrb[0].mxu0
        %v3424 = vpop.f32.mrb[0].mxu0
        %v3425 = vadd.f32 0.0, %v3424
        %v3426 = vpop.f32.mrb[0].mxu0
        %3427 = vmatprep.mubr.bf16.mxu0 0
        %3428 = vmatmul.mubr.bf16.gmra.mrb[0].mxu0 %v3305
        %v3429 = vpop.f32.mrb[0].mxu0
        %v3430 = vadd.f32 0.0, %v3429
        %v3431 = vpop.f32.mrb[0].mxu0
        %v3432 = vpop.f32.mrb[0].mxu0
        %v3433 = vadd.f32 0.0, %v3432
        %v3434 = vpop.f32.mrb[0].mxu0
        %3435 = vmatprep.mubr.bf16.mxu0 0
        %3436 = vmatmul.mubr.bf16.gmra.mrb[0].mxu0 %v3308
        %v3437 = vpop.f32.mrb[0].mxu0
        %v3438 = vadd.f32 0.0, %v3437
        %v3439 = vpop.f32.mrb[0].mxu0
        %v3440 = vpop.f32.mrb[0].mxu0
        %v3441 = vadd.f32 0.0, %v3440
        %v3442 = vpop.f32.mrb[0].mxu0
        %3443 = vmatprep.mubr.bf16.mxu0 0
        %3444 = vmatmul.mubr.bf16.gmra.mrb[0].mxu0 %v3311
        %v3445 = vpop.f32.mrb[0].mxu0
        %v3446 = vadd.f32 0.0, %v3445
        %v3447 = vpop.f32.mrb[0].mxu0
        %v3448 = vpop.f32.mrb[0].mxu0
        %v3449 = vadd.f32 0.0, %v3448
        %v3450 = vpop.f32.mrb[0].mxu0
        %3451 = vmatprep.mubr.bf16.mxu0 0
        %3452 = vmatmul.mubr.bf16.gmra.mrb[0].mxu0 %v3314
        %v3453 = vpop.f32.mrb[0].mxu0
        %v3454 = vadd.f32 0.0, %v3453
        %v3455 = vpop.f32.mrb[0].mxu0
        %v3456 = vpop.f32.mrb[0].mxu0
        %v3457 = vadd.f32 0.0, %v3456
        %v3458 = vpop.f32.mrb[0].mxu0
        %3459 = vmatprep.mubr.bf16.mxu0 0
        %3460 = vmatmul.mubr.bf16.gmra.mrb[0].mxu0 %v3317
        %v3461 = vpop.f32.mrb[0].mxu0
        %v3462 = vadd.f32 0.0, %v3461
        %v3463 = vpop.f32.mrb[0].mxu0
        %v3464 = vpop.f32.mrb[0].mxu0
        %v3465 = vadd.f32 0.0, %v3464
        %v3466 = vpop.f32.mrb[0].mxu0
        %3467 = vmatprep.mubr.bf16.mxu0 0
        %3468 = vmatmul.mubr.bf16.gmra.mrb[0].mxu0 %v3320
        %v3469 = vpop.f32.mrb[0].mxu0
        %v3470 = vadd.f32 0.0, %v3469
        %v3471 = vpop.f32.mrb[0].mxu0
        %v3472 = vpop.f32.mrb[0].mxu0
        %v3473 = vadd.f32 0.0, %v3472
        %v3474 = vpop.f32.mrb[0].mxu0
        %3475 = vmatprep.mubr.bf16.mxu0 0
        %3476 = vmatmul.mubr.bf16.gmra.mrb[0].mxu0 %v3323
        %v3477 = vpop.f32.mrb[0].mxu0
        %v3478 = vadd.f32 0.0, %v3477
        %v3479 = vpop.f32.mrb[0].mxu0
        %v3480 = vpop.f32.mrb[0].mxu0
        %v3481 = vadd.f32 0.0, %v3480
        %v3482 = vpop.f32.mrb[0].mxu0
        %3483 = vmatprep.mubr.bf16.mxu0 0
        %3484 = vmatmul.mubr.bf16.gmra.mrb[0].mxu0 %v3326
        %v3485 = vpop.f32.mrb[0].mxu0
        %v3486 = vadd.f32 0.0, %v3485
        %v3487 = vpop.f32.mrb[0].mxu0
        %v3488 = vpop.f32.mrb[0].mxu0
        %v3489 = vadd.f32 0.0, %v3488
        %v3490 = vpop.f32.mrb[0].mxu0
        %3491 = vdwg.mxu0
        %v3492 = vadd.f32 %v3166, %v3366
        %v3493 = vadd.f32 %v3167, %v3369
        %v3494 = vadd.f32 %v3168, %v3374
        %v3495 = vadd.f32 %v3169, %v3377
        %v3496 = vadd.f32 %v3170, %v3382
        %v3497 = vadd.f32 %v3171, %v3385
        %v3498 = vadd.f32 %v3172, %v3390
        %v3499 = vadd.f32 %v3173, %v3393
        %v3500 = vadd.f32 %v3174, %v3398
        %v3501 = vadd.f32 %v3175, %v3401
        %v3502 = vadd.f32 %v3176, %v3406
        %v3503 = vadd.f32 %v3177, %v3409
        %v3504 = vadd.f32 %v3178, %v3414
        %v3505 = vadd.f32 %v3179, %v3417
        %v3506 = vadd.f32 %v3180, %v3422
        %v3507 = vadd.f32 %v3181, %v3425
        %v3508 = vadd.f32 %v3182, %v3430
        %v3509 = vadd.f32 %v3183, %v3433
        %v3510 = vadd.f32 %v3184, %v3438
        %v3511 = vadd.f32 %v3185, %v3441
        %v3512 = vadd.f32 %v3186, %v3446
        %v3513 = vadd.f32 %v3187, %v3449
        %v3514 = vadd.f32 %v3188, %v3454
        %v3515 = vadd.f32 %v3189, %v3457
        %v3516 = vadd.f32 %v3190, %v3462
        %v3517 = vadd.f32 %v3191, %v3465
        %v3518 = vadd.f32 %v3192, %v3470
        %v3519 = vadd.f32 %v3193, %v3473
        %v3520 = vadd.f32 %v3194, %v3478
        %v3521 = vadd.f32 %v3195, %v3481
        %v3522 = vadd.f32 %v3196, %v3486
        %v3523 = vadd.f32 %v3197, %v3489
        %s3524 = scalar_lea.vmem %s1, 14
        %v3525 = vld [vmem:[%s3524] sm:$0x3]
        %v3527 = vshrl.u32 %v307, 16
        %v3529 = vrot.slane %v3527, 4
        %v3530 = vshll.u32 %v307, 16
        %v3532 = vrot.slane %v3530, 5
        %v3533 = vor.u32 %v3529, %v3532
        %v3534 = vrot.slane %v3533, 4
        %v3536 = vshll.u32 %v308, 16
        %v3538 = vrot.slane %v3536, 5
        %v3539 = vsel %vm376, %v3534, %v3538
        %v3540 = vshrl.u32 %v308, 16
        %v3542 = vrot.slane %v3540, 4
        %v3543 = vor.u32 %v3542, %v3538
        %v3544 = vrot.slane %v3543, 4
        %v3546 = vshll.u32 %v339, 16
        %v3548 = vrot.slane %v3546, 5
        %v3549 = vsel %vm376, %v3544, %v3548
        %v3551 = vshrl.u32 %v309, 16
        %v3553 = vrot.slane %v3551, 4
        %v3554 = vshll.u32 %v309, 16
        %v3556 = vrot.slane %v3554, 5
        %v3557 = vor.u32 %v3553, %v3556
        %v3558 = vrot.slane %v3557, 4
        %v3560 = vshll.u32 %v310, 16
        %v3562 = vrot.slane %v3560, 5
        %v3563 = vsel %vm376, %v3558, %v3562
        %v3564 = vshrl.u32 %v310, 16
        %v3566 = vrot.slane %v3564, 4
        %v3567 = vor.u32 %v3566, %v3562
        %v3568 = vrot.slane %v3567, 4
        %v3570 = vshll.u32 %v340, 16
        %v3572 = vrot.slane %v3570, 5
        %v3573 = vsel %vm376, %v3568, %v3572
        %v3575 = vshrl.u32 %v311, 16
        %v3577 = vrot.slane %v3575, 4
        %v3578 = vshll.u32 %v311, 16
        %v3580 = vrot.slane %v3578, 5
        %v3581 = vor.u32 %v3577, %v3580
        %v3582 = vrot.slane %v3581, 4
        %v3584 = vshll.u32 %v312, 16
        %v3586 = vrot.slane %v3584, 5
        %v3587 = vsel %vm376, %v3582, %v3586
        %v3588 = vshrl.u32 %v312, 16
        %v3590 = vrot.slane %v3588, 4
        %v3591 = vor.u32 %v3590, %v3586
        %v3592 = vrot.slane %v3591, 4
        %v3594 = vshll.u32 %v341, 16
        %v3596 = vrot.slane %v3594, 5
        %v3597 = vsel %vm376, %v3592, %v3596
        %v3599 = vshrl.u32 %v313, 16
        %v3601 = vrot.slane %v3599, 4
        %v3602 = vshll.u32 %v313, 16
        %v3604 = vrot.slane %v3602, 5
        %v3605 = vor.u32 %v3601, %v3604
        %v3606 = vrot.slane %v3605, 4
        %v3608 = vshll.u32 %v314, 16
        %v3610 = vrot.slane %v3608, 5
        %v3611 = vsel %vm376, %v3606, %v3610
        %v3612 = vshrl.u32 %v314, 16
        %v3614 = vrot.slane %v3612, 4
        %v3615 = vor.u32 %v3614, %v3610
        %v3616 = vrot.slane %v3615, 4
        %v3618 = vshll.u32 %v342, 16
        %v3620 = vrot.slane %v3618, 5
        %v3621 = vsel %vm376, %v3616, %v3620
        %v3623 = vshrl.u32 %v315, 16
        %v3625 = vrot.slane %v3623, 4
        %v3626 = vshll.u32 %v315, 16
        %v3628 = vrot.slane %v3626, 5
        %v3629 = vor.u32 %v3625, %v3628
        %v3630 = vrot.slane %v3629, 4
        %v3632 = vshll.u32 %v316, 16
        %v3634 = vrot.slane %v3632, 5
        %v3635 = vsel %vm376, %v3630, %v3634
        %v3636 = vshrl.u32 %v316, 16
        %v3638 = vrot.slane %v3636, 4
        %v3639 = vor.u32 %v3638, %v3634
        %v3640 = vrot.slane %v3639, 4
        %v3642 = vshll.u32 %v343, 16
        %v3644 = vrot.slane %v3642, 5
        %v3645 = vsel %vm376, %v3640, %v3644
        %v3647 = vshrl.u32 %v317, 16
        %v3649 = vrot.slane %v3647, 4
        %v3650 = vshll.u32 %v317, 16
        %v3652 = vrot.slane %v3650, 5
        %v3653 = vor.u32 %v3649, %v3652
        %v3654 = vrot.slane %v3653, 4
        %v3656 = vshll.u32 %v318, 16
        %v3658 = vrot.slane %v3656, 5
        %v3659 = vsel %vm376, %v3654, %v3658
        %v3660 = vshrl.u32 %v318, 16
        %v3662 = vrot.slane %v3660, 4
        %v3663 = vor.u32 %v3662, %v3658
        %v3664 = vrot.slane %v3663, 4
        %v3666 = vshll.u32 %v344, 16
        %v3668 = vrot.slane %v3666, 5
        %v3669 = vsel %vm376, %v3664, %v3668
        %v3671 = vshrl.u32 %v319, 16
        %v3673 = vrot.slane %v3671, 4
        %v3674 = vshll.u32 %v319, 16
        %v3676 = vrot.slane %v3674, 5
        %v3677 = vor.u32 %v3673, %v3676
        %v3678 = vrot.slane %v3677, 4
        %v3680 = vshll.u32 %v320, 16
        %v3682 = vrot.slane %v3680, 5
        %v3683 = vsel %vm376, %v3678, %v3682
        %v3684 = vshrl.u32 %v320, 16
        %v3686 = vrot.slane %v3684, 4
        %v3687 = vor.u32 %v3686, %v3682
        %v3688 = vrot.slane %v3687, 4
        %v3690 = vshll.u32 %v345, 16
        %v3692 = vrot.slane %v3690, 5
        %v3693 = vsel %vm376, %v3688, %v3692
        %v3695 = vshrl.u32 %v321, 16
        %v3697 = vrot.slane %v3695, 4
        %v3698 = vshll.u32 %v321, 16
        %v3700 = vrot.slane %v3698, 5
        %v3701 = vor.u32 %v3697, %v3700
        %v3702 = vrot.slane %v3701, 4
        %v3704 = vshll.u32 %v322, 16
        %v3706 = vrot.slane %v3704, 5
        %v3707 = vsel %vm376, %v3702, %v3706
        %v3708 = vshrl.u32 %v322, 16
        %v3710 = vrot.slane %v3708, 4
        %v3711 = vor.u32 %v3710, %v3706
        %v3712 = vrot.slane %v3711, 4
        %v3714 = vshll.u32 %v346, 16
        %v3716 = vrot.slane %v3714, 5
        %v3717 = vsel %vm376, %v3712, %v3716
        %v3719 = vshrl.u32 %v323, 16
        %v3721 = vrot.slane %v3719, 4
        %v3722 = vshll.u32 %v323, 16
        %v3724 = vrot.slane %v3722, 5
        %v3725 = vor.u32 %v3721, %v3724
        %v3726 = vrot.slane %v3725, 4
        %v3728 = vshll.u32 %v324, 16
        %v3730 = vrot.slane %v3728, 5
        %v3731 = vsel %vm376, %v3726, %v3730
        %v3732 = vshrl.u32 %v324, 16
        %v3734 = vrot.slane %v3732, 4
        %v3735 = vor.u32 %v3734, %v3730
        %v3736 = vrot.slane %v3735, 4
        %v3738 = vshll.u32 %v347, 16
        %v3740 = vrot.slane %v3738, 5
        %v3741 = vsel %vm376, %v3736, %v3740
        %v3743 = vshrl.u32 %v325, 16
        %v3745 = vrot.slane %v3743, 4
        %v3746 = vshll.u32 %v325, 16
        %v3748 = vrot.slane %v3746, 5
        %v3749 = vor.u32 %v3745, %v3748
        %v3750 = vrot.slane %v3749, 4
        %v3752 = vshll.u32 %v326, 16
        %v3754 = vrot.slane %v3752, 5
        %v3755 = vsel %vm376, %v3750, %v3754
        %v3756 = vshrl.u32 %v326, 16
        %v3758 = vrot.slane %v3756, 4
        %v3759 = vor.u32 %v3758, %v3754
        %v3760 = vrot.slane %v3759, 4
        %v3762 = vshll.u32 %v348, 16
        %v3764 = vrot.slane %v3762, 5
        %v3765 = vsel %vm376, %v3760, %v3764
        %v3767 = vshrl.u32 %v327, 16
        %v3769 = vrot.slane %v3767, 4
        %v3770 = vshll.u32 %v327, 16
        %v3772 = vrot.slane %v3770, 5
        %v3773 = vor.u32 %v3769, %v3772
        %v3774 = vrot.slane %v3773, 4
        %v3776 = vshll.u32 %v328, 16
        %v3778 = vrot.slane %v3776, 5
        %v3779 = vsel %vm376, %v3774, %v3778
        %v3780 = vshrl.u32 %v328, 16
        %v3782 = vrot.slane %v3780, 4
        %v3783 = vor.u32 %v3782, %v3778
        %v3784 = vrot.slane %v3783, 4
        %v3786 = vshll.u32 %v349, 16
        %v3788 = vrot.slane %v3786, 5
        %v3789 = vsel %vm376, %v3784, %v3788
        %v3791 = vshrl.u32 %v329, 16
        %v3793 = vrot.slane %v3791, 4
        %v3794 = vshll.u32 %v329, 16
        %v3796 = vrot.slane %v3794, 5
        %v3797 = vor.u32 %v3793, %v3796
        %v3798 = vrot.slane %v3797, 4
        %v3800 = vshll.u32 %v330, 16
        %v3802 = vrot.slane %v3800, 5
        %v3803 = vsel %vm376, %v3798, %v3802
        %v3804 = vshrl.u32 %v330, 16
        %v3806 = vrot.slane %v3804, 4
        %v3807 = vor.u32 %v3806, %v3802
        %v3808 = vrot.slane %v3807, 4
        %v3810 = vshll.u32 %v350, 16
        %v3812 = vrot.slane %v3810, 5
        %v3813 = vsel %vm376, %v3808, %v3812
        %v3815 = vshrl.u32 %v331, 16
        %v3817 = vrot.slane %v3815, 4
        %v3818 = vshll.u32 %v331, 16
        %v3820 = vrot.slane %v3818, 5
        %v3821 = vor.u32 %v3817, %v3820
        %v3822 = vrot.slane %v3821, 4
        %v3824 = vshll.u32 %v332, 16
        %v3826 = vrot.slane %v3824, 5
        %v3827 = vsel %vm376, %v3822, %v3826
        %v3828 = vshrl.u32 %v332, 16
        %v3830 = vrot.slane %v3828, 4
        %v3831 = vor.u32 %v3830, %v3826
        %v3832 = vrot.slane %v3831, 4
        %v3834 = vshll.u32 %v351, 16
        %v3836 = vrot.slane %v3834, 5
        %v3837 = vsel %vm376, %v3832, %v3836
        %v3839 = vshrl.u32 %v333, 16
        %v3841 = vrot.slane %v3839, 4
        %v3842 = vshll.u32 %v333, 16
        %v3844 = vrot.slane %v3842, 5
        %v3845 = vor.u32 %v3841, %v3844
        %v3846 = vrot.slane %v3845, 4
        %v3848 = vshll.u32 %v334, 16
        %v3850 = vrot.slane %v3848, 5
        %v3851 = vsel %vm376, %v3846, %v3850
        %v3852 = vshrl.u32 %v334, 16
        %v3854 = vrot.slane %v3852, 4
        %v3855 = vor.u32 %v3854, %v3850
        %v3856 = vrot.slane %v3855, 4
        %v3858 = vshll.u32 %v352, 16
        %v3860 = vrot.slane %v3858, 5
        %v3861 = vsel %vm376, %v3856, %v3860
        %v3863 = vshrl.u32 %v335, 16
        %v3865 = vrot.slane %v3863, 4
        %v3866 = vshll.u32 %v335, 16
        %v3868 = vrot.slane %v3866, 5
        %v3869 = vor.u32 %v3865, %v3868
        %v3870 = vrot.slane %v3869, 4
        %v3872 = vshll.u32 %v336, 16
        %v3874 = vrot.slane %v3872, 5
        %v3875 = vsel %vm376, %v3870, %v3874
        %v3876 = vshrl.u32 %v336, 16
        %v3878 = vrot.slane %v3876, 4
        %v3879 = vor.u32 %v3878, %v3874
        %v3880 = vrot.slane %v3879, 4
        %v3882 = vshll.u32 %v353, 16
        %v3884 = vrot.slane %v3882, 5
        %v3885 = vsel %vm376, %v3880, %v3884
        %v3887 = vshrl.u32 %v337, 16
        %v3889 = vrot.slane %v3887, 4
        %v3890 = vshll.u32 %v337, 16
        %v3892 = vrot.slane %v3890, 5
        %v3893 = vor.u32 %v3889, %v3892
        %v3894 = vrot.slane %v3893, 4
        %v3896 = vshll.u32 %v338, 16
        %v3898 = vrot.slane %v3896, 5
        %v3899 = vsel %vm376, %v3894, %v3898
        %v3900 = vshrl.u32 %v338, 16
        %v3902 = vrot.slane %v3900, 4
        %v3903 = vor.u32 %v3902, %v3898
        %v3904 = vrot.slane %v3903, 4
        %v3906 = vshll.u32 %v354, 16
        %v3908 = vrot.slane %v3906, 5
        %v3909 = vsel %vm376, %v3904, %v3908
        %v3910 = vunpack.c.l.b16 %v3539
        %v3911 = vunpack.c.l.b16 %v3549
        %v3912 = vunpack.c.l.b16 %v3563
        %v3913 = vunpack.c.l.b16 %v3573
        %v3914 = vunpack.c.l.b16 %v3587
        %v3915 = vunpack.c.l.b16 %v3597
        %v3916 = vunpack.c.l.b16 %v3611
        %v3917 = vunpack.c.l.b16 %v3621
        %v3918 = vunpack.c.l.b16 %v3635
        %v3919 = vunpack.c.l.b16 %v3645
        %v3920 = vunpack.c.l.b16 %v3659
        %v3921 = vunpack.c.l.b16 %v3669
        %v3922 = vunpack.c.l.b16 %v3683
        %v3923 = vunpack.c.l.b16 %v3693
        %v3924 = vunpack.c.l.b16 %v3707
        %v3925 = vunpack.c.l.b16 %v3717
        %v3926 = vunpack.c.l.b16 %v3731
        %v3927 = vunpack.c.l.b16 %v3741
        %v3928 = vunpack.c.l.b16 %v3755
        %v3929 = vunpack.c.l.b16 %v3765
        %v3930 = vunpack.c.l.b16 %v3779
        %v3931 = vunpack.c.l.b16 %v3789
        %v3932 = vunpack.c.l.b16 %v3803
        %v3933 = vunpack.c.l.b16 %v3813
        %v3934 = vunpack.c.l.b16 %v3827
        %v3935 = vunpack.c.l.b16 %v3837
        %v3936 = vunpack.c.l.b16 %v3851
        %v3937 = vunpack.c.l.b16 %v3861
        %v3938 = vunpack.c.l.b16 %v3875
        %v3939 = vunpack.c.l.b16 %v3885
        %v3940 = vunpack.c.l.b16 %v3899
        %v3941 = vunpack.c.l.b16 %v3909
        %v3942 = vpack.c.b16 %v3911, %v3910
        %v3943 = vpack.c.b16 %v3913, %v3912
        %v3944 = vpack.c.b16 %v3915, %v3914
        %v3945 = vpack.c.b16 %v3917, %v3916
        %v3946 = vpack.c.b16 %v3919, %v3918
        %v3947 = vpack.c.b16 %v3921, %v3920
        %v3948 = vpack.c.b16 %v3923, %v3922
        %v3949 = vpack.c.b16 %v3925, %v3924
        %v3950 = vpack.c.b16 %v3927, %v3926
        %v3951 = vpack.c.b16 %v3929, %v3928
        %v3952 = vpack.c.b16 %v3931, %v3930
        %v3953 = vpack.c.b16 %v3933, %v3932
        %v3954 = vpack.c.b16 %v3935, %v3934
        %v3955 = vpack.c.b16 %v3937, %v3936
        %v3956 = vpack.c.b16 %v3939, %v3938
        %v3957 = vpack.c.b16 %v3941, %v3940
        %v3959 = vsel %vm809, %v3942, 0
        %v3962 = vsel %vm809, %v3943, 0
        %v3965 = vsel %vm809, %v3944, 0
        %v3968 = vsel %vm809, %v3945, 0
        %v3971 = vsel %vm809, %v3946, 0
        %v3974 = vsel %vm809, %v3947, 0
        %v3977 = vsel %vm809, %v3948, 0
        %v3980 = vsel %vm809, %v3949, 0
        %v3983 = vsel %vm809, %v3950, 0
        %v3986 = vsel %vm809, %v3951, 0
        %v3989 = vsel %vm809, %v3952, 0
        %v3992 = vsel %vm809, %v3953, 0
        %v3995 = vsel %vm809, %v3954, 0
        %v3998 = vsel %vm809, %v3955, 0
        %v4001 = vsel %vm809, %v3956, 0
        %v4004 = vsel %vm809, %v3957, 0
        %v4007 = vsel %vm858, %v3525, 0
        %4009 = vmatprep.subr.bf16.mxu0 0
        %4010 = vmatpush1.bf16.msra.mxu0 %v4007
        %4011 = vmatprep.subr.bf16.mxu0 0
        %4012 = vmatpush1.bf16.msra.mxu0 0
        %4013 = vmatprep.subr.bf16.mxu0 0
        %4014 = vmatpush1.bf16.msra.mxu0 0
        %4015 = vmatprep.subr.bf16.mxu0 0
        %4016 = vmatpush1.bf16.msra.mxu0 0
        %4017 = vmatprep.subr.bf16.mxu0 0
        %4018 = vmatpush1.bf16.msra.mxu0 0
        %4019 = vmatprep.subr.bf16.mxu0 0
        %4020 = vmatpush1.bf16.msra.mxu0 0
        %4021 = vmatprep.subr.bf16.mxu0 0
        %4022 = vmatpush1.bf16.msra.mxu0 0
        %4023 = vmatprep.subr.bf16.mxu0 0
        %4024 = vmatpush1.bf16.msra.mxu0 0
        %4025 = vmatprep.subr.bf16.mxu0 0
        %4026 = vmatpush1.bf16.msra.mxu0 0
        %4027 = vmatprep.subr.bf16.mxu0 0
        %4028 = vmatpush1.bf16.msra.mxu0 0
        %4029 = vmatprep.subr.bf16.mxu0 0
        %4030 = vmatpush1.bf16.msra.mxu0 0
        %4031 = vmatprep.subr.bf16.mxu0 0
        %4032 = vmatpush1.bf16.msra.mxu0 0
        %4033 = vmatprep.subr.bf16.mxu0 0
        %4034 = vmatpush1.bf16.msra.mxu0 0
        %4035 = vmatprep.subr.bf16.mxu0 0
        %4036 = vmatpush1.bf16.msra.mxu0 0
        %4037 = vmatprep.subr.bf16.mxu0 0
        %4038 = vmatpush1.bf16.msra.mxu0 0
        %4039 = vmatprep.subr.bf16.mxu0 0
        %4040 = vmatpush1.bf16.msra.mxu0 0
        %4041 = vmatprep.mubr.bf16.mxu0 0
        %4042 = vmatmul.mubr.bf16.gmra.mrb[0].mxu0 %v3959
        %v4043 = vpop.f32.mrb[0].mxu0
        %v4044 = vadd.f32 0.0, %v4043
        %v4045 = vpop.f32.mrb[0].mxu0
        %v4046 = vpop.f32.mrb[0].mxu0
        %v4047 = vadd.f32 0.0, %v4046
        %v4048 = vpop.f32.mrb[0].mxu0
        %4049 = vmatprep.mubr.bf16.mxu0 0
        %4050 = vmatmul.mubr.bf16.gmra.mrb[0].mxu0 %v3962
        %v4051 = vpop.f32.mrb[0].mxu0
        %v4052 = vadd.f32 0.0, %v4051
        %v4053 = vpop.f32.mrb[0].mxu0
        %v4054 = vpop.f32.mrb[0].mxu0
        %v4055 = vadd.f32 0.0, %v4054
        %v4056 = vpop.f32.mrb[0].mxu0
        %4057 = vmatprep.mubr.bf16.mxu0 0
        %4058 = vmatmul.mubr.bf16.gmra.mrb[0].mxu0 %v3965
        %v4059 = vpop.f32.mrb[0].mxu0
        %v4060 = vadd.f32 0.0, %v4059
        %v4061 = vpop.f32.mrb[0].mxu0
        %v4062 = vpop.f32.mrb[0].mxu0
        %v4063 = vadd.f32 0.0, %v4062
        %v4064 = vpop.f32.mrb[0].mxu0
        %4065 = vmatprep.mubr.bf16.mxu0 0
        %4066 = vmatmul.mubr.bf16.gmra.mrb[0].mxu0 %v3968
        %v4067 = vpop.f32.mrb[0].mxu0
        %v4068 = vadd.f32 0.0, %v4067
        %v4069 = vpop.f32.mrb[0].mxu0
        %v4070 = vpop.f32.mrb[0].mxu0
        %v4071 = vadd.f32 0.0, %v4070
        %v4072 = vpop.f32.mrb[0].mxu0
        %4073 = vmatprep.mubr.bf16.mxu0 0
        %4074 = vmatmul.mubr.bf16.gmra.mrb[0].mxu0 %v3971
        %v4075 = vpop.f32.mrb[0].mxu0
        %v4076 = vadd.f32 0.0, %v4075
        %v4077 = vpop.f32.mrb[0].mxu0
        %v4078 = vpop.f32.mrb[0].mxu0
        %v4079 = vadd.f32 0.0, %v4078
        %v4080 = vpop.f32.mrb[0].mxu0
        %4081 = vmatprep.mubr.bf16.mxu0 0
        %4082 = vmatmul.mubr.bf16.gmra.mrb[0].mxu0 %v3974
        %v4083 = vpop.f32.mrb[0].mxu0
        %v4084 = vadd.f32 0.0, %v4083
        %v4085 = vpop.f32.mrb[0].mxu0
        %v4086 = vpop.f32.mrb[0].mxu0
        %v4087 = vadd.f32 0.0, %v4086
        %v4088 = vpop.f32.mrb[0].mxu0
        %4089 = vmatprep.mubr.bf16.mxu0 0
        %4090 = vmatmul.mubr.bf16.gmra.mrb[0].mxu0 %v3977
        %v4091 = vpop.f32.mrb[0].mxu0
        %v4092 = vadd.f32 0.0, %v4091
        %v4093 = vpop.f32.mrb[0].mxu0
        %v4094 = vpop.f32.mrb[0].mxu0
        %v4095 = vadd.f32 0.0, %v4094
        %v4096 = vpop.f32.mrb[0].mxu0
        %4097 = vmatprep.mubr.bf16.mxu0 0
        %4098 = vmatmul.mubr.bf16.gmra.mrb[0].mxu0 %v3980
        %v4099 = vpop.f32.mrb[0].mxu0
        %v4100 = vadd.f32 0.0, %v4099
        %v4101 = vpop.f32.mrb[0].mxu0
        %v4102 = vpop.f32.mrb[0].mxu0
        %v4103 = vadd.f32 0.0, %v4102
        %v4104 = vpop.f32.mrb[0].mxu0
        %4105 = vmatprep.mubr.bf16.mxu0 0
        %4106 = vmatmul.mubr.bf16.gmra.mrb[0].mxu0 %v3983
        %v4107 = vpop.f32.mrb[0].mxu0
        %v4108 = vadd.f32 0.0, %v4107
        %v4109 = vpop.f32.mrb[0].mxu0
        %v4110 = vpop.f32.mrb[0].mxu0
        %v4111 = vadd.f32 0.0, %v4110
        %v4112 = vpop.f32.mrb[0].mxu0
        %4113 = vmatprep.mubr.bf16.mxu0 0
        %4114 = vmatmul.mubr.bf16.gmra.mrb[0].mxu0 %v3986
        %v4115 = vpop.f32.mrb[0].mxu0
        %v4116 = vadd.f32 0.0, %v4115
        %v4117 = vpop.f32.mrb[0].mxu0
        %v4118 = vpop.f32.mrb[0].mxu0
        %v4119 = vadd.f32 0.0, %v4118
        %v4120 = vpop.f32.mrb[0].mxu0
        %4121 = vmatprep.mubr.bf16.mxu0 0
        %4122 = vmatmul.mubr.bf16.gmra.mrb[0].mxu0 %v3989
        %v4123 = vpop.f32.mrb[0].mxu0
        %v4124 = vadd.f32 0.0, %v4123
        %v4125 = vpop.f32.mrb[0].mxu0
        %v4126 = vpop.f32.mrb[0].mxu0
        %v4127 = vadd.f32 0.0, %v4126
        %v4128 = vpop.f32.mrb[0].mxu0
        %4129 = vmatprep.mubr.bf16.mxu0 0
        %4130 = vmatmul.mubr.bf16.gmra.mrb[0].mxu0 %v3992
        %v4131 = vpop.f32.mrb[0].mxu0
        %v4132 = vadd.f32 0.0, %v4131
        %v4133 = vpop.f32.mrb[0].mxu0
        %v4134 = vpop.f32.mrb[0].mxu0
        %v4135 = vadd.f32 0.0, %v4134
        %v4136 = vpop.f32.mrb[0].mxu0
        %4137 = vmatprep.mubr.bf16.mxu0 0
        %4138 = vmatmul.mubr.bf16.gmra.mrb[0].mxu0 %v3995
        %v4139 = vpop.f32.mrb[0].mxu0
        %v4140 = vadd.f32 0.0, %v4139
        %v4141 = vpop.f32.mrb[0].mxu0
        %v4142 = vpop.f32.mrb[0].mxu0
        %v4143 = vadd.f32 0.0, %v4142
        %v4144 = vpop.f32.mrb[0].mxu0
        %4145 = vmatprep.mubr.bf16.mxu0 0
        %4146 = vmatmul.mubr.bf16.gmra.mrb[0].mxu0 %v3998
        %v4147 = vpop.f32.mrb[0].mxu0
        %v4148 = vadd.f32 0.0, %v4147
        %v4149 = vpop.f32.mrb[0].mxu0
        %v4150 = vpop.f32.mrb[0].mxu0
        %v4151 = vadd.f32 0.0, %v4150
        %v4152 = vpop.f32.mrb[0].mxu0
        %4153 = vmatprep.mubr.bf16.mxu0 0
        %4154 = vmatmul.mubr.bf16.gmra.mrb[0].mxu0 %v4001
        %v4155 = vpop.f32.mrb[0].mxu0
        %v4156 = vadd.f32 0.0, %v4155
        %v4157 = vpop.f32.mrb[0].mxu0
        %v4158 = vpop.f32.mrb[0].mxu0
        %v4159 = vadd.f32 0.0, %v4158
        %v4160 = vpop.f32.mrb[0].mxu0
        %4161 = vmatprep.mubr.bf16.mxu0 0
        %4162 = vmatmul.mubr.bf16.gmra.mrb[0].mxu0 %v4004
        %v4163 = vpop.f32.mrb[0].mxu0
        %v4164 = vadd.f32 0.0, %v4163
        %v4165 = vpop.f32.mrb[0].mxu0
        %v4166 = vpop.f32.mrb[0].mxu0
        %v4167 = vadd.f32 0.0, %v4166
        %v4168 = vpop.f32.mrb[0].mxu0
        %4169 = vdwg.mxu0
        %v4170 = vadd.f32 %v3492, %v4044
        %v4171 = vadd.f32 %v3493, %v4047
        %v4172 = vadd.f32 %v3494, %v4052
        %v4173 = vadd.f32 %v3495, %v4055
        %v4174 = vadd.f32 %v3496, %v4060
        %v4175 = vadd.f32 %v3497, %v4063
        %v4176 = vadd.f32 %v3498, %v4068
        %v4177 = vadd.f32 %v3499, %v4071
        %v4178 = vadd.f32 %v3500, %v4076
        %v4179 = vadd.f32 %v3501, %v4079
        %v4180 = vadd.f32 %v3502, %v4084
        %v4181 = vadd.f32 %v3503, %v4087
        %v4182 = vadd.f32 %v3504, %v4092
        %v4183 = vadd.f32 %v3505, %v4095
        %v4184 = vadd.f32 %v3506, %v4100
        %v4185 = vadd.f32 %v3507, %v4103
        %v4186 = vadd.f32 %v3508, %v4108
        %v4187 = vadd.f32 %v3509, %v4111
        %v4188 = vadd.f32 %v3510, %v4116
        %v4189 = vadd.f32 %v3511, %v4119
        %v4190 = vadd.f32 %v3512, %v4124
        %v4191 = vadd.f32 %v3513, %v4127
        %v4192 = vadd.f32 %v3514, %v4132
        %v4193 = vadd.f32 %v3515, %v4135
        %v4194 = vadd.f32 %v3516, %v4140
        %v4195 = vadd.f32 %v3517, %v4143
        %v4196 = vadd.f32 %v3518, %v4148
        %v4197 = vadd.f32 %v3519, %v4151
        %v4198 = vadd.f32 %v3520, %v4156
        %v4199 = vadd.f32 %v3521, %v4159
        %v4200 = vadd.f32 %v3522, %v4164
        %v4201 = vadd.f32 %v3523, %v4167
        %s4202 = scalar_lea.vmem %s1, 16
        %v4203 = vld [vmem:[%s4202] sm:$0x3]
        %v4236 = vrot.slane %v355, 5
        %v4237 = vrot.slane %v4236, 4
        %v4238 = vrot.slane %v308, 5
        %v4239 = vsel %vm1351, %v4237, %v4238
        %v4240 = vrot.slane %v4238, 4
        %v4241 = vrot.slane %v339, 5
        %v4242 = vsel %vm1351, %v4240, %v4241
        %v4243 = vrot.slane %v356, 5
        %v4244 = vrot.slane %v4243, 4
        %v4245 = vrot.slane %v310, 5
        %v4246 = vsel %vm1351, %v4244, %v4245
        %v4247 = vrot.slane %v4245, 4
        %v4248 = vrot.slane %v340, 5
        %v4249 = vsel %vm1351, %v4247, %v4248
        %v4250 = vrot.slane %v357, 5
        %v4251 = vrot.slane %v4250, 4
        %v4252 = vrot.slane %v312, 5
        %v4253 = vsel %vm1351, %v4251, %v4252
        %v4254 = vrot.slane %v4252, 4
        %v4255 = vrot.slane %v341, 5
        %v4256 = vsel %vm1351, %v4254, %v4255
        %v4257 = vrot.slane %v358, 5
        %v4258 = vrot.slane %v4257, 4
        %v4259 = vrot.slane %v314, 5
        %v4260 = vsel %vm1351, %v4258, %v4259
        %v4261 = vrot.slane %v4259, 4
        %v4262 = vrot.slane %v342, 5
        %v4263 = vsel %vm1351, %v4261, %v4262
        %v4264 = vrot.slane %v359, 5
        %v4265 = vrot.slane %v4264, 4
        %v4266 = vrot.slane %v316, 5
        %v4267 = vsel %vm1351, %v4265, %v4266
        %v4268 = vrot.slane %v4266, 4
        %v4269 = vrot.slane %v343, 5
        %v4270 = vsel %vm1351, %v4268, %v4269
        %v4271 = vrot.slane %v360, 5
        %v4272 = vrot.slane %v4271, 4
        %v4273 = vrot.slane %v318, 5
        %v4274 = vsel %vm1351, %v4272, %v4273
        %v4275 = vrot.slane %v4273, 4
        %v4276 = vrot.slane %v344, 5
        %v4277 = vsel %vm1351, %v4275, %v4276
        %v4278 = vrot.slane %v361, 5
        %v4279 = vrot.slane %v4278, 4
        %v4280 = vrot.slane %v320, 5
        %v4281 = vsel %vm1351, %v4279, %v4280
        %v4282 = vrot.slane %v4280, 4
        %v4283 = vrot.slane %v345, 5
        %v4284 = vsel %vm1351, %v4282, %v4283
        %v4285 = vrot.slane %v362, 5
        %v4286 = vrot.slane %v4285, 4
        %v4287 = vrot.slane %v322, 5
        %v4288 = vsel %vm1351, %v4286, %v4287
        %v4289 = vrot.slane %v4287, 4
        %v4290 = vrot.slane %v346, 5
        %v4291 = vsel %vm1351, %v4289, %v4290
        %v4292 = vrot.slane %v363, 5
        %v4293 = vrot.slane %v4292, 4
        %v4294 = vrot.slane %v324, 5
        %v4295 = vsel %vm1351, %v4293, %v4294
        %v4296 = vrot.slane %v4294, 4
        %v4297 = vrot.slane %v347, 5
        %v4298 = vsel %vm1351, %v4296, %v4297
        %v4299 = vrot.slane %v364, 5
        %v4300 = vrot.slane %v4299, 4
        %v4301 = vrot.slane %v326, 5
        %v4302 = vsel %vm1351, %v4300, %v4301
        %v4303 = vrot.slane %v4301, 4
        %v4304 = vrot.slane %v348, 5
        %v4305 = vsel %vm1351, %v4303, %v4304
        %v4306 = vrot.slane %v365, 5
        %v4307 = vrot.slane %v4306, 4
        %v4308 = vrot.slane %v328, 5
        %v4309 = vsel %vm1351, %v4307, %v4308
        %v4310 = vrot.slane %v4308, 4
        %v4311 = vrot.slane %v349, 5
        %v4312 = vsel %vm1351, %v4310, %v4311
        %v4313 = vrot.slane %v366, 5
        %v4314 = vrot.slane %v4313, 4
        %v4315 = vrot.slane %v330, 5
        %v4316 = vsel %vm1351, %v4314, %v4315
        %v4317 = vrot.slane %v4315, 4
        %v4318 = vrot.slane %v350, 5
        %v4319 = vsel %vm1351, %v4317, %v4318
        %v4320 = vrot.slane %v367, 5
        %v4321 = vrot.slane %v4320, 4
        %v4322 = vrot.slane %v332, 5
        %v4323 = vsel %vm1351, %v4321, %v4322
        %v4324 = vrot.slane %v4322, 4
        %v4325 = vrot.slane %v351, 5
        %v4326 = vsel %vm1351, %v4324, %v4325
        %v4327 = vrot.slane %v368, 5
        %v4328 = vrot.slane %v4327, 4
        %v4329 = vrot.slane %v334, 5
        %v4330 = vsel %vm1351, %v4328, %v4329
        %v4331 = vrot.slane %v4329, 4
        %v4332 = vrot.slane %v352, 5
        %v4333 = vsel %vm1351, %v4331, %v4332
        %v4334 = vrot.slane %v369, 5
        %v4335 = vrot.slane %v4334, 4
        %v4336 = vrot.slane %v336, 5
        %v4337 = vsel %vm1351, %v4335, %v4336
        %v4338 = vrot.slane %v4336, 4
        %v4339 = vrot.slane %v353, 5
        %v4340 = vsel %vm1351, %v4338, %v4339
        %v4341 = vrot.slane %v370, 5
        %v4342 = vrot.slane %v4341, 4
        %v4343 = vrot.slane %v338, 5
        %v4344 = vsel %vm1351, %v4342, %v4343
        %v4345 = vrot.slane %v4343, 4
        %v4346 = vrot.slane %v354, 5
        %v4347 = vsel %vm1351, %v4345, %v4346
        %v4348 = vunpack.c.l.b16 %v4239
        %v4349 = vunpack.c.l.b16 %v4242
        %v4350 = vunpack.c.l.b16 %v4246
        %v4351 = vunpack.c.l.b16 %v4249
        %v4352 = vunpack.c.l.b16 %v4253
        %v4353 = vunpack.c.l.b16 %v4256
        %v4354 = vunpack.c.l.b16 %v4260
        %v4355 = vunpack.c.l.b16 %v4263
        %v4356 = vunpack.c.l.b16 %v4267
        %v4357 = vunpack.c.l.b16 %v4270
        %v4358 = vunpack.c.l.b16 %v4274
        %v4359 = vunpack.c.l.b16 %v4277
        %v4360 = vunpack.c.l.b16 %v4281
        %v4361 = vunpack.c.l.b16 %v4284
        %v4362 = vunpack.c.l.b16 %v4288
        %v4363 = vunpack.c.l.b16 %v4291
        %v4364 = vunpack.c.l.b16 %v4295
        %v4365 = vunpack.c.l.b16 %v4298
        %v4366 = vunpack.c.l.b16 %v4302
        %v4367 = vunpack.c.l.b16 %v4305
        %v4368 = vunpack.c.l.b16 %v4309
        %v4369 = vunpack.c.l.b16 %v4312
        %v4370 = vunpack.c.l.b16 %v4316
        %v4371 = vunpack.c.l.b16 %v4319
        %v4372 = vunpack.c.l.b16 %v4323
        %v4373 = vunpack.c.l.b16 %v4326
        %v4374 = vunpack.c.l.b16 %v4330
        %v4375 = vunpack.c.l.b16 %v4333
        %v4376 = vunpack.c.l.b16 %v4337
        %v4377 = vunpack.c.l.b16 %v4340
        %v4378 = vunpack.c.l.b16 %v4344
        %v4379 = vunpack.c.l.b16 %v4347
        %v4380 = vpack.c.b16 %v4349, %v4348
        %v4381 = vpack.c.b16 %v4351, %v4350
        %v4382 = vpack.c.b16 %v4353, %v4352
        %v4383 = vpack.c.b16 %v4355, %v4354
        %v4384 = vpack.c.b16 %v4357, %v4356
        %v4385 = vpack.c.b16 %v4359, %v4358
        %v4386 = vpack.c.b16 %v4361, %v4360
        %v4387 = vpack.c.b16 %v4363, %v4362
        %v4388 = vpack.c.b16 %v4365, %v4364
        %v4389 = vpack.c.b16 %v4367, %v4366
        %v4390 = vpack.c.b16 %v4369, %v4368
        %v4391 = vpack.c.b16 %v4371, %v4370
        %v4392 = vpack.c.b16 %v4373, %v4372
        %v4393 = vpack.c.b16 %v4375, %v4374
        %v4394 = vpack.c.b16 %v4377, %v4376
        %v4395 = vpack.c.b16 %v4379, %v4378
        %v4397 = vsel %vm809, %v4380, 0
        %v4400 = vsel %vm809, %v4381, 0
        %v4403 = vsel %vm809, %v4382, 0
        %v4406 = vsel %vm809, %v4383, 0
        %v4409 = vsel %vm809, %v4384, 0
        %v4412 = vsel %vm809, %v4385, 0
        %v4415 = vsel %vm809, %v4386, 0
        %v4418 = vsel %vm809, %v4387, 0
        %v4421 = vsel %vm809, %v4388, 0
        %v4424 = vsel %vm809, %v4389, 0
        %v4427 = vsel %vm809, %v4390, 0
        %v4430 = vsel %vm809, %v4391, 0
        %v4433 = vsel %vm809, %v4392, 0
        %v4436 = vsel %vm809, %v4393, 0
        %v4439 = vsel %vm809, %v4394, 0
        %v4442 = vsel %vm809, %v4395, 0
        %v4445 = vsel %vm858, %v4203, 0
        %4447 = vmatprep.subr.bf16.mxu0 0
        %4448 = vmatpush1.bf16.msra.mxu0 %v4445
        %4449 = vmatprep.subr.bf16.mxu0 0
        %4450 = vmatpush1.bf16.msra.mxu0 0
        %4451 = vmatprep.subr.bf16.mxu0 0
        %4452 = vmatpush1.bf16.msra.mxu0 0
        %4453 = vmatprep.subr.bf16.mxu0 0
        %4454 = vmatpush1.bf16.msra.mxu0 0
        %4455 = vmatprep.subr.bf16.mxu0 0
        %4456 = vmatpush1.bf16.msra.mxu0 0
        %4457 = vmatprep.subr.bf16.mxu0 0
        %4458 = vmatpush1.bf16.msra.mxu0 0
        %4459 = vmatprep.subr.bf16.mxu0 0
        %4460 = vmatpush1.bf16.msra.mxu0 0
        %4461 = vmatprep.subr.bf16.mxu0 0
        %4462 = vmatpush1.bf16.msra.mxu0 0
        %4463 = vmatprep.subr.bf16.mxu0 0
        %4464 = vmatpush1.bf16.msra.mxu0 0
        %4465 = vmatprep.subr.bf16.mxu0 0
        %4466 = vmatpush1.bf16.msra.mxu0 0
        %4467 = vmatprep.subr.bf16.mxu0 0
        %4468 = vmatpush1.bf16.msra.mxu0 0
        %4469 = vmatprep.subr.bf16.mxu0 0
        %4470 = vmatpush1.bf16.msra.mxu0 0
        %4471 = vmatprep.subr.bf16.mxu0 0
        %4472 = vmatpush1.bf16.msra.mxu0 0
        %4473 = vmatprep.subr.bf16.mxu0 0
        %4474 = vmatpush1.bf16.msra.mxu0 0
        %4475 = vmatprep.subr.bf16.mxu0 0
        %4476 = vmatpush1.bf16.msra.mxu0 0
        %4477 = vmatprep.subr.bf16.mxu0 0
        %4478 = vmatpush1.bf16.msra.mxu0 0
        %4479 = vmatprep.mubr.bf16.mxu0 0
        %4480 = vmatmul.mubr.bf16.gmra.mrb[0].mxu0 %v4397
        %v4481 = vpop.f32.mrb[0].mxu0
        %v4482 = vadd.f32 0.0, %v4481
        %v4483 = vpop.f32.mrb[0].mxu0
        %v4484 = vpop.f32.mrb[0].mxu0
        %v4485 = vadd.f32 0.0, %v4484
        %v4486 = vpop.f32.mrb[0].mxu0
        %4487 = vmatprep.mubr.bf16.mxu0 0
        %4488 = vmatmul.mubr.bf16.gmra.mrb[0].mxu0 %v4400
        %v4489 = vpop.f32.mrb[0].mxu0
        %v4490 = vadd.f32 0.0, %v4489
        %v4491 = vpop.f32.mrb[0].mxu0
        %v4492 = vpop.f32.mrb[0].mxu0
        %v4493 = vadd.f32 0.0, %v4492
        %v4494 = vpop.f32.mrb[0].mxu0
        %4495 = vmatprep.mubr.bf16.mxu0 0
        %4496 = vmatmul.mubr.bf16.gmra.mrb[0].mxu0 %v4403
        %v4497 = vpop.f32.mrb[0].mxu0
        %v4498 = vadd.f32 0.0, %v4497
        %v4499 = vpop.f32.mrb[0].mxu0
        %v4500 = vpop.f32.mrb[0].mxu0
        %v4501 = vadd.f32 0.0, %v4500
        %v4502 = vpop.f32.mrb[0].mxu0
        %4503 = vmatprep.mubr.bf16.mxu0 0
        %4504 = vmatmul.mubr.bf16.gmra.mrb[0].mxu0 %v4406
        %v4505 = vpop.f32.mrb[0].mxu0
        %v4506 = vadd.f32 0.0, %v4505
        %v4507 = vpop.f32.mrb[0].mxu0
        %v4508 = vpop.f32.mrb[0].mxu0
        %v4509 = vadd.f32 0.0, %v4508
        %v4510 = vpop.f32.mrb[0].mxu0
        %4511 = vmatprep.mubr.bf16.mxu0 0
        %4512 = vmatmul.mubr.bf16.gmra.mrb[0].mxu0 %v4409
        %v4513 = vpop.f32.mrb[0].mxu0
        %v4514 = vadd.f32 0.0, %v4513
        %v4515 = vpop.f32.mrb[0].mxu0
        %v4516 = vpop.f32.mrb[0].mxu0
        %v4517 = vadd.f32 0.0, %v4516
        %v4518 = vpop.f32.mrb[0].mxu0
        %4519 = vmatprep.mubr.bf16.mxu0 0
        %4520 = vmatmul.mubr.bf16.gmra.mrb[0].mxu0 %v4412
        %v4521 = vpop.f32.mrb[0].mxu0
        %v4522 = vadd.f32 0.0, %v4521
        %v4523 = vpop.f32.mrb[0].mxu0
        %v4524 = vpop.f32.mrb[0].mxu0
        %v4525 = vadd.f32 0.0, %v4524
        %v4526 = vpop.f32.mrb[0].mxu0
        %4527 = vmatprep.mubr.bf16.mxu0 0
        %4528 = vmatmul.mubr.bf16.gmra.mrb[0].mxu0 %v4415
        %v4529 = vpop.f32.mrb[0].mxu0
        %v4530 = vadd.f32 0.0, %v4529
        %v4531 = vpop.f32.mrb[0].mxu0
        %v4532 = vpop.f32.mrb[0].mxu0
        %v4533 = vadd.f32 0.0, %v4532
        %v4534 = vpop.f32.mrb[0].mxu0
        %4535 = vmatprep.mubr.bf16.mxu0 0
        %4536 = vmatmul.mubr.bf16.gmra.mrb[0].mxu0 %v4418
        %v4537 = vpop.f32.mrb[0].mxu0
        %v4538 = vadd.f32 0.0, %v4537
        %v4539 = vpop.f32.mrb[0].mxu0
        %v4540 = vpop.f32.mrb[0].mxu0
        %v4541 = vadd.f32 0.0, %v4540
        %v4542 = vpop.f32.mrb[0].mxu0
        %4543 = vmatprep.mubr.bf16.mxu0 0
        %4544 = vmatmul.mubr.bf16.gmra.mrb[0].mxu0 %v4421
        %v4545 = vpop.f32.mrb[0].mxu0
        %v4546 = vadd.f32 0.0, %v4545
        %v4547 = vpop.f32.mrb[0].mxu0
        %v4548 = vpop.f32.mrb[0].mxu0
        %v4549 = vadd.f32 0.0, %v4548
        %v4550 = vpop.f32.mrb[0].mxu0
        %4551 = vmatprep.mubr.bf16.mxu0 0
        %4552 = vmatmul.mubr.bf16.gmra.mrb[0].mxu0 %v4424
        %v4553 = vpop.f32.mrb[0].mxu0
        %v4554 = vadd.f32 0.0, %v4553
        %v4555 = vpop.f32.mrb[0].mxu0
        %v4556 = vpop.f32.mrb[0].mxu0
        %v4557 = vadd.f32 0.0, %v4556
        %v4558 = vpop.f32.mrb[0].mxu0
        %4559 = vmatprep.mubr.bf16.mxu0 0
        %4560 = vmatmul.mubr.bf16.gmra.mrb[0].mxu0 %v4427
        %v4561 = vpop.f32.mrb[0].mxu0
        %v4562 = vadd.f32 0.0, %v4561
        %v4563 = vpop.f32.mrb[0].mxu0
        %v4564 = vpop.f32.mrb[0].mxu0
        %v4565 = vadd.f32 0.0, %v4564
        %v4566 = vpop.f32.mrb[0].mxu0
        %4567 = vmatprep.mubr.bf16.mxu0 0
        %4568 = vmatmul.mubr.bf16.gmra.mrb[0].mxu0 %v4430
        %v4569 = vpop.f32.mrb[0].mxu0
        %v4570 = vadd.f32 0.0, %v4569
        %v4571 = vpop.f32.mrb[0].mxu0
        %v4572 = vpop.f32.mrb[0].mxu0
        %v4573 = vadd.f32 0.0, %v4572
        %v4574 = vpop.f32.mrb[0].mxu0
        %4575 = vmatprep.mubr.bf16.mxu0 0
        %4576 = vmatmul.mubr.bf16.gmra.mrb[0].mxu0 %v4433
        %v4577 = vpop.f32.mrb[0].mxu0
        %v4578 = vadd.f32 0.0, %v4577
        %v4579 = vpop.f32.mrb[0].mxu0
        %v4580 = vpop.f32.mrb[0].mxu0
        %v4581 = vadd.f32 0.0, %v4580
        %v4582 = vpop.f32.mrb[0].mxu0
        %4583 = vmatprep.mubr.bf16.mxu0 0
        %4584 = vmatmul.mubr.bf16.gmra.mrb[0].mxu0 %v4436
        %v4585 = vpop.f32.mrb[0].mxu0
        %v4586 = vadd.f32 0.0, %v4585
        %v4587 = vpop.f32.mrb[0].mxu0
        %v4588 = vpop.f32.mrb[0].mxu0
        %v4589 = vadd.f32 0.0, %v4588
        %v4590 = vpop.f32.mrb[0].mxu0
        %4591 = vmatprep.mubr.bf16.mxu0 0
        %4592 = vmatmul.mubr.bf16.gmra.mrb[0].mxu0 %v4439
        %v4593 = vpop.f32.mrb[0].mxu0
        %v4594 = vadd.f32 0.0, %v4593
        %v4595 = vpop.f32.mrb[0].mxu0
        %v4596 = vpop.f32.mrb[0].mxu0
        %v4597 = vadd.f32 0.0, %v4596
        %v4598 = vpop.f32.mrb[0].mxu0
        %4599 = vmatprep.mubr.bf16.mxu0 0
        %4600 = vmatmul.mubr.bf16.gmra.mrb[0].mxu0 %v4442
        %v4601 = vpop.f32.mrb[0].mxu0
        %v4602 = vadd.f32 0.0, %v4601
        %v4603 = vpop.f32.mrb[0].mxu0
        %v4604 = vpop.f32.mrb[0].mxu0
        %v4605 = vadd.f32 0.0, %v4604
        %v4606 = vpop.f32.mrb[0].mxu0
        %4607 = vdwg.mxu0
        %v4608 = vadd.f32 %v4170, %v4482
        %v4609 = vadd.f32 %v4171, %v4485
        %v4610 = vadd.f32 %v4172, %v4490
        %v4611 = vadd.f32 %v4173, %v4493
        %v4612 = vadd.f32 %v4174, %v4498
        %v4613 = vadd.f32 %v4175, %v4501
        %v4614 = vadd.f32 %v4176, %v4506
        %v4615 = vadd.f32 %v4177, %v4509
        %v4616 = vadd.f32 %v4178, %v4514
        %v4617 = vadd.f32 %v4179, %v4517
        %v4618 = vadd.f32 %v4180, %v4522
        %v4619 = vadd.f32 %v4181, %v4525
        %v4620 = vadd.f32 %v4182, %v4530
        %v4621 = vadd.f32 %v4183, %v4533
        %v4622 = vadd.f32 %v4184, %v4538
        %v4623 = vadd.f32 %v4185, %v4541
        %v4624 = vadd.f32 %v4186, %v4546
        %v4625 = vadd.f32 %v4187, %v4549
        %v4626 = vadd.f32 %v4188, %v4554
        %v4627 = vadd.f32 %v4189, %v4557
        %v4628 = vadd.f32 %v4190, %v4562
        %v4629 = vadd.f32 %v4191, %v4565
        %v4630 = vadd.f32 %v4192, %v4570
        %v4631 = vadd.f32 %v4193, %v4573
        %v4632 = vadd.f32 %v4194, %v4578
        %v4633 = vadd.f32 %v4195, %v4581
        %v4634 = vadd.f32 %v4196, %v4586
        %v4635 = vadd.f32 %v4197, %v4589
        %v4636 = vadd.f32 %v4198, %v4594
        %v4637 = vadd.f32 %v4199, %v4597
        %v4638 = vadd.f32 %v4200, %v4602
        %v4639 = vadd.f32 %v4201, %v4605
        %4640 = vst.msk [vmem:[%s169] sm:$0xff] %vm809, %v4608
        %4641 = vst.msk [vmem:[%s169 + $0x8] sm:$0xff] %vm809, %v4609
        %4642 = vst.msk [vmem:[%s169 + $0x10] sm:$0xff] %vm809, %v4610
        %4643 = vst.msk [vmem:[%s169 + $0x18] sm:$0xff] %vm809, %v4611
        %4644 = vst.msk [vmem:[%s169 + $0x20] sm:$0xff] %vm809, %v4612
        %4645 = vst.msk [vmem:[%s169 + $0x28] sm:$0xff] %vm809, %v4613
        %4646 = vst.msk [vmem:[%s169 + $0x30] sm:$0xff] %vm809, %v4614
        %4647 = vst.msk [vmem:[%s169 + $0x38] sm:$0xff] %vm809, %v4615
        %4648 = vst.msk [vmem:[%s169 + $0x40] sm:$0xff] %vm809, %v4616
        %4649 = vst.msk [vmem:[%s169 + $0x48] sm:$0xff] %vm809, %v4617
        %4650 = vst.msk [vmem:[%s169 + $0x50] sm:$0xff] %vm809, %v4618
        %4651 = vst.msk [vmem:[%s169 + $0x58] sm:$0xff] %vm809, %v4619
        %4652 = vst.msk [vmem:[%s169 + $0x60] sm:$0xff] %vm809, %v4620
        %4653 = vst.msk [vmem:[%s169 + $0x68] sm:$0xff] %vm809, %v4621
        %4654 = vst.msk [vmem:[%s169 + $0x70] sm:$0xff] %vm809, %v4622
        %4655 = vst.msk [vmem:[%s169 + $0x78] sm:$0xff] %vm809, %v4623
        %4656 = vst.msk [vmem:[%s169 + $0x80] sm:$0xff] %vm809, %v4624
        %4657 = vst.msk [vmem:[%s169 + $0x88] sm:$0xff] %vm809, %v4625
        %4658 = vst.msk [vmem:[%s169 + $0x90] sm:$0xff] %vm809, %v4626
        %4659 = vst.msk [vmem:[%s169 + $0x98] sm:$0xff] %vm809, %v4627
        %4660 = vst.msk [vmem:[%s169 + $0xa0] sm:$0xff] %vm809, %v4628
        %4661 = vst.msk [vmem:[%s169 + $0xa8] sm:$0xff] %vm809, %v4629
        %4662 = vst.msk [vmem:[%s169 + $0xb0] sm:$0xff] %vm809, %v4630
        %4663 = vst.msk [vmem:[%s169 + $0xb8] sm:$0xff] %vm809, %v4631
        %4664 = vst.msk [vmem:[%s169 + $0xc0] sm:$0xff] %vm809, %v4632
        %4665 = vst.msk [vmem:[%s169 + $0xc8] sm:$0xff] %vm809, %v4633
        %4666 = vst.msk [vmem:[%s169 + $0xd0] sm:$0xff] %vm809, %v4634
        %4667 = vst.msk [vmem:[%s169 + $0xd8] sm:$0xff] %vm809, %v4635
        %4668 = vst.msk [vmem:[%s169 + $0xe0] sm:$0xff] %vm809, %v4636
        %4669 = vst.msk [vmem:[%s169 + $0xe8] sm:$0xff] %vm809, %v4637
        %4670 = vst.msk [vmem:[%s169 + $0xf0] sm:$0xff] %vm809, %v4638
        %4671 = vst.msk [vmem:[%s169 + $0xf8] sm:$0xff] %vm809, %v4639
        %v4672 = vld [vmem:[#allocation2] sm:$0x1]
        %v4673 = vsel %vm809, %v4608, 0.0
        %v4674 = vsel %vm809, %v4609, 0.0
        %v4675 = vadd.f32 %v4673, %v4674
        %v4676 = vsel %vm809, %v4610, 0.0
        %v4677 = vadd.f32 %v4675, %v4676
        %v4678 = vsel %vm809, %v4611, 0.0
        %v4679 = vadd.f32 %v4677, %v4678
        %v4680 = vsel %vm809, %v4612, 0.0
        %v4681 = vadd.f32 %v4679, %v4680
        %v4682 = vsel %vm809, %v4613, 0.0
        %v4683 = vadd.f32 %v4681, %v4682
        %v4684 = vsel %vm809, %v4614, 0.0
        %v4685 = vadd.f32 %v4683, %v4684
        %v4686 = vsel %vm809, %v4615, 0.0
        %v4687 = vadd.f32 %v4685, %v4686
        %v4688 = vsel %vm809, %v4616, 0.0
        %v4689 = vadd.f32 %v4687, %v4688
        %v4690 = vsel %vm809, %v4617, 0.0
        %v4691 = vadd.f32 %v4689, %v4690
        %v4692 = vsel %vm809, %v4618, 0.0
        %v4693 = vadd.f32 %v4691, %v4692
        %v4694 = vsel %vm809, %v4619, 0.0
        %v4695 = vadd.f32 %v4693, %v4694
        %v4696 = vsel %vm809, %v4620, 0.0
        %v4697 = vadd.f32 %v4695, %v4696
        %v4698 = vsel %vm809, %v4621, 0.0
        %v4699 = vadd.f32 %v4697, %v4698
        %v4700 = vsel %vm809, %v4622, 0.0
        %v4701 = vadd.f32 %v4699, %v4700
        %v4702 = vsel %vm809, %v4623, 0.0
        %v4703 = vadd.f32 %v4701, %v4702
        %v4704 = vsel %vm809, %v4624, 0.0
        %v4705 = vadd.f32 %v4703, %v4704
        %v4706 = vsel %vm809, %v4625, 0.0
        %v4707 = vadd.f32 %v4705, %v4706
        %v4708 = vsel %vm809, %v4626, 0.0
        %v4709 = vadd.f32 %v4707, %v4708
        %v4710 = vsel %vm809, %v4627, 0.0
        %v4711 = vadd.f32 %v4709, %v4710
        %v4712 = vsel %vm809, %v4628, 0.0
        %v4713 = vadd.f32 %v4711, %v4712
        %v4714 = vsel %vm809, %v4629, 0.0
        %v4715 = vadd.f32 %v4713, %v4714
        %v4716 = vsel %vm809, %v4630, 0.0
        %v4717 = vadd.f32 %v4715, %v4716
        %v4718 = vsel %vm809, %v4631, 0.0
        %v4719 = vadd.f32 %v4717, %v4718
        %v4720 = vsel %vm809, %v4632, 0.0
        %v4721 = vadd.f32 %v4719, %v4720
        %v4722 = vsel %vm809, %v4633, 0.0
        %v4723 = vadd.f32 %v4721, %v4722
        %v4724 = vsel %vm809, %v4634, 0.0
        %v4725 = vadd.f32 %v4723, %v4724
        %v4726 = vsel %vm809, %v4635, 0.0
        %v4727 = vadd.f32 %v4725, %v4726
        %v4728 = vsel %vm809, %v4636, 0.0
        %v4729 = vadd.f32 %v4727, %v4728
        %v4730 = vsel %vm809, %v4637, 0.0
        %v4731 = vadd.f32 %v4729, %v4730
        %v4732 = vsel %vm809, %v4638, 0.0
        %v4733 = vadd.f32 %v4731, %v4732
        %v4734 = vsel %vm809, %v4639, 0.0
        %v4735 = vadd.f32 %v4733, %v4734
        %v4736 = vrot.slane %v4735, 4
        %v4737 = vadd.f32 %v4735, %v4736
        %v4738 = vrot.slane %v4737, 2
        %v4739 = vadd.f32 %v4737, %v4738
        %v4740 = vrot.slane %v4739, 1
        %v4741 = vadd.f32 %v4739, %v4740
        %v4742 = vadd.f32 %v4672, %v4741
        %vm4743 = vcmask 24576
        %4744 = vst.msk [vmem:[#allocation2] sm:$0x1] %vm4743, %v4742
        %v4745 = vld [vmem:[#allocation2 + $0x1] sm:$0x1]
        %v4746 = vmul.f32 %v4608, %v4608
        %v4747 = vmul.f32 %v4609, %v4609
        %v4748 = vmul.f32 %v4610, %v4610
        %v4749 = vmul.f32 %v4611, %v4611
        %v4750 = vmul.f32 %v4612, %v4612
        %v4751 = vmul.f32 %v4613, %v4613
        %v4752 = vmul.f32 %v4614, %v4614
        %v4753 = vmul.f32 %v4615, %v4615
        %v4754 = vmul.f32 %v4616, %v4616
        %v4755 = vmul.f32 %v4617, %v4617
        %v4756 = vmul.f32 %v4618, %v4618
        %v4757 = vmul.f32 %v4619, %v4619
        %v4758 = vmul.f32 %v4620, %v4620
        %v4759 = vmul.f32 %v4621, %v4621
        %v4760 = vmul.f32 %v4622, %v4622
        %v4761 = vmul.f32 %v4623, %v4623
        %v4762 = vmul.f32 %v4624, %v4624
        %v4763 = vmul.f32 %v4625, %v4625
        %v4764 = vmul.f32 %v4626, %v4626
        %v4765 = vmul.f32 %v4627, %v4627
        %v4766 = vmul.f32 %v4628, %v4628
        %v4767 = vmul.f32 %v4629, %v4629
        %v4768 = vmul.f32 %v4630, %v4630
        %v4769 = vmul.f32 %v4631, %v4631
        %v4770 = vmul.f32 %v4632, %v4632
        %v4771 = vmul.f32 %v4633, %v4633
        %v4772 = vmul.f32 %v4634, %v4634
        %v4773 = vmul.f32 %v4635, %v4635
        %v4774 = vmul.f32 %v4636, %v4636
        %v4775 = vmul.f32 %v4637, %v4637
        %v4776 = vmul.f32 %v4638, %v4638
        %v4777 = vmul.f32 %v4639, %v4639
        %v4778 = vsel %vm809, %v4746, 0.0
        %v4779 = vsel %vm809, %v4747, 0.0
        %v4780 = vadd.f32 %v4778, %v4779
        %v4781 = vsel %vm809, %v4748, 0.0
        %v4782 = vadd.f32 %v4780, %v4781
        %v4783 = vsel %vm809, %v4749, 0.0
        %v4784 = vadd.f32 %v4782, %v4783
        %v4785 = vsel %vm809, %v4750, 0.0
        %v4786 = vadd.f32 %v4784, %v4785
        %v4787 = vsel %vm809, %v4751, 0.0
        %v4788 = vadd.f32 %v4786, %v4787
        %v4789 = vsel %vm809, %v4752, 0.0
        %v4790 = vadd.f32 %v4788, %v4789
        %v4791 = vsel %vm809, %v4753, 0.0
        %v4792 = vadd.f32 %v4790, %v4791
        %v4793 = vsel %vm809, %v4754, 0.0
        %v4794 = vadd.f32 %v4792, %v4793
        %v4795 = vsel %vm809, %v4755, 0.0
        %v4796 = vadd.f32 %v4794, %v4795
        %v4797 = vsel %vm809, %v4756, 0.0
        %v4798 = vadd.f32 %v4796, %v4797
        %v4799 = vsel %vm809, %v4757, 0.0
        %v4800 = vadd.f32 %v4798, %v4799
        %v4801 = vsel %vm809, %v4758, 0.0
        %v4802 = vadd.f32 %v4800, %v4801
        %v4803 = vsel %vm809, %v4759, 0.0
        %v4804 = vadd.f32 %v4802, %v4803
        %v4805 = vsel %vm809, %v4760, 0.0
        %v4806 = vadd.f32 %v4804, %v4805
        %v4807 = vsel %vm809, %v4761, 0.0
        %v4808 = vadd.f32 %v4806, %v4807
        %v4809 = vsel %vm809, %v4762, 0.0
        %v4810 = vadd.f32 %v4808, %v4809
        %v4811 = vsel %vm809, %v4763, 0.0
        %v4812 = vadd.f32 %v4810, %v4811
        %v4813 = vsel %vm809, %v4764, 0.0
        %v4814 = vadd.f32 %v4812, %v4813
        %v4815 = vsel %vm809, %v4765, 0.0
        %v4816 = vadd.f32 %v4814, %v4815
        %v4817 = vsel %vm809, %v4766, 0.0
        %v4818 = vadd.f32 %v4816, %v4817
        %v4819 = vsel %vm809, %v4767, 0.0
        %v4820 = vadd.f32 %v4818, %v4819
        %v4821 = vsel %vm809, %v4768, 0.0
        %v4822 = vadd.f32 %v4820, %v4821
        %v4823 = vsel %vm809, %v4769, 0.0
        %v4824 = vadd.f32 %v4822, %v4823
        %v4825 = vsel %vm809, %v4770, 0.0
        %v4826 = vadd.f32 %v4824, %v4825
        %v4827 = vsel %vm809, %v4771, 0.0
        %v4828 = vadd.f32 %v4826, %v4827
        %v4829 = vsel %vm809, %v4772, 0.0
        %v4830 = vadd.f32 %v4828, %v4829
        %v4831 = vsel %vm809, %v4773, 0.0
        %v4832 = vadd.f32 %v4830, %v4831
        %v4833 = vsel %vm809, %v4774, 0.0
        %v4834 = vadd.f32 %v4832, %v4833
        %v4835 = vsel %vm809, %v4775, 0.0
        %v4836 = vadd.f32 %v4834, %v4835
        %v4837 = vsel %vm809, %v4776, 0.0
        %v4838 = vadd.f32 %v4836, %v4837
        %v4839 = vsel %vm809, %v4777, 0.0
        %v4840 = vadd.f32 %v4838, %v4839
        %v4841 = vrot.slane %v4840, 4
        %v4842 = vadd.f32 %v4840, %v4841
        %v4843 = vrot.slane %v4842, 2
        %v4844 = vadd.f32 %v4842, %v4843
        %v4845 = vrot.slane %v4844, 1
        %v4846 = vadd.f32 %v4844, %v4845
        %v4847 = vadd.f32 %v4745, %v4846
        %4848 = vst.msk [vmem:[#allocation2 + $0x1] sm:$0x1] %vm4743, %v4847
        %p4849 = scmp.lt.s32.totalorder %s16, 1
        %s4850 = scalar_select %p4849, %s16, 1
        %s4851 = smul.addr %s4850, 32
        %s4852 = smul.addr %s4851, 8
        %s4853 = scalar_lea.vmem %s2, %s4852
        // Predicated region
        $region33: #{tpu_custom_call.1} parent=27 // pred_check
          %p4854 = pneg %p81
        $region34: #{tpu_custom_call.1} parent=27 // pred_check_branch
          %4856 = sbr.rel (%p4854) target = $region36
        $region35: #{tpu_custom_call.1} parent=27 // pred_region
          _
        $region36: #{tpu_custom_call.1} parent=27 // pred_fallthru
          _
        // Predicated region
        $region37: #{tpu_custom_call.1} parent=27 // pred_check
          %p4857 = pneg %p102
        $region38: #{tpu_custom_call.1} parent=27 // pred_check_branch
          %4859 = sbr.rel (%p4857) target = $region40
        $region39: #{tpu_custom_call.1} parent=27 // pred_region
          %s4861 = ssub.s32 32, 32
          %4862 = vsyncadd [#allocation3], %s4861
          %s4864 = sshll.u32 [#allocation2], 4
          %s4865 = int_to_ptr.vmem [resolvable:$true] %s4864
          %4867 = dma.vmem_to_hbm [thread:$0]  %s4865, 32, %s3, [#allocation3]
        $region40: #{tpu_custom_call.1} parent=27 // pred_fallthru
          _
        // Predicated region
        $region41: #{tpu_custom_call.1} parent=27 // pred_check
          %p4868 = pneg %p102
        $region42: #{tpu_custom_call.1} parent=27 // pred_check_branch
          %4870 = sbr.rel (%p4868) target = $region44
        $region43: #{tpu_custom_call.1} parent=27 // pred_region
          %4871 = dma.done [#allocation3], 32
        $region44: #{tpu_custom_call.1} parent=27 // pred_fallthru
          _
      $region28: #{tpu_custom_call.1} parent=5 // pred_fallthru
        _
      %p4872 = scmp.le.s32.totalorder 2, %s11
      // Predicated region
      $region45: #{tpu_custom_call.1} parent=5 // pred_check
        %p4873 = pneg %p4872
      $region46: #{tpu_custom_call.1} parent=5 // pred_check_branch
        %4875 = sbr.rel (%p4873) target = $region48
      $region47: #{tpu_custom_call.1} parent=5 // pred_region
        %s4876 = ssub.s32 %s11, 2
        // Predicated region
        $region49: #{tpu_custom_call.1} parent=47 // pred_check
          %p4877 = pneg %p87
        $region50: #{tpu_custom_call.1} parent=47 // pred_check_branch
          %4879 = sbr.rel (%p4877) target = $region52
        $region51: #{tpu_custom_call.1} parent=47 // pred_region
          %p4880 = scmp.lt.s32.totalorder %s17, 1
          %s4881 = scalar_select %p4880, %s17, 1
          %s4882 = smul.addr %s4881, 32
          %s4883 = smul.addr %s4882, 8
          %s4884 = scalar_lea.vmem %s2, %s4883
        $region52: #{tpu_custom_call.1} parent=47 // pred_fallthru
          _
      $region48: #{tpu_custom_call.1} parent=5 // pred_fallthru
        _
    $region6: #{tpu_custom_call.1} parent=1 // loop_footer
      %s15 = sadd.s32 1, %s11
    $region7: #{tpu_custom_call.1} parent=1 // loop_footer_branch
      %10 = sbr.rel target = $region3
    $region8: #{tpu_custom_call.1} parent=1 // loop_exit
      _
    %4885 = vsyncpa [#allocation3], 1
    %s4886 = scalar_lea.sflag [#allocation3], 1
    %4887 = vsyncpa %s4886, 1

</llo_original>
